<compile_context>
chip_gen: v7x
topology: tpu7x:2x2x1
jax: 0.10.0
libtpu: 0.0.40
codegen_flags: <defaults>
</compile_context>

<pallas_src>
import functools

import jax
import jax.numpy as jnp
from jax import lax
from jax.experimental import pallas as pl
from jax.experimental.pallas import tpu as pltpu


# ----------------------------- Pallas kernel -----------------------------

def _fused_gat_layer_kernel(x_ref, w_ref, asrcT_ref, wadst_ref, bias_ref,
                            adj_ref, o_ref, *, heads, out_ch, out_width,
                            tile_dst, apply_log_softmax, approx_recip):
    """One destination-row tile of a GATConv layer (all heads), fully fused.

    x_ref     : (N, F)   bf16  node features for ALL source nodes
    w_ref     : (F, Wo)  bf16  projection weight, zero lane-padded to out_width
    asrcT_ref : (Hp, F)  bf16  att_src folded into W, transposed, sublane-padded
    wadst_ref : (F, H)   bf16  att_dst folded into W
    bias_ref  : (1, Wo)  f32   bias, zero lane-padded
    adj_ref   : (T, N)   int8  adj[i, j] != 0 iff edge j -> i (self-loops incl.)
    o_ref     : (T, Wo)        lane-dense output tile
    """
    f32 = jnp.float32
    bf16 = jnp.bfloat16

    x = x_ref[...]                                                        # [N, F]

    # Projection for all source nodes (single MXU matmul, lane-padded width).
    h_all = jnp.dot(x, w_ref[...], preferred_element_type=f32)            # [N, Wo]
    h_all_bf = h_all.astype(bf16)

    # Source attention scores, directly lane-dense: src_rows[h, j] = x_j . WaSrc[:, h]
    src_rows = lax.dot_general(asrcT_ref[...], x,
                               dimension_numbers=(((1,), (1,)), ((), ())),
                               preferred_element_type=f32)                 # [Hp, N]

    # Destination attention scores for this tile's rows only (tiny matmul on a
    # pl.ds slice of x — no duplicated x input / redundant full projection).
    row0 = pl.multiple_of(pl.program_id(0) * tile_dst, tile_dst)
    x_tile = x_ref[pl.ds(row0, tile_dst), :]                               # [T, F]
    dst_cols = jnp.dot(x_tile, wadst_ref[...], preferred_element_type=f32)  # [T, H]

    mask = adj_ref[...] != 0                                               # [T, N]
    neg_inf = f32(-1e30)
    lane_iota = lax.broadcasted_iota(jnp.int32, (1, out_width), 1)

    acc = jnp.zeros((tile_dst, out_width), f32)
    for h in range(heads):                              # static, unrolled at trace
        e = dst_cols[:, h:h + 1] + src_rows[h:h + 1, :]                    # [T, N]
        e = jnp.maximum(e, 0.2 * e)                                        # LeakyReLU(0.2)
        # Self-loops guarantee >= 1 unmasked entry per destination row, so the
        # softmax below never sees an all-masked row.
        e = jnp.where(mask, e, neg_inf)
        m = jnp.max(e, axis=-1, keepdims=True)
        p = jnp.exp(e - m)
        denom = jnp.sum(p, axis=-1, keepdims=True)
        inv = pl.reciprocal(denom, approx=approx_recip)                    # [T, 1]
        # Aggregate against the full-width (all-heads) RHS: same MXU pass count
        # as an out_ch-wide RHS since out_width <= 128 lanes. Normalize AFTER
        # the matmul (scales [T, Wo], not [T, N]).
        agg = jnp.dot(p.astype(bf16), h_all_bf, preferred_element_type=f32)  # [T, Wo]
        if heads == 1 and out_width == out_ch:
            acc = agg * inv
        else:
            in_head = (lane_iota >= h * out_ch) & (lane_iota < (h + 1) * out_ch)
            acc = acc + jnp.where(in_head, agg * inv, 0.0)

    out = acc + bias_ref[...]

    if apply_log_softmax:
        mm = jnp.max(out, axis=-1, keepdims=True)
        s = out - mm
        lse = jnp.log(jnp.sum(jnp.exp(s), axis=-1, keepdims=True))
        out = s - lse

    o_ref[...] = out.astype(o_ref.dtype)


# ----------------------------- JAX wrapper -----------------------------

def _num_tensorcores():
    try:
        return max(1, int(getattr(jax.devices()[0], "num_cores", 1) or 1))
    except Exception:
        return 1


def _vmem_limit_bytes(n, f_in, tile_dst, out_width, heads):
    io = (n * f_in * 2 + f_in * out_width * 2 + 8 * f_in * 2
          + f_in * heads * 2 + out_width * 4
          + tile_dst * n + tile_dst * out_width * 4)
    tmp = (n * out_width * 6 + 5 * tile_dst * n * 4
           + 3 * tile_dst * out_width * 4)
    est = 2 * io + tmp
    return int(min(max(2 * est, 16 * 1024 * 1024), 100 * 1024 * 1024))


def gat_conv_fused(x, adj, W, att_src, att_dst, bias, *, heads, out_ch,
                   out_width=None, apply_log_softmax=False,
                   out_dtype=jnp.float32, tile_dst=None, approx_recip=True):
    """PyG-style GATConv (concat=True, negative_slope=0.2, dropout=0), fused.

    Optionally zero-pads the output lane width to `out_width` and fuses a
    trailing log_softmax over the feature dimension.
    """
    N, f_in = x.shape
    hc = heads * out_ch
    out_width = hc if out_width is None else out_width
    assert out_width >= hc

    # Destination-row tiling: single tile at small N; split when >1 TensorCore
    # is available (v7x) so the "parallel" grid axis feeds both cores.
    if tile_dst is None:
        if N > 256:
            tile_dst = 256
            # TODO(synk): for very large N on v7x (64 MiB VMEM) add an inner
            # source-dimension chunk loop with flash-style online softmax
            # instead of materializing [T, N] logits.
        else:
            tile_dst = N
            if _num_tensorcores() > 1 and N >= 32 and N % 16 == 0:
                tile_dst = N // 2
    assert N % tile_dst == 0
    assert tile_dst == N or tile_dst % 8 == 0
    n_tiles = N // tile_dst

    # Fold the attention vectors into the projection weight (rides the MXU):
    #   WaSrc[f, h] = sum_c W[f, h*C + c] * att_src[h, c]   (same for dst)
    Wf = W.astype(jnp.float32)
    W3 = Wf.reshape(f_in, heads, out_ch)
    wa_src = jnp.einsum("fhc,hc->fh", W3, att_src.astype(jnp.float32))     # [F, H]
    wa_dst = jnp.einsum("fhc,hc->fh", W3, att_dst.astype(jnp.float32))     # [F, H]
    hp = max(8, ((heads + 7) // 8) * 8)
    asrcT = jnp.zeros((hp, f_in), jnp.float32).at[:heads].set(wa_src.T)    # [Hp, F]

    Wpad = jnp.pad(Wf, ((0, 0), (0, out_width - hc)))                      # [F, Wo]
    bias_pad = jnp.pad(bias.reshape(1, hc).astype(jnp.float32),
                       ((0, 0), (0, out_width - hc)))                      # [1, Wo]

    # bf16 operands for the MXU fast path; accumulation stays f32 in-kernel.
    x_bf = x.astype(jnp.bfloat16)
    w_bf = Wpad.astype(jnp.bfloat16)
    asrcT_bf = asrcT.astype(jnp.bfloat16)
    wadst_bf = wa_dst.astype(jnp.bfloat16)

    # TODO(synk): for bandwidth-limited chips (v5e) at large N, bit-pack the
    # adjacency to 1 bit/entry and unpack in-kernel with a broadcast AND.

    kernel = functools.partial(
        _fused_gat_layer_kernel, heads=heads, out_ch=out_ch,
        out_width=out_width, tile_dst=tile_dst,
        apply_log_softmax=apply_log_softmax, approx_recip=approx_recip)

    return pl.pallas_call(
        kernel,
        grid=(n_tiles,),
        in_specs=[
            pl.BlockSpec((N, f_in), lambda i: (0, 0)),           # x (all nodes)
            pl.BlockSpec((f_in, out_width), lambda i: (0, 0)),   # W (lane-padded)
            pl.BlockSpec((hp, f_in), lambda i: (0, 0)),          # folded att_src^T
            pl.BlockSpec((f_in, heads), lambda i: (0, 0)),       # folded att_dst
            pl.BlockSpec((1, out_width), lambda i: (0, 0)),      # bias
            pl.BlockSpec((tile_dst, N), lambda i: (i, 0)),       # adj (int8)
        ],
        out_specs=pl.BlockSpec((tile_dst, out_width), lambda i: (i, 0)),
        out_shape=jax.ShapeDtypeStruct((N, out_width), out_dtype),
        compiler_params=pltpu.CompilerParams(
            dimension_semantics=("parallel",),
            vmem_limit_bytes=_vmem_limit_bytes(N, f_in, tile_dst, out_width,
                                               heads)),
    )(x_bf, w_bf, asrcT_bf, wadst_bf, bias_pad, adj)


def gat_forward(x, adj, params, *, hidden=8, heads=8, num_classes=4):
    hc1 = hidden * heads
    l1_width = ((hc1 + 127) // 128) * 128     # lane-dense layer-1 activation

    # Layer 1: GATConv(F_in, hidden, heads) — projection + attention + bias.
    h1 = gat_conv_fused(x, adj, params["W1"], params["as1"], params["ad1"],
                        params["b1"], heads=heads, out_ch=hidden,
                        out_width=l1_width, out_dtype=jnp.bfloat16)

    # TODO(synk): reference code calls F.elu(x) but discards the result — kept
    # as a faithful no-op (likely a bug in the original PyTorch module).

    # Layer 2: GATConv(hidden*heads, num_classes, heads=1) + fused log_softmax.
    # W2 rows are zero-padded so the zero-padded lanes of h1 are inert.
    W2p = jnp.pad(params["W2"], ((0, l1_width - hc1), (0, 0)))
    return gat_conv_fused(h1, adj, W2p, params["as2"], params["ad2"],
                          params["b2"], heads=1, out_ch=num_classes,
                          apply_log_softmax=True, out_dtype=jnp.float32)


# ----------------------------- Pure-JAX reference -----------------------------

def _gat_conv_ref(x, adj, W, att_src, att_dst, bias, *, heads, out_ch):
    n = x.shape[0]
    h = (x @ W).reshape(n, heads, out_ch)
    s_src = jnp.einsum("nhc,hc->nh", h, att_src)
    s_dst = jnp.einsum("nhc,hc->nh", h, att_dst)
    e = s_dst[:, None, :] + s_src[None, :, :]              # [dst, src, head]
    e = jnp.where(e > 0, e, 0.2 * e)
    e = jnp.where((adj != 0)[:, :, None], e, -jnp.inf)
    alpha = jax.nn.softmax(e, axis=1)
    out = jnp.einsum("ijh,jhc->ihc", alpha, h).reshape(n, heads * out_ch)
    return out + bias


def gat_forward_ref(x, adj, params, *, hidden, heads, num_classes):
    h1 = _gat_conv_ref(x, adj, params["W1"], params["as1"], params["ad1"],
                       params["b1"], heads=heads, out_ch=hidden)
    h2 = _gat_conv_ref(h1, adj, params["W2"], params["as2"], params["ad2"],
                       params["b2"], heads=1, out_ch=num_classes)
    return jax.nn.log_softmax(h2, axis=1)


# ----------------------------- Parameter / data setup -----------------------------

def make_params(key, f_in, hidden, heads, num_classes):
    ks = jax.random.split(key, 8)
    scale = 0.1
    return {
        # layer 1: GATConv(f_in, hidden, heads=heads)
        "W1": scale * jax.random.normal(ks[0], (f_in, heads * hidden), jnp.float32),
        "as1": scale * jax.random.normal(ks[1], (heads, hidden), jnp.float32),
        "ad1": scale * jax.random.normal(ks[2], (heads, hidden), jnp.float32),
        "b1": scale * jax.random.normal(ks[3], (heads * hidden,), jnp.float32),
        # layer 2: GATConv(hidden*heads, num_classes, heads=1)
        "W2": scale * jax.random.normal(ks[4], (heads * hidden, num_classes), jnp.float32),
        "as2": scale * jax.random.normal(ks[5], (1, num_classes), jnp.float32),
        "ad2": scale * jax.random.normal(ks[6], (1, num_classes), jnp.float32),
        "b2": scale * jax.random.normal(ks[7], (num_classes,), jnp.float32),
    }


def make_graph(key, n_nodes, f_in, n_edges):
    kx, ke = jax.random.split(key)
    x = jax.random.normal(kx, (n_nodes, f_in), jnp.float32)
    src = jax.random.randint(ke, (n_edges,), 0, n_nodes)
    dst = jax.random.randint(jax.random.fold_in(ke, 1), (n_edges,), 0, n_nodes)
    # int8 dense adjacency mask: adj[i, j] = 1 iff edge j -> i (plus self loops).
    adj = jnp.zeros((n_nodes, n_nodes), jnp.int8)
    adj = adj.at[dst, src].set(1)
    adj = adj.at[jnp.arange(n_nodes), jnp.arange(n_nodes)].set(1)
    return x, adj


if __name__ == "__main__":
    N, F_IN, HIDDEN, HEADS, NUM_CLASSES, N_EDGES = 64, 16, 8, 8, 4, 256

    key = jax.random.PRNGKey(0)
    kp, kg = jax.random.split(key)
    params = make_params(kp, F_IN, HIDDEN, HEADS, NUM_CLASSES)
    x, adj = make_graph(kg, N, F_IN, N_EDGES)

    fwd = jax.jit(functools.partial(gat_forward, hidden=HIDDEN, heads=HEADS,
                                    num_classes=NUM_CLASSES))
    out = fwd(x, adj, params)
    jax.block_until_ready(out)

    assert out.shape == (N, NUM_CLASSES)
    assert bool(jnp.all(jnp.isfinite(out)))

    # Loose sanity check vs. a pure-JAX dense-GAT reference (kernel uses the
    # bf16 MXU path + approx reciprocal, so tolerance is generous).
    ref = gat_forward_ref(x, adj, params, hidden=HIDDEN, heads=HEADS,
                          num_classes=NUM_CLASSES)
    assert float(jnp.max(jnp.abs(out - ref))) < 0.1

    print("KERNEL_OK")
</pallas_src>

<mosaic_0001>
module attributes {stable_mosaic.version = 11 : i64} {
  func.func @_fused_gat_layer_kernel(%arg0: i32, %arg1: memref<64x16xbf16, #tpu.memory_space<vmem>>, %arg2: memref<16x128xbf16, #tpu.memory_space<vmem>>, %arg3: memref<8x16xbf16, #tpu.memory_space<vmem>>, %arg4: memref<16x8xbf16, #tpu.memory_space<vmem>>, %arg5: memref<1x128xf32, #tpu.memory_space<vmem>>, %arg6: memref<64x64xi8, #tpu.memory_space<vmem>>, %arg7: memref<64x128xbf16, #tpu.memory_space<vmem>>) attributes {dimension_semantics = [#tpu.dimension_semantics<parallel>], iteration_bounds = array<i64: 1>, scalar_prefetch = 0 : i64, scratch_operands = 0 : i64, tpu.core_type = #tpu.core_type<tc>, window_params = [{pipeline_mode = #tpu.pipeline_mode<synchronous>, transform_indices = @transform_0, window_bounds = array<i64: 64, 16>}, {pipeline_mode = #tpu.pipeline_mode<synchronous>, transform_indices = @transform_1, window_bounds = array<i64: 16, 128>}, {pipeline_mode = #tpu.pipeline_mode<synchronous>, transform_indices = @transform_2, window_bounds = array<i64: 8, 16>}, {pipeline_mode = #tpu.pipeline_mode<synchronous>, transform_indices = @transform_3, window_bounds = array<i64: 16, 8>}, {pipeline_mode = #tpu.pipeline_mode<synchronous>, transform_indices = @transform_4, window_bounds = array<i64: 1, 128>}, {transform_indices = @transform_5, window_bounds = array<i64: 64, 64>}, {transform_indices = @transform_6, window_bounds = array<i64: 64, 128>}]} {
    %c0 = arith.constant 0 : index
    %c0_0 = arith.constant 0 : index
    %0 = vector.load %arg1[%c0, %c0_0] : memref<64x16xbf16, #tpu.memory_space<vmem>>, vector<64x16xbf16>
    %c0_1 = arith.constant 0 : index
    %c0_2 = arith.constant 0 : index
    %1 = vector.load %arg2[%c0_1, %c0_2] : memref<16x128xbf16, #tpu.memory_space<vmem>>, vector<16x128xbf16>
    %cst = arith.constant dense<0.000000e+00> : vector<64x128xf32>
    %2 = tpu.matmul %0, %1, %cst {dimension_numbers = #tpu.dot_dimension_numbers<[1], [0], [0], [1], [0, 0, 1, 1], [], []>} : vector<64x16xbf16>, vector<16x128xbf16>, vector<64x128xf32> -> vector<64x128xf32>
    %3 = arith.truncf %2 : vector<64x128xf32> to vector<64x128xbf16>
    %c0_3 = arith.constant 0 : index
    %c0_4 = arith.constant 0 : index
    %4 = vector.load %arg3[%c0_3, %c0_4] : memref<8x16xbf16, #tpu.memory_space<vmem>>, vector<8x16xbf16>
    %cst_5 = arith.constant dense<0.000000e+00> : vector<8x64xf32>
    %5 = tpu.matmul %4, %0, %cst_5 {dimension_numbers = #tpu.dot_dimension_numbers<[1], [1], [0], [0], [0, 0, 1, 0], [], []>} : vector<8x16xbf16>, vector<64x16xbf16>, vector<8x64xf32> -> vector<8x64xf32>
    %c64_i32 = arith.constant 64 : i32
    %6 = arith.muli %arg0, %c64_i32 : i32
    %7 = tpu.assume_multiple %6, 64 : i32
    %8 = arith.index_cast %7 : i32 to index
    %c0_6 = arith.constant 0 : index
    %9 = vector.load %arg1[%8, %c0_6] : memref<64x16xbf16, #tpu.memory_space<vmem>>, vector<64x16xbf16>
    %c0_7 = arith.constant 0 : index
    %c0_8 = arith.constant 0 : index
    %10 = vector.load %arg4[%c0_7, %c0_8] : memref<16x8xbf16, #tpu.memory_space<vmem>>, vector<16x8xbf16>
    %cst_9 = arith.constant dense<0.000000e+00> : vector<64x8xf32>
    %11 = tpu.matmul %9, %10, %cst_9 {dimension_numbers = #tpu.dot_dimension_numbers<[1], [0], [0], [1], [0, 0, 1, 1], [], []>} : vector<64x16xbf16>, vector<16x8xbf16>, vector<64x8xf32> -> vector<64x8xf32>
    %c0_10 = arith.constant 0 : index
    %c0_11 = arith.constant 0 : index
    %12 = vector.load %arg6[%c0_10, %c0_11] : memref<64x64xi8, #tpu.memory_space<vmem>>, vector<64x64xi8>
    %c0_i8 = arith.constant 0 : i8
    %13 = vector.broadcast %c0_i8 : i8 to vector<64x64xi8>
    %14 = arith.cmpi ne, %12, %13 : vector<64x64xi8>
    %15 = tpu.iota {dimensions = array<i32: 1>} : vector<1x128xi32>
    %cst_12 = arith.constant 0.000000e+00 : f32
    %16 = vector.broadcast %cst_12 : f32 to vector<64x128xf32>
    %17 = vector.extract_strided_slice %11 {offsets = [0, 0], sizes = [64, 1], strides = [1, 1]} : vector<64x8xf32> to vector<64x1xf32>
    %18 = vector.extract_strided_slice %5 {offsets = [0, 0], sizes = [1, 64], strides = [1, 1]} : vector<8x64xf32> to vector<1x64xf32>
    %19 = vector.broadcast %17 : vector<64x1xf32> to vector<64x64xf32>
    %20 = vector.broadcast %18 : vector<1x64xf32> to vector<64x64xf32>
    %21 = arith.addf %19, %20 : vector<64x64xf32>
    %cst_13 = arith.constant 2.000000e-01 : f32
    %22 = vector.broadcast %cst_13 : f32 to vector<64x64xf32>
    %23 = arith.mulf %22, %21 : vector<64x64xf32>
    %24 = arith.maximumf %21, %23 : vector<64x64xf32>
    %cst_14 = arith.constant -1.000000e+30 : f32
    %25 = vector.broadcast %cst_14 : f32 to vector<64x64xf32>
    %26 = arith.select %14, %24, %25 : vector<64x64xi1>, vector<64x64xf32>
    %cst_15 = arith.constant dense<0xFF800000> : vector<64xf32>
    %27 = vector.multi_reduction <maximumf>, %26, %cst_15 [1] : vector<64x64xf32> to vector<64xf32>
    %28 = vector.shape_cast %27 : vector<64xf32> to vector<64x1xf32>
    %29 = vector.broadcast %28 : vector<64x1xf32> to vector<64x64xf32>
    %30 = arith.subf %26, %29 : vector<64x64xf32>
    %31 = math.exp %30 : vector<64x64xf32>
    %cst_16 = arith.constant dense<0.000000e+00> : vector<64xf32>
    %32 = vector.multi_reduction <add>, %31, %cst_16 [1] : vector<64x64xf32> to vector<64xf32>
    %33 = vector.shape_cast %32 : vector<64xf32> to vector<64x1xf32>
    %34 = tpu.reciprocal %33 {approx = true} : vector<64x1xf32> -> vector<64x1xf32>
    %35 = arith.truncf %31 : vector<64x64xf32> to vector<64x64xbf16>
    %cst_17 = arith.constant dense<0.000000e+00> : vector<64x128xf32>
    %36 = tpu.matmul %35, %3, %cst_17 {dimension_numbers = #tpu.dot_dimension_numbers<[1], [0], [0], [1], [0, 0, 1, 1], [], []>} : vector<64x64xbf16>, vector<64x128xbf16>, vector<64x128xf32> -> vector<64x128xf32>
    %c0_i32 = arith.constant 0 : i32
    %37 = vector.broadcast %c0_i32 : i32 to vector<1x128xi32>
    %38 = arith.cmpi sge, %15, %37 : vector<1x128xi32>
    %c8_i32 = arith.constant 8 : i32
    %39 = vector.broadcast %c8_i32 : i32 to vector<1x128xi32>
    %40 = arith.cmpi slt, %15, %39 : vector<1x128xi32>
    %41 = arith.andi %38, %40 : vector<1x128xi1>
    %42 = vector.broadcast %34 : vector<64x1xf32> to vector<64x128xf32>
    %43 = arith.mulf %36, %42 : vector<64x128xf32>
    %cst_18 = arith.constant 0.000000e+00 : f32
    %44 = vector.shape_cast %41 : vector<1x128xi1> to vector<1x128xi1>
    %45 = vector.broadcast %44 : vector<1x128xi1> to vector<64x128xi1>
    %46 = vector.broadcast %cst_18 : f32 to vector<64x128xf32>
    %47 = arith.select %45, %43, %46 : vector<64x128xi1>, vector<64x128xf32>
    %48 = arith.addf %16, %47 : vector<64x128xf32>
    %49 = vector.extract_strided_slice %11 {offsets = [0, 1], sizes = [64, 1], strides = [1, 1]} : vector<64x8xf32> to vector<64x1xf32>
    %50 = vector.extract_strided_slice %5 {offsets = [1, 0], sizes = [1, 64], strides = [1, 1]} : vector<8x64xf32> to vector<1x64xf32>
    %51 = vector.broadcast %49 : vector<64x1xf32> to vector<64x64xf32>
    %52 = vector.broadcast %50 : vector<1x64xf32> to vector<64x64xf32>
    %53 = arith.addf %51, %52 : vector<64x64xf32>
    %cst_19 = arith.constant 2.000000e-01 : f32
    %54 = vector.broadcast %cst_19 : f32 to vector<64x64xf32>
    %55 = arith.mulf %54, %53 : vector<64x64xf32>
    %56 = arith.maximumf %53, %55 : vector<64x64xf32>
    %cst_20 = arith.constant -1.000000e+30 : f32
    %57 = vector.broadcast %cst_20 : f32 to vector<64x64xf32>
    %58 = arith.select %14, %56, %57 : vector<64x64xi1>, vector<64x64xf32>
    %cst_21 = arith.constant dense<0xFF800000> : vector<64xf32>
    %59 = vector.multi_reduction <maximumf>, %58, %cst_21 [1] : vector<64x64xf32> to vector<64xf32>
    %60 = vector.shape_cast %59 : vector<64xf32> to vector<64x1xf32>
    %61 = vector.broadcast %60 : vector<64x1xf32> to vector<64x64xf32>
    %62 = arith.subf %58, %61 : vector<64x64xf32>
    %63 = math.exp %62 : vector<64x64xf32>
    %cst_22 = arith.constant dense<0.000000e+00> : vector<64xf32>
    %64 = vector.multi_reduction <add>, %63, %cst_22 [1] : vector<64x64xf32> to vector<64xf32>
    %65 = vector.shape_cast %64 : vector<64xf32> to vector<64x1xf32>
    %66 = tpu.reciprocal %65 {approx = true} : vector<64x1xf32> -> vector<64x1xf32>
    %67 = arith.truncf %63 : vector<64x64xf32> to vector<64x64xbf16>
    %cst_23 = arith.constant dense<0.000000e+00> : vector<64x128xf32>
    %68 = tpu.matmul %67, %3, %cst_23 {dimension_numbers = #tpu.dot_dimension_numbers<[1], [0], [0], [1], [0, 0, 1, 1], [], []>} : vector<64x64xbf16>, vector<64x128xbf16>, vector<64x128xf32> -> vector<64x128xf32>
    %c8_i32_24 = arith.constant 8 : i32
    %69 = vector.broadcast %c8_i32_24 : i32 to vector<1x128xi32>
    %70 = arith.cmpi sge, %15, %69 : vector<1x128xi32>
    %c16_i32 = arith.constant 16 : i32
    %71 = vector.broadcast %c16_i32 : i32 to vector<1x128xi32>
    %72 = arith.cmpi slt, %15, %71 : vector<1x128xi32>
    %73 = arith.andi %70, %72 : vector<1x128xi1>
    %74 = vector.broadcast %66 : vector<64x1xf32> to vector<64x128xf32>
    %75 = arith.mulf %68, %74 : vector<64x128xf32>
    %cst_25 = arith.constant 0.000000e+00 : f32
    %76 = vector.shape_cast %73 : vector<1x128xi1> to vector<1x128xi1>
    %77 = vector.broadcast %76 : vector<1x128xi1> to vector<64x128xi1>
    %78 = vector.broadcast %cst_25 : f32 to vector<64x128xf32>
    %79 = arith.select %77, %75, %78 : vector<64x128xi1>, vector<64x128xf32>
    %80 = arith.addf %48, %79 : vector<64x128xf32>
    %81 = vector.extract_strided_slice %11 {offsets = [0, 2], sizes = [64, 1], strides = [1, 1]} : vector<64x8xf32> to vector<64x1xf32>
    %82 = vector.extract_strided_slice %5 {offsets = [2, 0], sizes = [1, 64], strides = [1, 1]} : vector<8x64xf32> to vector<1x64xf32>
    %83 = vector.broadcast %81 : vector<64x1xf32> to vector<64x64xf32>
    %84 = vector.broadcast %82 : vector<1x64xf32> to vector<64x64xf32>
    %85 = arith.addf %83, %84 : vector<64x64xf32>
    %cst_26 = arith.constant 2.000000e-01 : f32
    %86 = vector.broadcast %cst_26 : f32 to vector<64x64xf32>
    %87 = arith.mulf %86, %85 : vector<64x64xf32>
    %88 = arith.maximumf %85, %87 : vector<64x64xf32>
    %cst_27 = arith.constant -1.000000e+30 : f32
    %89 = vector.broadcast %cst_27 : f32 to vector<64x64xf32>
    %90 = arith.select %14, %88, %89 : vector<64x64xi1>, vector<64x64xf32>
    %cst_28 = arith.constant dense<0xFF800000> : vector<64xf32>
    %91 = vector.multi_reduction <maximumf>, %90, %cst_28 [1] : vector<64x64xf32> to vector<64xf32>
    %92 = vector.shape_cast %91 : vector<64xf32> to vector<64x1xf32>
    %93 = vector.broadcast %92 : vector<64x1xf32> to vector<64x64xf32>
    %94 = arith.subf %90, %93 : vector<64x64xf32>
    %95 = math.exp %94 : vector<64x64xf32>
    %cst_29 = arith.constant dense<0.000000e+00> : vector<64xf32>
    %96 = vector.multi_reduction <add>, %95, %cst_29 [1] : vector<64x64xf32> to vector<64xf32>
    %97 = vector.shape_cast %96 : vector<64xf32> to vector<64x1xf32>
    %98 = tpu.reciprocal %97 {approx = true} : vector<64x1xf32> -> vector<64x1xf32>
    %99 = arith.truncf %95 : vector<64x64xf32> to vector<64x64xbf16>
    %cst_30 = arith.constant dense<0.000000e+00> : vector<64x128xf32>
    %100 = tpu.matmul %99, %3, %cst_30 {dimension_numbers = #tpu.dot_dimension_numbers<[1], [0], [0], [1], [0, 0, 1, 1], [], []>} : vector<64x64xbf16>, vector<64x128xbf16>, vector<64x128xf32> -> vector<64x128xf32>
    %c16_i32_31 = arith.constant 16 : i32
    %101 = vector.broadcast %c16_i32_31 : i32 to vector<1x128xi32>
    %102 = arith.cmpi sge, %15, %101 : vector<1x128xi32>
    %c24_i32 = arith.constant 24 : i32
    %103 = vector.broadcast %c24_i32 : i32 to vector<1x128xi32>
    %104 = arith.cmpi slt, %15, %103 : vector<1x128xi32>
    %105 = arith.andi %102, %104 : vector<1x128xi1>
    %106 = vector.broadcast %98 : vector<64x1xf32> to vector<64x128xf32>
    %107 = arith.mulf %100, %106 : vector<64x128xf32>
    %cst_32 = arith.constant 0.000000e+00 : f32
    %108 = vector.shape_cast %105 : vector<1x128xi1> to vector<1x128xi1>
    %109 = vector.broadcast %108 : vector<1x128xi1> to vector<64x128xi1>
    %110 = vector.broadcast %cst_32 : f32 to vector<64x128xf32>
    %111 = arith.select %109, %107, %110 : vector<64x128xi1>, vector<64x128xf32>
    %112 = arith.addf %80, %111 : vector<64x128xf32>
    %113 = vector.extract_strided_slice %11 {offsets = [0, 3], sizes = [64, 1], strides = [1, 1]} : vector<64x8xf32> to vector<64x1xf32>
    %114 = vector.extract_strided_slice %5 {offsets = [3, 0], sizes = [1, 64], strides = [1, 1]} : vector<8x64xf32> to vector<1x64xf32>
    %115 = vector.broadcast %113 : vector<64x1xf32> to vector<64x64xf32>
    %116 = vector.broadcast %114 : vector<1x64xf32> to vector<64x64xf32>
    %117 = arith.addf %115, %116 : vector<64x64xf32>
    %cst_33 = arith.constant 2.000000e-01 : f32
    %118 = vector.broadcast %cst_33 : f32 to vector<64x64xf32>
    %119 = arith.mulf %118, %117 : vector<64x64xf32>
    %120 = arith.maximumf %117, %119 : vector<64x64xf32>
    %cst_34 = arith.constant -1.000000e+30 : f32
    %121 = vector.broadcast %cst_34 : f32 to vector<64x64xf32>
    %122 = arith.select %14, %120, %121 : vector<64x64xi1>, vector<64x64xf32>
    %cst_35 = arith.constant dense<0xFF800000> : vector<64xf32>
    %123 = vector.multi_reduction <maximumf>, %122, %cst_35 [1] : vector<64x64xf32> to vector<64xf32>
    %124 = vector.shape_cast %123 : vector<64xf32> to vector<64x1xf32>
    %125 = vector.broadcast %124 : vector<64x1xf32> to vector<64x64xf32>
    %126 = arith.subf %122, %125 : vector<64x64xf32>
    %127 = math.exp %126 : vector<64x64xf32>
    %cst_36 = arith.constant dense<0.000000e+00> : vector<64xf32>
    %128 = vector.multi_reduction <add>, %127, %cst_36 [1] : vector<64x64xf32> to vector<64xf32>
    %129 = vector.shape_cast %128 : vector<64xf32> to vector<64x1xf32>
    %130 = tpu.reciprocal %129 {approx = true} : vector<64x1xf32> -> vector<64x1xf32>
    %131 = arith.truncf %127 : vector<64x64xf32> to vector<64x64xbf16>
    %cst_37 = arith.constant dense<0.000000e+00> : vector<64x128xf32>
    %132 = tpu.matmul %131, %3, %cst_37 {dimension_numbers = #tpu.dot_dimension_numbers<[1], [0], [0], [1], [0, 0, 1, 1], [], []>} : vector<64x64xbf16>, vector<64x128xbf16>, vector<64x128xf32> -> vector<64x128xf32>
    %c24_i32_38 = arith.constant 24 : i32
    %133 = vector.broadcast %c24_i32_38 : i32 to vector<1x128xi32>
    %134 = arith.cmpi sge, %15, %133 : vector<1x128xi32>
    %c32_i32 = arith.constant 32 : i32
    %135 = vector.broadcast %c32_i32 : i32 to vector<1x128xi32>
    %136 = arith.cmpi slt, %15, %135 : vector<1x128xi32>
    %137 = arith.andi %134, %136 : vector<1x128xi1>
    %138 = vector.broadcast %130 : vector<64x1xf32> to vector<64x128xf32>
    %139 = arith.mulf %132, %138 : vector<64x128xf32>
    %cst_39 = arith.constant 0.000000e+00 : f32
    %140 = vector.shape_cast %137 : vector<1x128xi1> to vector<1x128xi1>
    %141 = vector.broadcast %140 : vector<1x128xi1> to vector<64x128xi1>
    %142 = vector.broadcast %cst_39 : f32 to vector<64x128xf32>
    %143 = arith.select %141, %139, %142 : vector<64x128xi1>, vector<64x128xf32>
    %144 = arith.addf %112, %143 : vector<64x128xf32>
    %145 = vector.extract_strided_slice %11 {offsets = [0, 4], sizes = [64, 1], strides = [1, 1]} : vector<64x8xf32> to vector<64x1xf32>
    %146 = vector.extract_strided_slice %5 {offsets = [4, 0], sizes = [1, 64], strides = [1, 1]} : vector<8x64xf32> to vector<1x64xf32>
    %147 = vector.broadcast %145 : vector<64x1xf32> to vector<64x64xf32>
    %148 = vector.broadcast %146 : vector<1x64xf32> to vector<64x64xf32>
    %149 = arith.addf %147, %148 : vector<64x64xf32>
    %cst_40 = arith.constant 2.000000e-01 : f32
    %150 = vector.broadcast %cst_40 : f32 to vector<64x64xf32>
    %151 = arith.mulf %150, %149 : vector<64x64xf32>
    %152 = arith.maximumf %149, %151 : vector<64x64xf32>
    %cst_41 = arith.constant -1.000000e+30 : f32
    %153 = vector.broadcast %cst_41 : f32 to vector<64x64xf32>
    %154 = arith.select %14, %152, %153 : vector<64x64xi1>, vector<64x64xf32>
    %cst_42 = arith.constant dense<0xFF800000> : vector<64xf32>
    %155 = vector.multi_reduction <maximumf>, %154, %cst_42 [1] : vector<64x64xf32> to vector<64xf32>
    %156 = vector.shape_cast %155 : vector<64xf32> to vector<64x1xf32>
    %157 = vector.broadcast %156 : vector<64x1xf32> to vector<64x64xf32>
    %158 = arith.subf %154, %157 : vector<64x64xf32>
    %159 = math.exp %158 : vector<64x64xf32>
    %cst_43 = arith.constant dense<0.000000e+00> : vector<64xf32>
    %160 = vector.multi_reduction <add>, %159, %cst_43 [1] : vector<64x64xf32> to vector<64xf32>
    %161 = vector.shape_cast %160 : vector<64xf32> to vector<64x1xf32>
    %162 = tpu.reciprocal %161 {approx = true} : vector<64x1xf32> -> vector<64x1xf32>
    %163 = arith.truncf %159 : vector<64x64xf32> to vector<64x64xbf16>
    %cst_44 = arith.constant dense<0.000000e+00> : vector<64x128xf32>
    %164 = tpu.matmul %163, %3, %cst_44 {dimension_numbers = #tpu.dot_dimension_numbers<[1], [0], [0], [1], [0, 0, 1, 1], [], []>} : vector<64x64xbf16>, vector<64x128xbf16>, vector<64x128xf32> -> vector<64x128xf32>
    %c32_i32_45 = arith.constant 32 : i32
    %165 = vector.broadcast %c32_i32_45 : i32 to vector<1x128xi32>
    %166 = arith.cmpi sge, %15, %165 : vector<1x128xi32>
    %c40_i32 = arith.constant 40 : i32
    %167 = vector.broadcast %c40_i32 : i32 to vector<1x128xi32>
    %168 = arith.cmpi slt, %15, %167 : vector<1x128xi32>
    %169 = arith.andi %166, %168 : vector<1x128xi1>
    %170 = vector.broadcast %162 : vector<64x1xf32> to vector<64x128xf32>
    %171 = arith.mulf %164, %170 : vector<64x128xf32>
    %cst_46 = arith.constant 0.000000e+00 : f32
    %172 = vector.shape_cast %169 : vector<1x128xi1> to vector<1x128xi1>
    %173 = vector.broadcast %172 : vector<1x128xi1> to vector<64x128xi1>
    %174 = vector.broadcast %cst_46 : f32 to vector<64x128xf32>
    %175 = arith.select %173, %171, %174 : vector<64x128xi1>, vector<64x128xf32>
    %176 = arith.addf %144, %175 : vector<64x128xf32>
    %177 = vector.extract_strided_slice %11 {offsets = [0, 5], sizes = [64, 1], strides = [1, 1]} : vector<64x8xf32> to vector<64x1xf32>
    %178 = vector.extract_strided_slice %5 {offsets = [5, 0], sizes = [1, 64], strides = [1, 1]} : vector<8x64xf32> to vector<1x64xf32>
    %179 = vector.broadcast %177 : vector<64x1xf32> to vector<64x64xf32>
    %180 = vector.broadcast %178 : vector<1x64xf32> to vector<64x64xf32>
    %181 = arith.addf %179, %180 : vector<64x64xf32>
    %cst_47 = arith.constant 2.000000e-01 : f32
    %182 = vector.broadcast %cst_47 : f32 to vector<64x64xf32>
    %183 = arith.mulf %182, %181 : vector<64x64xf32>
    %184 = arith.maximumf %181, %183 : vector<64x64xf32>
    %cst_48 = arith.constant -1.000000e+30 : f32
    %185 = vector.broadcast %cst_48 : f32 to vector<64x64xf32>
    %186 = arith.select %14, %184, %185 : vector<64x64xi1>, vector<64x64xf32>
    %cst_49 = arith.constant dense<0xFF800000> : vector<64xf32>
    %187 = vector.multi_reduction <maximumf>, %186, %cst_49 [1] : vector<64x64xf32> to vector<64xf32>
    %188 = vector.shape_cast %187 : vector<64xf32> to vector<64x1xf32>
    %189 = vector.broadcast %188 : vector<64x1xf32> to vector<64x64xf32>
    %190 = arith.subf %186, %189 : vector<64x64xf32>
    %191 = math.exp %190 : vector<64x64xf32>
    %cst_50 = arith.constant dense<0.000000e+00> : vector<64xf32>
    %192 = vector.multi_reduction <add>, %191, %cst_50 [1] : vector<64x64xf32> to vector<64xf32>
    %193 = vector.shape_cast %192 : vector<64xf32> to vector<64x1xf32>
    %194 = tpu.reciprocal %193 {approx = true} : vector<64x1xf32> -> vector<64x1xf32>
    %195 = arith.truncf %191 : vector<64x64xf32> to vector<64x64xbf16>
    %cst_51 = arith.constant dense<0.000000e+00> : vector<64x128xf32>
    %196 = tpu.matmul %195, %3, %cst_51 {dimension_numbers = #tpu.dot_dimension_numbers<[1], [0], [0], [1], [0, 0, 1, 1], [], []>} : vector<64x64xbf16>, vector<64x128xbf16>, vector<64x128xf32> -> vector<64x128xf32>
    %c40_i32_52 = arith.constant 40 : i32
    %197 = vector.broadcast %c40_i32_52 : i32 to vector<1x128xi32>
    %198 = arith.cmpi sge, %15, %197 : vector<1x128xi32>
    %c48_i32 = arith.constant 48 : i32
    %199 = vector.broadcast %c48_i32 : i32 to vector<1x128xi32>
    %200 = arith.cmpi slt, %15, %199 : vector<1x128xi32>
    %201 = arith.andi %198, %200 : vector<1x128xi1>
    %202 = vector.broadcast %194 : vector<64x1xf32> to vector<64x128xf32>
    %203 = arith.mulf %196, %202 : vector<64x128xf32>
    %cst_53 = arith.constant 0.000000e+00 : f32
    %204 = vector.shape_cast %201 : vector<1x128xi1> to vector<1x128xi1>
    %205 = vector.broadcast %204 : vector<1x128xi1> to vector<64x128xi1>
    %206 = vector.broadcast %cst_53 : f32 to vector<64x128xf32>
    %207 = arith.select %205, %203, %206 : vector<64x128xi1>, vector<64x128xf32>
    %208 = arith.addf %176, %207 : vector<64x128xf32>
    %209 = vector.extract_strided_slice %11 {offsets = [0, 6], sizes = [64, 1], strides = [1, 1]} : vector<64x8xf32> to vector<64x1xf32>
    %210 = vector.extract_strided_slice %5 {offsets = [6, 0], sizes = [1, 64], strides = [1, 1]} : vector<8x64xf32> to vector<1x64xf32>
    %211 = vector.broadcast %209 : vector<64x1xf32> to vector<64x64xf32>
    %212 = vector.broadcast %210 : vector<1x64xf32> to vector<64x64xf32>
    %213 = arith.addf %211, %212 : vector<64x64xf32>
    %cst_54 = arith.constant 2.000000e-01 : f32
    %214 = vector.broadcast %cst_54 : f32 to vector<64x64xf32>
    %215 = arith.mulf %214, %213 : vector<64x64xf32>
    %216 = arith.maximumf %213, %215 : vector<64x64xf32>
    %cst_55 = arith.constant -1.000000e+30 : f32
    %217 = vector.broadcast %cst_55 : f32 to vector<64x64xf32>
    %218 = arith.select %14, %216, %217 : vector<64x64xi1>, vector<64x64xf32>
    %cst_56 = arith.constant dense<0xFF800000> : vector<64xf32>
    %219 = vector.multi_reduction <maximumf>, %218, %cst_56 [1] : vector<64x64xf32> to vector<64xf32>
    %220 = vector.shape_cast %219 : vector<64xf32> to vector<64x1xf32>
    %221 = vector.broadcast %220 : vector<64x1xf32> to vector<64x64xf32>
    %222 = arith.subf %218, %221 : vector<64x64xf32>
    %223 = math.exp %222 : vector<64x64xf32>
    %cst_57 = arith.constant dense<0.000000e+00> : vector<64xf32>
    %224 = vector.multi_reduction <add>, %223, %cst_57 [1] : vector<64x64xf32> to vector<64xf32>
    %225 = vector.shape_cast %224 : vector<64xf32> to vector<64x1xf32>
    %226 = tpu.reciprocal %225 {approx = true} : vector<64x1xf32> -> vector<64x1xf32>
    %227 = arith.truncf %223 : vector<64x64xf32> to vector<64x64xbf16>
    %cst_58 = arith.constant dense<0.000000e+00> : vector<64x128xf32>
    %228 = tpu.matmul %227, %3, %cst_58 {dimension_numbers = #tpu.dot_dimension_numbers<[1], [0], [0], [1], [0, 0, 1, 1], [], []>} : vector<64x64xbf16>, vector<64x128xbf16>, vector<64x128xf32> -> vector<64x128xf32>
    %c48_i32_59 = arith.constant 48 : i32
    %229 = vector.broadcast %c48_i32_59 : i32 to vector<1x128xi32>
    %230 = arith.cmpi sge, %15, %229 : vector<1x128xi32>
    %c56_i32 = arith.constant 56 : i32
    %231 = vector.broadcast %c56_i32 : i32 to vector<1x128xi32>
    %232 = arith.cmpi slt, %15, %231 : vector<1x128xi32>
    %233 = arith.andi %230, %232 : vector<1x128xi1>
    %234 = vector.broadcast %226 : vector<64x1xf32> to vector<64x128xf32>
    %235 = arith.mulf %228, %234 : vector<64x128xf32>
    %cst_60 = arith.constant 0.000000e+00 : f32
    %236 = vector.shape_cast %233 : vector<1x128xi1> to vector<1x128xi1>
    %237 = vector.broadcast %236 : vector<1x128xi1> to vector<64x128xi1>
    %238 = vector.broadcast %cst_60 : f32 to vector<64x128xf32>
    %239 = arith.select %237, %235, %238 : vector<64x128xi1>, vector<64x128xf32>
    %240 = arith.addf %208, %239 : vector<64x128xf32>
    %241 = vector.extract_strided_slice %11 {offsets = [0, 7], sizes = [64, 1], strides = [1, 1]} : vector<64x8xf32> to vector<64x1xf32>
    %242 = vector.extract_strided_slice %5 {offsets = [7, 0], sizes = [1, 64], strides = [1, 1]} : vector<8x64xf32> to vector<1x64xf32>
    %243 = vector.broadcast %241 : vector<64x1xf32> to vector<64x64xf32>
    %244 = vector.broadcast %242 : vector<1x64xf32> to vector<64x64xf32>
    %245 = arith.addf %243, %244 : vector<64x64xf32>
    %cst_61 = arith.constant 2.000000e-01 : f32
    %246 = vector.broadcast %cst_61 : f32 to vector<64x64xf32>
    %247 = arith.mulf %246, %245 : vector<64x64xf32>
    %248 = arith.maximumf %245, %247 : vector<64x64xf32>
    %cst_62 = arith.constant -1.000000e+30 : f32
    %249 = vector.broadcast %cst_62 : f32 to vector<64x64xf32>
    %250 = arith.select %14, %248, %249 : vector<64x64xi1>, vector<64x64xf32>
    %cst_63 = arith.constant dense<0xFF800000> : vector<64xf32>
    %251 = vector.multi_reduction <maximumf>, %250, %cst_63 [1] : vector<64x64xf32> to vector<64xf32>
    %252 = vector.shape_cast %251 : vector<64xf32> to vector<64x1xf32>
    %253 = vector.broadcast %252 : vector<64x1xf32> to vector<64x64xf32>
    %254 = arith.subf %250, %253 : vector<64x64xf32>
    %255 = math.exp %254 : vector<64x64xf32>
    %cst_64 = arith.constant dense<0.000000e+00> : vector<64xf32>
    %256 = vector.multi_reduction <add>, %255, %cst_64 [1] : vector<64x64xf32> to vector<64xf32>
    %257 = vector.shape_cast %256 : vector<64xf32> to vector<64x1xf32>
    %258 = tpu.reciprocal %257 {approx = true} : vector<64x1xf32> -> vector<64x1xf32>
    %259 = arith.truncf %255 : vector<64x64xf32> to vector<64x64xbf16>
    %cst_65 = arith.constant dense<0.000000e+00> : vector<64x128xf32>
    %260 = tpu.matmul %259, %3, %cst_65 {dimension_numbers = #tpu.dot_dimension_numbers<[1], [0], [0], [1], [0, 0, 1, 1], [], []>} : vector<64x64xbf16>, vector<64x128xbf16>, vector<64x128xf32> -> vector<64x128xf32>
    %c56_i32_66 = arith.constant 56 : i32
    %261 = vector.broadcast %c56_i32_66 : i32 to vector<1x128xi32>
    %262 = arith.cmpi sge, %15, %261 : vector<1x128xi32>
    %c64_i32_67 = arith.constant 64 : i32
    %263 = vector.broadcast %c64_i32_67 : i32 to vector<1x128xi32>
    %264 = arith.cmpi slt, %15, %263 : vector<1x128xi32>
    %265 = arith.andi %262, %264 : vector<1x128xi1>
    %266 = vector.broadcast %258 : vector<64x1xf32> to vector<64x128xf32>
    %267 = arith.mulf %260, %266 : vector<64x128xf32>
    %cst_68 = arith.constant 0.000000e+00 : f32
    %268 = vector.shape_cast %265 : vector<1x128xi1> to vector<1x128xi1>
    %269 = vector.broadcast %268 : vector<1x128xi1> to vector<64x128xi1>
    %270 = vector.broadcast %cst_68 : f32 to vector<64x128xf32>
    %271 = arith.select %269, %267, %270 : vector<64x128xi1>, vector<64x128xf32>
    %272 = arith.addf %240, %271 : vector<64x128xf32>
    %c0_69 = arith.constant 0 : index
    %c0_70 = arith.constant 0 : index
    %273 = vector.load %arg5[%c0_69, %c0_70] : memref<1x128xf32, #tpu.memory_space<vmem>>, vector<1x128xf32>
    %274 = vector.broadcast %273 : vector<1x128xf32> to vector<64x128xf32>
    %275 = arith.addf %272, %274 : vector<64x128xf32>
    %276 = arith.truncf %275 : vector<64x128xf32> to vector<64x128xbf16>
    %c0_71 = arith.constant 0 : index
    %c0_72 = arith.constant 0 : index
    %277 = vector.load %arg7[%c0_71, %c0_72] : memref<64x128xbf16, #tpu.memory_space<vmem>>, vector<64x128xbf16>
    tpu.vector_store %arg7[%c0_71, %c0_72], %276 {strides = array<i32>} : memref<64x128xbf16, #tpu.memory_space<vmem>>, vector<64x128xbf16>,
    return
  }
  func.func @transform_0(%arg0: i32) -> (i32, i32) {
    %c0_i32 = arith.constant 0 : i32
    %c0_i32_0 = arith.constant 0 : i32
    %c0_i32_1 = arith.constant 0 : i32
    return %c0_i32, %c0_i32_0 : i32, i32
  }
  func.func @transform_1(%arg0: i32) -> (i32, i32) {
    %c0_i32 = arith.constant 0 : i32
    %c0_i32_0 = arith.constant 0 : i32
    %c0_i32_1 = arith.constant 0 : i32
    return %c0_i32, %c0_i32_0 : i32, i32
  }
  func.func @transform_2(%arg0: i32) -> (i32, i32) {
    %c0_i32 = arith.constant 0 : i32
    %c0_i32_0 = arith.constant 0 : i32
    %c0_i32_1 = arith.constant 0 : i32
    return %c0_i32, %c0_i32_0 : i32, i32
  }
  func.func @transform_3(%arg0: i32) -> (i32, i32) {
    %c0_i32 = arith.constant 0 : i32
    %c0_i32_0 = arith.constant 0 : i32
    %c0_i32_1 = arith.constant 0 : i32
    return %c0_i32, %c0_i32_0 : i32, i32
  }
  func.func @transform_4(%arg0: i32) -> (i32, i32) {
    %c0_i32 = arith.constant 0 : i32
    %c0_i32_0 = arith.constant 0 : i32
    %c0_i32_1 = arith.constant 0 : i32
    return %c0_i32, %c0_i32_0 : i32, i32
  }
  func.func @transform_5(%arg0: i32) -> (i32, i32) {
    %c0_i32 = arith.constant 0 : i32
    %c0_i32_0 = arith.constant 0 : i32
    return %arg0, %c0_i32 : i32, i32
  }
  func.func @transform_6(%arg0: i32) -> (i32, i32) {
    %c0_i32 = arith.constant 0 : i32
    %c0_i32_0 = arith.constant 0 : i32
    return %arg0, %c0_i32 : i32, i32
  }
}

module attributes {stable_mosaic.version = 11 : i64} {
  func.func @_fused_gat_layer_kernel(%arg0: i32, %arg1: memref<64x128xbf16, #tpu.memory_space<vmem>>, %arg2: memref<128x4xbf16, #tpu.memory_space<vmem>>, %arg3: memref<8x128xbf16, #tpu.memory_space<vmem>>, %arg4: memref<128x1xbf16, #tpu.memory_space<vmem>>, %arg5: memref<1x4xf32, #tpu.memory_space<vmem>>, %arg6: memref<64x64xi8, #tpu.memory_space<vmem>>, %arg7: memref<64x4xf32, #tpu.memory_space<vmem>>) attributes {dimension_semantics = [#tpu.dimension_semantics<parallel>], iteration_bounds = array<i64: 1>, scalar_prefetch = 0 : i64, scratch_operands = 0 : i64, tpu.core_type = #tpu.core_type<tc>, window_params = [{pipeline_mode = #tpu.pipeline_mode<synchronous>, transform_indices = @transform_0, window_bounds = array<i64: 64, 128>}, {pipeline_mode = #tpu.pipeline_mode<synchronous>, transform_indices = @transform_1, window_bounds = array<i64: 128, 4>}, {pipeline_mode = #tpu.pipeline_mode<synchronous>, transform_indices = @transform_2, window_bounds = array<i64: 8, 128>}, {pipeline_mode = #tpu.pipeline_mode<synchronous>, transform_indices = @transform_3, window_bounds = array<i64: 128, 1>}, {pipeline_mode = #tpu.pipeline_mode<synchronous>, transform_indices = @transform_4, window_bounds = array<i64: 1, 4>}, {transform_indices = @transform_5, window_bounds = array<i64: 64, 64>}, {transform_indices = @transform_6, window_bounds = array<i64: 64, 4>}]} {
    %c0 = arith.constant 0 : index
    %c0_0 = arith.constant 0 : index
    %0 = vector.load %arg1[%c0, %c0_0] : memref<64x128xbf16, #tpu.memory_space<vmem>>, vector<64x128xbf16>
    %c0_1 = arith.constant 0 : index
    %c0_2 = arith.constant 0 : index
    %1 = vector.load %arg2[%c0_1, %c0_2] : memref<128x4xbf16, #tpu.memory_space<vmem>>, vector<128x4xbf16>
    %cst = arith.constant dense<0.000000e+00> : vector<64x4xf32>
    %2 = tpu.matmul %0, %1, %cst {dimension_numbers = #tpu.dot_dimension_numbers<[1], [0], [0], [1], [0, 0, 1, 1], [], []>} : vector<64x128xbf16>, vector<128x4xbf16>, vector<64x4xf32> -> vector<64x4xf32>
    %3 = arith.truncf %2 : vector<64x4xf32> to vector<64x4xbf16>
    %c0_3 = arith.constant 0 : index
    %c0_4 = arith.constant 0 : index
    %4 = vector.load %arg3[%c0_3, %c0_4] : memref<8x128xbf16, #tpu.memory_space<vmem>>, vector<8x128xbf16>
    %cst_5 = arith.constant dense<0.000000e+00> : vector<8x64xf32>
    %5 = tpu.matmul %4, %0, %cst_5 {dimension_numbers = #tpu.dot_dimension_numbers<[1], [1], [0], [0], [0, 0, 1, 0], [], []>} : vector<8x128xbf16>, vector<64x128xbf16>, vector<8x64xf32> -> vector<8x64xf32>
    %c64_i32 = arith.constant 64 : i32
    %6 = arith.muli %arg0, %c64_i32 : i32
    %7 = tpu.assume_multiple %6, 64 : i32
    %8 = arith.index_cast %7 : i32 to index
    %c0_6 = arith.constant 0 : index
    %9 = vector.load %arg1[%8, %c0_6] : memref<64x128xbf16, #tpu.memory_space<vmem>>, vector<64x128xbf16>
    %c0_7 = arith.constant 0 : index
    %c0_8 = arith.constant 0 : index
    %10 = vector.load %arg4[%c0_7, %c0_8] : memref<128x1xbf16, #tpu.memory_space<vmem>>, vector<128x1xbf16>
    %cst_9 = arith.constant dense<0.000000e+00> : vector<64x1xf32>
    %11 = tpu.matmul %9, %10, %cst_9 {dimension_numbers = #tpu.dot_dimension_numbers<[1], [0], [0], [1], [0, 0, 1, 1], [], []>} : vector<64x128xbf16>, vector<128x1xbf16>, vector<64x1xf32> -> vector<64x1xf32>
    %c0_10 = arith.constant 0 : index
    %c0_11 = arith.constant 0 : index
    %12 = vector.load %arg6[%c0_10, %c0_11] : memref<64x64xi8, #tpu.memory_space<vmem>>, vector<64x64xi8>
    %c0_i8 = arith.constant 0 : i8
    %13 = vector.broadcast %c0_i8 : i8 to vector<64x64xi8>
    %14 = arith.cmpi ne, %12, %13 : vector<64x64xi8>
    %15 = vector.extract_strided_slice %5 {offsets = [0, 0], sizes = [1, 64], strides = [1, 1]} : vector<8x64xf32> to vector<1x64xf32>
    %16 = vector.broadcast %11 : vector<64x1xf32> to vector<64x64xf32>
    %17 = vector.broadcast %15 : vector<1x64xf32> to vector<64x64xf32>
    %18 = arith.addf %16, %17 : vector<64x64xf32>
    %cst_12 = arith.constant 2.000000e-01 : f32
    %19 = vector.broadcast %cst_12 : f32 to vector<64x64xf32>
    %20 = arith.mulf %19, %18 : vector<64x64xf32>
    %21 = arith.maximumf %18, %20 : vector<64x64xf32>
    %cst_13 = arith.constant -1.000000e+30 : f32
    %22 = vector.broadcast %cst_13 : f32 to vector<64x64xf32>
    %23 = arith.select %14, %21, %22 : vector<64x64xi1>, vector<64x64xf32>
    %cst_14 = arith.constant dense<0xFF800000> : vector<64xf32>
    %24 = vector.multi_reduction <maximumf>, %23, %cst_14 [1] : vector<64x64xf32> to vector<64xf32>
    %25 = vector.shape_cast %24 : vector<64xf32> to vector<64x1xf32>
    %26 = vector.broadcast %25 : vector<64x1xf32> to vector<64x64xf32>
    %27 = arith.subf %23, %26 : vector<64x64xf32>
    %28 = math.exp %27 : vector<64x64xf32>
    %cst_15 = arith.constant dense<0.000000e+00> : vector<64xf32>
    %29 = vector.multi_reduction <add>, %28, %cst_15 [1] : vector<64x64xf32> to vector<64xf32>
    %30 = vector.shape_cast %29 : vector<64xf32> to vector<64x1xf32>
    %31 = tpu.reciprocal %30 {approx = true} : vector<64x1xf32> -> vector<64x1xf32>
    %32 = arith.truncf %28 : vector<64x64xf32> to vector<64x64xbf16>
    %cst_16 = arith.constant dense<0.000000e+00> : vector<64x4xf32>
    %33 = tpu.matmul %32, %3, %cst_16 {dimension_numbers = #tpu.dot_dimension_numbers<[1], [0], [0], [1], [0, 0, 1, 1], [], []>} : vector<64x64xbf16>, vector<64x4xbf16>, vector<64x4xf32> -> vector<64x4xf32>
    %34 = vector.broadcast %31 : vector<64x1xf32> to vector<64x4xf32>
    %35 = arith.mulf %33, %34 : vector<64x4xf32>
    %c0_17 = arith.constant 0 : index
    %c0_18 = arith.constant 0 : index
    %36 = vector.load %arg5[%c0_17, %c0_18] : memref<1x4xf32, #tpu.memory_space<vmem>>, vector<1x4xf32>
    %37 = vector.broadcast %36 : vector<1x4xf32> to vector<64x4xf32>
    %38 = arith.addf %35, %37 : vector<64x4xf32>
    %cst_19 = arith.constant dense<0xFF800000> : vector<64xf32>
    %39 = vector.multi_reduction <maximumf>, %38, %cst_19 [1] : vector<64x4xf32> to vector<64xf32>
    %40 = vector.shape_cast %39 : vector<64xf32> to vector<64x1xf32>
    %41 = vector.broadcast %40 : vector<64x1xf32> to vector<64x4xf32>
    %42 = arith.subf %38, %41 : vector<64x4xf32>
    %43 = math.exp %42 : vector<64x4xf32>
    %cst_20 = arith.constant dense<0.000000e+00> : vector<64xf32>
    %44 = vector.multi_reduction <add>, %43, %cst_20 [1] : vector<64x4xf32> to vector<64xf32>
    %45 = vector.shape_cast %44 : vector<64xf32> to vector<64x1xf32>
    %46 = math.log %45 : vector<64x1xf32>
    %47 = vector.broadcast %46 : vector<64x1xf32> to vector<64x4xf32>
    %48 = arith.subf %42, %47 : vector<64x4xf32>
    %c0_21 = arith.constant 0 : index
    %c0_22 = arith.constant 0 : index
    %49 = vector.load %arg7[%c0_21, %c0_22] : memref<64x4xf32, #tpu.memory_space<vmem>>, vector<64x4xf32>
    tpu.vector_store %arg7[%c0_21, %c0_22], %48 {strides = array<i32>} : memref<64x4xf32, #tpu.memory_space<vmem>>, vector<64x4xf32>,
    return
  }
  func.func @transform_0(%arg0: i32) -> (i32, i32) {
    %c0_i32 = arith.constant 0 : i32
    %c0_i32_0 = arith.constant 0 : i32
    %c0_i32_1 = arith.constant 0 : i32
    return %c0_i32, %c0_i32_0 : i32, i32
  }
  func.func @transform_1(%arg0: i32) -> (i32, i32) {
    %c0_i32 = arith.constant 0 : i32
    %c0_i32_0 = arith.constant 0 : i32
    %c0_i32_1 = arith.constant 0 : i32
    return %c0_i32, %c0_i32_0 : i32, i32
  }
  func.func @transform_2(%arg0: i32) -> (i32, i32) {
    %c0_i32 = arith.constant 0 : i32
    %c0_i32_0 = arith.constant 0 : i32
    %c0_i32_1 = arith.constant 0 : i32
    return %c0_i32, %c0_i32_0 : i32, i32
  }
  func.func @transform_3(%arg0: i32) -> (i32, i32) {
    %c0_i32 = arith.constant 0 : i32
    %c0_i32_0 = arith.constant 0 : i32
    %c0_i32_1 = arith.constant 0 : i32
    return %c0_i32, %c0_i32_0 : i32, i32
  }
  func.func @transform_4(%arg0: i32) -> (i32, i32) {
    %c0_i32 = arith.constant 0 : i32
    %c0_i32_0 = arith.constant 0 : i32
    %c0_i32_1 = arith.constant 0 : i32
    return %c0_i32, %c0_i32_0 : i32, i32
  }
  func.func @transform_5(%arg0: i32) -> (i32, i32) {
    %c0_i32 = arith.constant 0 : i32
    %c0_i32_0 = arith.constant 0 : i32
    return %arg0, %c0_i32 : i32, i32
  }
  func.func @transform_6(%arg0: i32) -> (i32, i32) {
    %c0_i32 = arith.constant 0 : i32
    %c0_i32_0 = arith.constant 0 : i32
    return %arg0, %c0_i32 : i32, i32
  }
}

</mosaic_0001>

<llo_original>
// kernel: gat_forward.3
$region0: #{gat_forward.3}
  #allocation0 [shape = 'u32[]', space=smem, size = 0x4, offset = 0x4, fixed_abs, tag = 'smem constant byte address 0x4 - core index']
  #allocation1 [shape = 'u32[144,128]{1,0:T(1,128)}', space=vmem, size = 0x12000, scoped, tag = 'internal scratch']
  %s0 = inlined_call_operand.vmem [shape: bf16[64,128], index: 0, kind: input, shape index: {}]
  %s1 = inlined_call_operand.vmem [shape: bf16[128,4], index: 1, kind: input, shape index: {}]
  %s2 = inlined_call_operand.vmem [shape: bf16[8,128], index: 2, kind: input, shape index: {}]
  %s3 = inlined_call_operand.vmem [shape: bf16[128,1], index: 3, kind: input, shape index: {}]
  %s4 = inlined_call_operand.vmem [shape: f32[1,4], index: 4, kind: input, shape index: {}]
  %s5 = inlined_call_operand.vmem [shape: s8[64,64], index: 5, kind: input, shape index: {}]
  %s6 = inlined_call_operand.vmem [shape: f32[64,4], index: 6, kind: output, shape index: {}]
  %s7 = sld [smem:[#allocation0]]
  $region34: #{gat_forward.3} parent=0
    _
  %s9 = ssub.s32 1, %s7
  %s10 = scalar_select 0, %s9, %s7
  // Predicated region
  $region2: #{gat_forward.3} parent=0 // pred_check
    _
  $region3: #{gat_forward.3} parent=0 // pred_check_branch
    %12 = sbr.rel (0) target = $region5
  $region4: #{gat_forward.3} parent=0 // pred_region
    _
  $region5: #{gat_forward.3} parent=0 // pred_fallthru
    _
  // Predicated region
  $region6: #{gat_forward.3} parent=0 // pred_check
    _
  $region7: #{gat_forward.3} parent=0 // pred_check_branch
    %14 = sbr.rel (0) target = $region9
  $region8: #{gat_forward.3} parent=0 // pred_region
    _
  $region9: #{gat_forward.3} parent=0 // pred_fallthru
    _
  // Predicated region
  $region10: #{gat_forward.3} parent=0 // pred_check
    _
  $region11: #{gat_forward.3} parent=0 // pred_check_branch
    %16 = sbr.rel (0) target = $region13
  $region12: #{gat_forward.3} parent=0 // pred_region
    _
  $region13: #{gat_forward.3} parent=0 // pred_fallthru
    _
  // Predicated region
  $region14: #{gat_forward.3} parent=0 // pred_check
    _
  $region15: #{gat_forward.3} parent=0 // pred_check_branch
    %18 = sbr.rel (0) target = $region17
  $region16: #{gat_forward.3} parent=0 // pred_region
    _
  $region17: #{gat_forward.3} parent=0 // pred_fallthru
    _
  // Predicated region
  $region18: #{gat_forward.3} parent=0 // pred_check
    _
  $region19: #{gat_forward.3} parent=0 // pred_check_branch
    %20 = sbr.rel (0) target = $region21
  $region20: #{gat_forward.3} parent=0 // pred_region
    _
  $region21: #{gat_forward.3} parent=0 // pred_fallthru
    _
  // Predicated region
  $region22: #{gat_forward.3} parent=0 // pred_check
    _
  $region23: #{gat_forward.3} parent=0 // pred_check_branch
    %22 = sbr.rel (0) target = $region25
  $region24: #{gat_forward.3} parent=0 // pred_region
    _
  $region25: #{gat_forward.3} parent=0 // pred_fallthru
    _
  %v26 = vld [vmem:[%s0] sm:$0xf]
  %v27 = vld [vmem:[%s0 + $0x4] sm:$0xf]
  %v28 = vld [vmem:[%s0 + $0x8] sm:$0xf]
  %v29 = vld [vmem:[%s0 + $0xc] sm:$0xf]
  %v30 = vld [vmem:[%s0 + $0x10] sm:$0xf]
  %v31 = vld [vmem:[%s0 + $0x14] sm:$0xf]
  %v32 = vld [vmem:[%s0 + $0x18] sm:$0xf]
  %v33 = vld [vmem:[%s0 + $0x1c] sm:$0xf]
  %v34 = vld [vmem:[%s1] sm:$0xf]
  %v35 = vld [vmem:[%s1 + $0x4] sm:$0xf]
  %v36 = vld [vmem:[%s1 + $0x8] sm:$0xf]
  %v37 = vld [vmem:[%s1 + $0xc] sm:$0xf]
  %v38 = vld [vmem:[%s1 + $0x10] sm:$0xf]
  %v39 = vld [vmem:[%s1 + $0x14] sm:$0xf]
  %v40 = vld [vmem:[%s1 + $0x18] sm:$0xf]
  %v41 = vld [vmem:[%s1 + $0x1c] sm:$0xf]
  %v42 = vld [vmem:[%s1 + $0x20] sm:$0xf]
  %v43 = vld [vmem:[%s1 + $0x24] sm:$0xf]
  %v44 = vld [vmem:[%s1 + $0x28] sm:$0xf]
  %v45 = vld [vmem:[%s1 + $0x2c] sm:$0xf]
  %v46 = vld [vmem:[%s1 + $0x30] sm:$0xf]
  %v47 = vld [vmem:[%s1 + $0x34] sm:$0xf]
  %v48 = vld [vmem:[%s1 + $0x38] sm:$0xf]
  %v49 = vld [vmem:[%s1 + $0x3c] sm:$0xf]
  %v58 = vunpack.c.l.b16 %v26
  %v59 = vunpack.c.l.b16 %v27
  %v60 = vunpack.c.l.b16 %v28
  %v61 = vunpack.c.l.b16 %v29
  %v62 = vunpack.c.l.b16 %v30
  %v63 = vunpack.c.l.b16 %v31
  %v64 = vunpack.c.l.b16 %v32
  %v65 = vunpack.c.l.b16 %v33
  %v66 = vpack.c.b16 %v59, %v58
  %v67 = vpack.c.b16 %v61, %v60
  %v68 = vpack.c.b16 %v63, %v62
  %v69 = vpack.c.b16 %v65, %v64
  %v90 = vunpack.c.l.b16 %v34
  %v91 = vunpack.c.l.b16 %v35
  %v92 = vunpack.c.l.b16 %v36
  %v93 = vunpack.c.l.b16 %v37
  %v94 = vunpack.c.l.b16 %v38
  %v95 = vunpack.c.l.b16 %v39
  %v96 = vunpack.c.l.b16 %v40
  %v97 = vunpack.c.l.b16 %v41
  %v98 = vunpack.c.l.b16 %v42
  %v99 = vunpack.c.l.b16 %v43
  %v100 = vunpack.c.l.b16 %v44
  %v101 = vunpack.c.l.b16 %v45
  %v102 = vunpack.c.l.b16 %v46
  %v103 = vunpack.c.l.b16 %v47
  %v104 = vunpack.c.l.b16 %v48
  %v105 = vunpack.c.l.b16 %v49
  %v106 = vpack.c.b16 %v91, %v90
  %v107 = vpack.c.b16 %v93, %v92
  %v108 = vpack.c.b16 %v95, %v94
  %v109 = vpack.c.b16 %v97, %v96
  %v110 = vpack.c.b16 %v99, %v98
  %v111 = vpack.c.b16 %v101, %v100
  %v112 = vpack.c.b16 %v103, %v102
  %v113 = vpack.c.b16 %v105, %v104
  %122 = vmatprep.subr.bf16.mxu0 0
  %123 = vmatpush1.bf16.msra.mxu0 %v106
  %124 = vmatprep.subr.bf16.mxu0 0
  %125 = vmatpush1.bf16.msra.mxu0 %v107
  %126 = vmatprep.subr.bf16.mxu0 0
  %127 = vmatpush1.bf16.msra.mxu0 %v108
  %128 = vmatprep.subr.bf16.mxu0 0
  %129 = vmatpush1.bf16.msra.mxu0 %v109
  %130 = vmatprep.subr.bf16.mxu0 0
  %131 = vmatpush1.bf16.msra.mxu0 %v110
  %132 = vmatprep.subr.bf16.mxu0 0
  %133 = vmatpush1.bf16.msra.mxu0 %v111
  %134 = vmatprep.subr.bf16.mxu0 0
  %135 = vmatpush1.bf16.msra.mxu0 %v112
  %136 = vmatprep.subr.bf16.mxu0 0
  %137 = vmatpush1.bf16.msra.mxu0 %v113
  %138 = vmatprep.subr.bf16.mxu0 0
  %139 = vmatpush1.bf16.msra.mxu0 0
  %140 = vmatprep.subr.bf16.mxu0 0
  %141 = vmatpush1.bf16.msra.mxu0 0
  %142 = vmatprep.subr.bf16.mxu0 0
  %143 = vmatpush1.bf16.msra.mxu0 0
  %144 = vmatprep.subr.bf16.mxu0 0
  %145 = vmatpush1.bf16.msra.mxu0 0
  %146 = vmatprep.subr.bf16.mxu0 0
  %147 = vmatpush1.bf16.msra.mxu0 0
  %148 = vmatprep.subr.bf16.mxu0 0
  %149 = vmatpush1.bf16.msra.mxu0 0
  %150 = vmatprep.subr.bf16.mxu0 0
  %151 = vmatpush1.bf16.msra.mxu0 0
  %152 = vmatprep.subr.bf16.mxu0 0
  %153 = vmatpush1.bf16.msra.mxu0 0
  %154 = vmatprep.mubr.bf16.mxu0 0
  %155 = vmatmul.mubr.bf16.gmra.mrb[0].mxu0 %v66
  %v156 = vpop.f32.mrb[0].mxu0
  %v157 = vadd.f32 0.0, %v156
  %v158 = vpop.f32.mrb[0].mxu0
  %v159 = vpop.f32.mrb[0].mxu0
  %v160 = vadd.f32 0.0, %v159
  %v161 = vpop.f32.mrb[0].mxu0
  %162 = vmatprep.mubr.bf16.mxu0 0
  %163 = vmatmul.mubr.bf16.gmra.mrb[0].mxu0 %v67
  %v164 = vpop.f32.mrb[0].mxu0
  %v165 = vadd.f32 0.0, %v164
  %v166 = vpop.f32.mrb[0].mxu0
  %v167 = vpop.f32.mrb[0].mxu0
  %v168 = vadd.f32 0.0, %v167
  %v169 = vpop.f32.mrb[0].mxu0
  %170 = vmatprep.mubr.bf16.mxu0 0
  %171 = vmatmul.mubr.bf16.gmra.mrb[0].mxu0 %v68
  %v172 = vpop.f32.mrb[0].mxu0
  %v173 = vadd.f32 0.0, %v172
  %v174 = vpop.f32.mrb[0].mxu0
  %v175 = vpop.f32.mrb[0].mxu0
  %v176 = vadd.f32 0.0, %v175
  %v177 = vpop.f32.mrb[0].mxu0
  %178 = vmatprep.mubr.bf16.mxu0 0
  %179 = vmatmul.mubr.bf16.gmra.mrb[0].mxu0 %v69
  %v180 = vpop.f32.mrb[0].mxu0
  %v181 = vadd.f32 0.0, %v180
  %v182 = vpop.f32.mrb[0].mxu0
  %v183 = vpop.f32.mrb[0].mxu0
  %v184 = vadd.f32 0.0, %v183
  %v185 = vpop.f32.mrb[0].mxu0
  %186 = vdwg.mxu0
  %v187 = vpack.c.bf16 %v160, %v157
  %v188 = vpack.c.bf16 %v168, %v165
  %v189 = vpack.c.bf16 %v176, %v173
  %v190 = vpack.c.bf16 %v184, %v181
  %v191 = vld [vmem:[%s2] sm:$0xf]
  %192 = vmatprep.subr.bf16.mxu0 0
  %193 = vmatpush1.bf16.xpose.msra.mxu0 %v66
  %194 = vmatprep.subr.bf16.mxu0 0
  %195 = vmatpush1.bf16.xpose.msra.mxu0 %v67
  %196 = vmatprep.subr.bf16.mxu0 0
  %197 = vmatpush1.bf16.xpose.msra.mxu0 %v68
  %198 = vmatprep.subr.bf16.mxu0 0
  %199 = vmatpush1.bf16.xpose.msra.mxu0 %v69
  %200 = vmatprep.subr.bf16.mxu0 0
  %201 = vmatpush1.bf16.xpose.msra.mxu0 0
  %202 = vmatprep.subr.bf16.mxu0 0
  %203 = vmatpush1.bf16.xpose.msra.mxu0 0
  %204 = vmatprep.subr.bf16.mxu0 0
  %205 = vmatpush1.bf16.xpose.msra.mxu0 0
  %206 = vmatprep.subr.bf16.mxu0 0
  %207 = vmatpush1.bf16.xpose.msra.mxu0 0
  %208 = vmatprep.subr.bf16.mxu0 0
  %209 = vmatpush1.bf16.xpose.msra.mxu0 0
  %210 = vmatprep.subr.bf16.mxu0 0
  %211 = vmatpush1.bf16.xpose.msra.mxu0 0
  %212 = vmatprep.subr.bf16.mxu0 0
  %213 = vmatpush1.bf16.xpose.msra.mxu0 0
  %214 = vmatprep.subr.bf16.mxu0 0
  %215 = vmatpush1.bf16.xpose.msra.mxu0 0
  %216 = vmatprep.subr.bf16.mxu0 0
  %217 = vmatpush1.bf16.xpose.msra.mxu0 0
  %218 = vmatprep.subr.bf16.mxu0 0
  %219 = vmatpush1.bf16.xpose.msra.mxu0 0
  %220 = vmatprep.subr.bf16.mxu0 0
  %221 = vmatpush1.bf16.xpose.msra.mxu0 0
  %222 = vmatprep.subr.bf16.mxu0 0
  %223 = vmatpush1.bf16.xpose.msra.mxu0 0
  %224 = vmatprep.mubr.bf16.mxu0 0
  %225 = vmatmul.mubr.bf16.gmra.mrb[0].mxu0 %v191
  %v226 = vpop.f32.mrb[0].mxu0
  %v227 = vadd.f32 0.0, %v226
  %v228 = vpop.f32.mrb[0].mxu0
  %v229 = vpop.f32.mrb[0].mxu0
  %v230 = vpop.f32.mrb[0].mxu0
  %231 = vdwg.mxu0
  %s232 = smul.u32 0, 64
  %s233 = sshra.s32 %s232, 3
  %s234 = sand.u32 %s232, 7
  %s235 = smul.addr %s233, 4
  %s236 = scalar_lea.vmem %s0, %s235
  %v237 = vld [vmem:[%s236] sm:$0xf]
  %v238 = vld [vmem:[%s236 + $0x4] sm:$0xf]
  %v239 = vld [vmem:[%s236 + $0x8] sm:$0xf]
  %v240 = vld [vmem:[%s236 + $0xc] sm:$0xf]
  %v241 = vld [vmem:[%s236 + $0x10] sm:$0xf]
  %v242 = vld [vmem:[%s236 + $0x14] sm:$0xf]
  %v243 = vld [vmem:[%s236 + $0x18] sm:$0xf]
  %v244 = vld [vmem:[%s236 + $0x1c] sm:$0xf]
  %v245 = vld [vmem:[%s3] sm:$0xf]
  %v246 = vld [vmem:[%s3 + $0x4] sm:$0xf]
  %v247 = vld [vmem:[%s3 + $0x8] sm:$0xf]
  %v248 = vld [vmem:[%s3 + $0xc] sm:$0xf]
  %v249 = vld [vmem:[%s3 + $0x10] sm:$0xf]
  %v250 = vld [vmem:[%s3 + $0x14] sm:$0xf]
  %v251 = vld [vmem:[%s3 + $0x18] sm:$0xf]
  %v252 = vld [vmem:[%s3 + $0x1c] sm:$0xf]
  %v253 = vld [vmem:[%s3 + $0x20] sm:$0xf]
  %v254 = vld [vmem:[%s3 + $0x24] sm:$0xf]
  %v255 = vld [vmem:[%s3 + $0x28] sm:$0xf]
  %v256 = vld [vmem:[%s3 + $0x2c] sm:$0xf]
  %v257 = vld [vmem:[%s3 + $0x30] sm:$0xf]
  %v258 = vld [vmem:[%s3 + $0x34] sm:$0xf]
  %v259 = vld [vmem:[%s3 + $0x38] sm:$0xf]
  %v260 = vld [vmem:[%s3 + $0x3c] sm:$0xf]
  %v269 = vunpack.c.l.b16 %v237
  %v270 = vunpack.c.l.b16 %v238
  %v271 = vunpack.c.l.b16 %v239
  %v272 = vunpack.c.l.b16 %v240
  %v273 = vunpack.c.l.b16 %v241
  %v274 = vunpack.c.l.b16 %v242
  %v275 = vunpack.c.l.b16 %v243
  %v276 = vunpack.c.l.b16 %v244
  %v277 = vpack.c.b16 %v270, %v269
  %v278 = vpack.c.b16 %v272, %v271
  %v279 = vpack.c.b16 %v274, %v273
  %v280 = vpack.c.b16 %v276, %v275
  %v301 = vunpack.c.l.b16 %v245
  %v302 = vunpack.c.l.b16 %v246
  %v303 = vunpack.c.l.b16 %v247
  %v304 = vunpack.c.l.b16 %v248
  %v305 = vunpack.c.l.b16 %v249
  %v306 = vunpack.c.l.b16 %v250
  %v307 = vunpack.c.l.b16 %v251
  %v308 = vunpack.c.l.b16 %v252
  %v309 = vunpack.c.l.b16 %v253
  %v310 = vunpack.c.l.b16 %v254
  %v311 = vunpack.c.l.b16 %v255
  %v312 = vunpack.c.l.b16 %v256
  %v313 = vunpack.c.l.b16 %v257
  %v314 = vunpack.c.l.b16 %v258
  %v315 = vunpack.c.l.b16 %v259
  %v316 = vunpack.c.l.b16 %v260
  %v317 = vpack.c.b16 %v302, %v301
  %v318 = vpack.c.b16 %v304, %v303
  %v319 = vpack.c.b16 %v306, %v305
  %v320 = vpack.c.b16 %v308, %v307
  %v321 = vpack.c.b16 %v310, %v309
  %v322 = vpack.c.b16 %v312, %v311
  %v323 = vpack.c.b16 %v314, %v313
  %v324 = vpack.c.b16 %v316, %v315
  %333 = vmatprep.subr.bf16.mxu0 0
  %334 = vmatpush1.bf16.msra.mxu0 %v317
  %335 = vmatprep.subr.bf16.mxu0 0
  %336 = vmatpush1.bf16.msra.mxu0 %v318
  %337 = vmatprep.subr.bf16.mxu0 0
  %338 = vmatpush1.bf16.msra.mxu0 %v319
  %339 = vmatprep.subr.bf16.mxu0 0
  %340 = vmatpush1.bf16.msra.mxu0 %v320
  %341 = vmatprep.subr.bf16.mxu0 0
  %342 = vmatpush1.bf16.msra.mxu0 %v321
  %343 = vmatprep.subr.bf16.mxu0 0
  %344 = vmatpush1.bf16.msra.mxu0 %v322
  %345 = vmatprep.subr.bf16.mxu0 0
  %346 = vmatpush1.bf16.msra.mxu0 %v323
  %347 = vmatprep.subr.bf16.mxu0 0
  %348 = vmatpush1.bf16.msra.mxu0 %v324
  %349 = vmatprep.subr.bf16.mxu0 0
  %350 = vmatpush1.bf16.msra.mxu0 0
  %351 = vmatprep.subr.bf16.mxu0 0
  %352 = vmatpush1.bf16.msra.mxu0 0
  %353 = vmatprep.subr.bf16.mxu0 0
  %354 = vmatpush1.bf16.msra.mxu0 0
  %355 = vmatprep.subr.bf16.mxu0 0
  %356 = vmatpush1.bf16.msra.mxu0 0
  %357 = vmatprep.subr.bf16.mxu0 0
  %358 = vmatpush1.bf16.msra.mxu0 0
  %359 = vmatprep.subr.bf16.mxu0 0
  %360 = vmatpush1.bf16.msra.mxu0 0
  %361 = vmatprep.subr.bf16.mxu0 0
  %362 = vmatpush1.bf16.msra.mxu0 0
  %363 = vmatprep.subr.bf16.mxu0 0
  %364 = vmatpush1.bf16.msra.mxu0 0
  %365 = vmatprep.mubr.bf16.mxu0 0
  %366 = vmatmul.mubr.bf16.gmra.mrb[0].mxu0 %v277
  %v367 = vpop.f32.mrb[0].mxu0
  %v368 = vadd.f32 0.0, %v367
  %v369 = vpop.f32.mrb[0].mxu0
  %v370 = vpop.f32.mrb[0].mxu0
  %v371 = vadd.f32 0.0, %v370
  %v372 = vpop.f32.mrb[0].mxu0
  %373 = vmatprep.mubr.bf16.mxu0 0
  %374 = vmatmul.mubr.bf16.gmra.mrb[0].mxu0 %v278
  %v375 = vpop.f32.mrb[0].mxu0
  %v376 = vadd.f32 0.0, %v375
  %v377 = vpop.f32.mrb[0].mxu0
  %v378 = vpop.f32.mrb[0].mxu0
  %v379 = vadd.f32 0.0, %v378
  %v380 = vpop.f32.mrb[0].mxu0
  %381 = vmatprep.mubr.bf16.mxu0 0
  %382 = vmatmul.mubr.bf16.gmra.mrb[0].mxu0 %v279
  %v383 = vpop.f32.mrb[0].mxu0
  %v384 = vadd.f32 0.0, %v383
  %v385 = vpop.f32.mrb[0].mxu0
  %v386 = vpop.f32.mrb[0].mxu0
  %v387 = vadd.f32 0.0, %v386
  %v388 = vpop.f32.mrb[0].mxu0
  %389 = vmatprep.mubr.bf16.mxu0 0
  %390 = vmatmul.mubr.bf16.gmra.mrb[0].mxu0 %v280
  %v391 = vpop.f32.mrb[0].mxu0
  %v392 = vadd.f32 0.0, %v391
  %v393 = vpop.f32.mrb[0].mxu0
  %v394 = vpop.f32.mrb[0].mxu0
  %v395 = vadd.f32 0.0, %v394
  %v396 = vpop.f32.mrb[0].mxu0
  %397 = vdwg.mxu0
  %v398 = vld [vmem:[%s5] sm:$0xff]
  %v399 = vld [vmem:[%s5 + $0x8] sm:$0xff]
  %vm400 = vnez %v398
  %vm401 = vnez %v399
  %403 = vset.pattern.permute.xlu0 0
  %404 = vperm.xlu0 %403, %v368
  %v405 = vpop.permute.xlu0 %404
  %408 = vset.pattern.permute.xlu0 0
  %409 = vperm.xlu0 %408, %v371
  %v410 = vpop.permute.xlu0 %409
  %413 = vset.pattern.permute.xlu0 0
  %414 = vperm.xlu0 %413, %v376
  %v415 = vpop.permute.xlu0 %414
  %418 = vset.pattern.permute.xlu0 0
  %419 = vperm.xlu0 %418, %v379
  %v420 = vpop.permute.xlu0 %419
  %423 = vset.pattern.permute.xlu0 0
  %424 = vperm.xlu0 %423, %v384
  %v425 = vpop.permute.xlu0 %424
  %428 = vset.pattern.permute.xlu0 0
  %429 = vperm.xlu0 %428, %v387
  %v430 = vpop.permute.xlu0 %429
  %433 = vset.pattern.permute.xlu0 0
  %434 = vperm.xlu0 %433, %v392
  %v435 = vpop.permute.xlu0 %434
  %438 = vset.pattern.permute.xlu0 0
  %439 = vperm.xlu0 %438, %v395
  %v440 = vpop.permute.xlu0 %439
  %v442 = vlaneseq
  %v443 = vshrl.u32 %v442, 7
  %v444 = vsub.s32 0, %v443
  %v445 = vrot.slane %v227, %v444
  %v446 = vadd.f32 %v405, %v445
  %v447 = vadd.f32 %v410, %v445
  %v448 = vadd.f32 %v415, %v445
  %v449 = vadd.f32 %v420, %v445
  %v450 = vadd.f32 %v425, %v445
  %v451 = vadd.f32 %v430, %v445
  %v452 = vadd.f32 %v435, %v445
  %v453 = vadd.f32 %v440, %v445
  %v454 = vmul.f32 %v446, 0.2
  %v455 = vmul.f32 %v447, 0.2
  %v456 = vmul.f32 %v448, 0.2
  %v457 = vmul.f32 %v449, 0.2
  %v458 = vmul.f32 %v450, 0.2
  %v459 = vmul.f32 %v451, 0.2
  %v460 = vmul.f32 %v452, 0.2
  %v461 = vmul.f32 %v453, 0.2
  %v462 = vmax.f32 %v446, %v454
  %v463 = vmax.f32 %v447, %v455
  %v464 = vmax.f32 %v448, %v456
  %v465 = vmax.f32 %v449, %v457
  %v466 = vmax.f32 %v450, %v458
  %v467 = vmax.f32 %v451, %v459
  %v468 = vmax.f32 %v452, %v460
  %v469 = vmax.f32 %v453, %v461
  %v470 = vsel %vm400, 16843009, 0
  %v471 = vsel %vm401, 16843009, 0
  %v472 = vunpack.c.0.s8 %v470
  %v473 = vunpack.c.1.s8 %v470
  %v474 = vunpack.c.2.s8 %v470
  %v475 = vunpack.c.3.s8 %v470
  %v476 = vunpack.c.0.s8 %v471
  %v477 = vunpack.c.1.s8 %v471
  %v478 = vunpack.c.2.s8 %v471
  %v479 = vunpack.c.3.s8 %v471
  %v480 = vpack.c.b16 %v472, %v472
  %v481 = vpack.c.b8 %v480, %v480
  %v482 = vpack.c.b16 %v473, %v473
  %v483 = vpack.c.b8 %v482, %v482
  %v484 = vpack.c.b16 %v474, %v474
  %v485 = vpack.c.b8 %v484, %v484
  %v486 = vpack.c.b16 %v475, %v475
  %v487 = vpack.c.b8 %v486, %v486
  %v488 = vpack.c.b16 %v476, %v476
  %v489 = vpack.c.b8 %v488, %v488
  %v490 = vpack.c.b16 %v477, %v477
  %v491 = vpack.c.b8 %v490, %v490
  %v492 = vpack.c.b16 %v478, %v478
  %v493 = vpack.c.b8 %v492, %v492
  %v494 = vpack.c.b16 %v479, %v479
  %v495 = vpack.c.b8 %v494, %v494
  %vm496 = vnez %v481
  %vm497 = vnez %v483
  %vm498 = vnez %v485
  %vm499 = vnez %v487
  %vm500 = vnez %v489
  %vm501 = vnez %v491
  %vm502 = vnez %v493
  %vm503 = vnez %v495
  %v504 = vsel %vm496, 16843009, 0
  %v505 = vsel %vm497, 16843009, 0
  %v506 = vsel %vm498, 16843009, 0
  %v507 = vsel %vm499, 16843009, 0
  %v508 = vsel %vm500, 16843009, 0
  %v509 = vsel %vm501, 16843009, 0
  %v510 = vsel %vm502, 16843009, 0
  %v511 = vsel %vm503, 16843009, 0
  %v512 = vunpack.c.0.s8 %v504
  %v513 = vunpack.c.0.s8 %v505
  %v514 = vunpack.c.0.s8 %v506
  %v515 = vunpack.c.0.s8 %v507
  %v516 = vunpack.c.0.s8 %v508
  %v517 = vunpack.c.0.s8 %v509
  %v518 = vunpack.c.0.s8 %v510
  %v519 = vunpack.c.0.s8 %v511
  %vm520 = vcmp.ne.s32.totalorder %v512, 0
  %vm521 = vcmp.ne.s32.totalorder %v513, 0
  %vm522 = vcmp.ne.s32.totalorder %v514, 0
  %vm523 = vcmp.ne.s32.totalorder %v515, 0
  %vm524 = vcmp.ne.s32.totalorder %v516, 0
  %vm525 = vcmp.ne.s32.totalorder %v517, 0
  %vm526 = vcmp.ne.s32.totalorder %v518, 0
  %vm527 = vcmp.ne.s32.totalorder %v519, 0
  %v528 = vsel %vm520, %v462, -1e+30
  %v529 = vsel %vm521, %v463, -1e+30
  %v530 = vsel %vm522, %v464, -1e+30
  %v531 = vsel %vm523, %v465, -1e+30
  %v532 = vsel %vm524, %v466, -1e+30
  %v533 = vsel %vm525, %v467, -1e+30
  %v534 = vsel %vm526, %v468, -1e+30
  %v535 = vsel %vm527, %v469, -1e+30
  %vm536 = vcmask 523264
  %v537 = vsel %vm536, %v528, -inf
  %538 = vmax.xlane.f32.xlu0 %v537
  %v539 = vpop.xlane.xlu0 %538
  %v540 = vsel %vm536, %v529, -inf
  %541 = vmax.xlane.f32.xlu0 %v540
  %v542 = vpop.xlane.xlu0 %541
  %v543 = vsel %vm536, %v530, -inf
  %544 = vmax.xlane.f32.xlu0 %v543
  %v545 = vpop.xlane.xlu0 %544
  %v546 = vsel %vm536, %v531, -inf
  %547 = vmax.xlane.f32.xlu0 %v546
  %v548 = vpop.xlane.xlu0 %547
  %v549 = vsel %vm536, %v532, -inf
  %550 = vmax.xlane.f32.xlu0 %v549
  %v551 = vpop.xlane.xlu0 %550
  %v552 = vsel %vm536, %v533, -inf
  %553 = vmax.xlane.f32.xlu0 %v552
  %v554 = vpop.xlane.xlu0 %553
  %v555 = vsel %vm536, %v534, -inf
  %556 = vmax.xlane.f32.xlu0 %v555
  %v557 = vpop.xlane.xlu0 %556
  %v558 = vsel %vm536, %v535, -inf
  %559 = vmax.xlane.f32.xlu0 %v558
  %v560 = vpop.xlane.xlu0 %559
  %v561 = vsub.f32 %v528, %v539
  %v562 = vsub.f32 %v529, %v542
  %v563 = vsub.f32 %v530, %v545
  %v564 = vsub.f32 %v531, %v548
  %v565 = vsub.f32 %v532, %v551
  %v566 = vsub.f32 %v533, %v554
  %v567 = vsub.f32 %v534, %v557
  %v568 = vsub.f32 %v535, %v560
  %v569 = vmul.f32 %v561, 1.442695
  %v570 = vpow.pop %v569
  %v571 = vmul.f32 %v562, 1.442695
  %v572 = vpow.pop %v571
  %v573 = vmul.f32 %v563, 1.442695
  %v574 = vpow.pop %v573
  %v575 = vmul.f32 %v564, 1.442695
  %v576 = vpow.pop %v575
  %v577 = vmul.f32 %v565, 1.442695
  %v578 = vpow.pop %v577
  %v579 = vmul.f32 %v566, 1.442695
  %v580 = vpow.pop %v579
  %v581 = vmul.f32 %v567, 1.442695
  %v582 = vpow.pop %v581
  %v583 = vmul.f32 %v568, 1.442695
  %v584 = vpow.pop %v583
  %v585 = vsel %vm536, %v570, 0.0
  %586 = vadd.xlane.f32.xlu0 %v585
  %v587 = vpop.xlane.xlu0 %586
  %v588 = vsel %vm536, %v572, 0.0
  %589 = vadd.xlane.f32.xlu0 %v588
  %v590 = vpop.xlane.xlu0 %589
  %v591 = vsel %vm536, %v574, 0.0
  %592 = vadd.xlane.f32.xlu0 %v591
  %v593 = vpop.xlane.xlu0 %592
  %v594 = vsel %vm536, %v576, 0.0
  %595 = vadd.xlane.f32.xlu0 %v594
  %v596 = vpop.xlane.xlu0 %595
  %v597 = vsel %vm536, %v578, 0.0
  %598 = vadd.xlane.f32.xlu0 %v597
  %v599 = vpop.xlane.xlu0 %598
  %v600 = vsel %vm536, %v580, 0.0
  %601 = vadd.xlane.f32.xlu0 %v600
  %v602 = vpop.xlane.xlu0 %601
  %v603 = vsel %vm536, %v582, 0.0
  %604 = vadd.xlane.f32.xlu0 %v603
  %v605 = vpop.xlane.xlu0 %604
  %v606 = vsel %vm536, %v584, 0.0
  %607 = vadd.xlane.f32.xlu0 %v606
  %v608 = vpop.xlane.xlu0 %607
  %v609 = vrcp.pop %v587
  %v610 = vrcp.pop %v590
  %v611 = vrcp.pop %v593
  %v612 = vrcp.pop %v596
  %v613 = vrcp.pop %v599
  %v614 = vrcp.pop %v602
  %v615 = vrcp.pop %v605
  %v616 = vrcp.pop %v608
  %v617 = vpack.c.bf16 %v572, %v570
  %v618 = vpack.c.bf16 %v576, %v574
  %v619 = vpack.c.bf16 %v580, %v578
  %v620 = vpack.c.bf16 %v584, %v582
  %v622 = vsel %vm536, %v617, 0
  %v625 = vsel %vm536, %v618, 0
  %v628 = vsel %vm536, %v619, 0
  %v631 = vsel %vm536, %v620, 0
  %633 = vmatprep.subr.bf16.mxu0 0
  %634 = vmatpush1.bf16.msra.mxu0 %v187
  %635 = vmatprep.subr.bf16.mxu0 0
  %636 = vmatpush1.bf16.msra.mxu0 %v188
  %637 = vmatprep.subr.bf16.mxu0 0
  %638 = vmatpush1.bf16.msra.mxu0 %v189
  %639 = vmatprep.subr.bf16.mxu0 0
  %640 = vmatpush1.bf16.msra.mxu0 %v190
  %641 = vmatprep.subr.bf16.mxu0 0
  %642 = vmatpush1.bf16.msra.mxu0 0
  %643 = vmatprep.subr.bf16.mxu0 0
  %644 = vmatpush1.bf16.msra.mxu0 0
  %645 = vmatprep.subr.bf16.mxu0 0
  %646 = vmatpush1.bf16.msra.mxu0 0
  %647 = vmatprep.subr.bf16.mxu0 0
  %648 = vmatpush1.bf16.msra.mxu0 0
  %649 = vmatprep.subr.bf16.mxu0 0
  %650 = vmatpush1.bf16.msra.mxu0 0
  %651 = vmatprep.subr.bf16.mxu0 0
  %652 = vmatpush1.bf16.msra.mxu0 0
  %653 = vmatprep.subr.bf16.mxu0 0
  %654 = vmatpush1.bf16.msra.mxu0 0
  %655 = vmatprep.subr.bf16.mxu0 0
  %656 = vmatpush1.bf16.msra.mxu0 0
  %657 = vmatprep.subr.bf16.mxu0 0
  %658 = vmatpush1.bf16.msra.mxu0 0
  %659 = vmatprep.subr.bf16.mxu0 0
  %660 = vmatpush1.bf16.msra.mxu0 0
  %661 = vmatprep.subr.bf16.mxu0 0
  %662 = vmatpush1.bf16.msra.mxu0 0
  %663 = vmatprep.subr.bf16.mxu0 0
  %664 = vmatpush1.bf16.msra.mxu0 0
  %665 = vmatprep.mubr.bf16.mxu0 0
  %666 = vmatmul.mubr.bf16.gmra.mrb[0].mxu0 %v622
  %v667 = vpop.f32.mrb[0].mxu0
  %v668 = vadd.f32 0.0, %v667
  %v669 = vpop.f32.mrb[0].mxu0
  %v670 = vpop.f32.mrb[0].mxu0
  %v671 = vadd.f32 0.0, %v670
  %v672 = vpop.f32.mrb[0].mxu0
  %673 = vmatprep.mubr.bf16.mxu0 0
  %674 = vmatmul.mubr.bf16.gmra.mrb[0].mxu0 %v625
  %v675 = vpop.f32.mrb[0].mxu0
  %v676 = vadd.f32 0.0, %v675
  %v677 = vpop.f32.mrb[0].mxu0
  %v678 = vpop.f32.mrb[0].mxu0
  %v679 = vadd.f32 0.0, %v678
  %v680 = vpop.f32.mrb[0].mxu0
  %681 = vmatprep.mubr.bf16.mxu0 0
  %682 = vmatmul.mubr.bf16.gmra.mrb[0].mxu0 %v628
  %v683 = vpop.f32.mrb[0].mxu0
  %v684 = vadd.f32 0.0, %v683
  %v685 = vpop.f32.mrb[0].mxu0
  %v686 = vpop.f32.mrb[0].mxu0
  %v687 = vadd.f32 0.0, %v686
  %v688 = vpop.f32.mrb[0].mxu0
  %689 = vmatprep.mubr.bf16.mxu0 0
  %690 = vmatmul.mubr.bf16.gmra.mrb[0].mxu0 %v631
  %v691 = vpop.f32.mrb[0].mxu0
  %v692 = vadd.f32 0.0, %v691
  %v693 = vpop.f32.mrb[0].mxu0
  %v694 = vpop.f32.mrb[0].mxu0
  %v695 = vadd.f32 0.0, %v694
  %v696 = vpop.f32.mrb[0].mxu0
  %697 = vdwg.mxu0
  %v698 = vmul.f32 %v668, %v609
  %v699 = vmul.f32 %v671, %v610
  %v700 = vmul.f32 %v676, %v611
  %v701 = vmul.f32 %v679, %v612
  %v702 = vmul.f32 %v684, %v613
  %v703 = vmul.f32 %v687, %v614
  %v704 = vmul.f32 %v692, %v615
  %v705 = vmul.f32 %v695, %v616
  %v706 = vld [vmem:[%s4] sm:$0x1]
  %v708 = vlaneseq
  %v709 = vshrl.u32 %v708, 7
  %v710 = vsub.s32 0, %v709
  %v711 = vrot.slane %v706, %v710
  %v713 = vadd.f32 %v698, %v711
  %v714 = vadd.f32 %v699, %v711
  %v715 = vadd.f32 %v700, %v711
  %v716 = vadd.f32 %v701, %v711
  %v717 = vadd.f32 %v702, %v711
  %v718 = vadd.f32 %v703, %v711
  %v719 = vadd.f32 %v704, %v711
  %v720 = vadd.f32 %v705, %v711
  %vm721 = vcmask 31744
  %v722 = vsel %vm721, %v713, -inf
  %723 = vmax.xlane.f32.xlu0 %v722
  %v724 = vpop.xlane.xlu0 %723
  %v725 = vsel %vm721, %v714, -inf
  %726 = vmax.xlane.f32.xlu0 %v725
  %v727 = vpop.xlane.xlu0 %726
  %v728 = vsel %vm721, %v715, -inf
  %729 = vmax.xlane.f32.xlu0 %v728
  %v730 = vpop.xlane.xlu0 %729
  %v731 = vsel %vm721, %v716, -inf
  %732 = vmax.xlane.f32.xlu0 %v731
  %v733 = vpop.xlane.xlu0 %732
  %v734 = vsel %vm721, %v717, -inf
  %735 = vmax.xlane.f32.xlu0 %v734
  %v736 = vpop.xlane.xlu0 %735
  %v737 = vsel %vm721, %v718, -inf
  %738 = vmax.xlane.f32.xlu0 %v737
  %v739 = vpop.xlane.xlu0 %738
  %v740 = vsel %vm721, %v719, -inf
  %741 = vmax.xlane.f32.xlu0 %v740
  %v742 = vpop.xlane.xlu0 %741
  %v743 = vsel %vm721, %v720, -inf
  %744 = vmax.xlane.f32.xlu0 %v743
  %v745 = vpop.xlane.xlu0 %744
  %v746 = vsub.f32 %v713, %v724
  %v747 = vsub.f32 %v714, %v727
  %v748 = vsub.f32 %v715, %v730
  %v749 = vsub.f32 %v716, %v733
  %v750 = vsub.f32 %v717, %v736
  %v751 = vsub.f32 %v718, %v739
  %v752 = vsub.f32 %v719, %v742
  %v753 = vsub.f32 %v720, %v745
  %v754 = vmul.f32 %v746, 1.442695
  %v755 = vpow.pop %v754
  %v756 = vmul.f32 %v747, 1.442695
  %v757 = vpow.pop %v756
  %v758 = vmul.f32 %v748, 1.442695
  %v759 = vpow.pop %v758
  %v760 = vmul.f32 %v749, 1.442695
  %v761 = vpow.pop %v760
  %v762 = vmul.f32 %v750, 1.442695
  %v763 = vpow.pop %v762
  %v764 = vmul.f32 %v751, 1.442695
  %v765 = vpow.pop %v764
  %v766 = vmul.f32 %v752, 1.442695
  %v767 = vpow.pop %v766
  %v768 = vmul.f32 %v753, 1.442695
  %v769 = vpow.pop %v768
  %v770 = vsel %vm721, %v755, 0.0
  %771 = vadd.xlane.f32.xlu0 %v770
  %v772 = vpop.xlane.xlu0 %771
  %v773 = vsel %vm721, %v757, 0.0
  %774 = vadd.xlane.f32.xlu0 %v773
  %v775 = vpop.xlane.xlu0 %774
  %v776 = vsel %vm721, %v759, 0.0
  %777 = vadd.xlane.f32.xlu0 %v776
  %v778 = vpop.xlane.xlu0 %777
  %v779 = vsel %vm721, %v761, 0.0
  %780 = vadd.xlane.f32.xlu0 %v779
  %v781 = vpop.xlane.xlu0 %780
  %v782 = vsel %vm721, %v763, 0.0
  %783 = vadd.xlane.f32.xlu0 %v782
  %v784 = vpop.xlane.xlu0 %783
  %v785 = vsel %vm721, %v765, 0.0
  %786 = vadd.xlane.f32.xlu0 %v785
  %v787 = vpop.xlane.xlu0 %786
  %v788 = vsel %vm721, %v767, 0.0
  %789 = vadd.xlane.f32.xlu0 %v788
  %v790 = vpop.xlane.xlu0 %789
  %v791 = vsel %vm721, %v769, 0.0
  %792 = vadd.xlane.f32.xlu0 %v791
  %v793 = vpop.xlane.xlu0 %792
  %v794 = vlog2.pop %v772
  %v795 = vmul.f32 %v794, 0.6931472
  %v796 = vlog2.pop %v775
  %v797 = vmul.f32 %v796, 0.6931472
  %v798 = vlog2.pop %v778
  %v799 = vmul.f32 %v798, 0.6931472
  %v800 = vlog2.pop %v781
  %v801 = vmul.f32 %v800, 0.6931472
  %v802 = vlog2.pop %v784
  %v803 = vmul.f32 %v802, 0.6931472
  %v804 = vlog2.pop %v787
  %v805 = vmul.f32 %v804, 0.6931472
  %v806 = vlog2.pop %v790
  %v807 = vmul.f32 %v806, 0.6931472
  %v808 = vlog2.pop %v793
  %v809 = vmul.f32 %v808, 0.6931472
  %v810 = vsub.f32 %v746, %v795
  %v811 = vsub.f32 %v747, %v797
  %v812 = vsub.f32 %v748, %v799
  %v813 = vsub.f32 %v749, %v801
  %v814 = vsub.f32 %v750, %v803
  %v815 = vsub.f32 %v751, %v805
  %v816 = vsub.f32 %v752, %v807
  %v817 = vsub.f32 %v753, %v809
  %818 = vst.msk [vmem:[%s6] sm:$0xff] %vm721, %v810
  %819 = vst.msk [vmem:[%s6 + $0x8] sm:$0xff] %vm721, %v811
  %820 = vst.msk [vmem:[%s6 + $0x10] sm:$0xff] %vm721, %v812
  %821 = vst.msk [vmem:[%s6 + $0x18] sm:$0xff] %vm721, %v813
  %822 = vst.msk [vmem:[%s6 + $0x20] sm:$0xff] %vm721, %v814
  %823 = vst.msk [vmem:[%s6 + $0x28] sm:$0xff] %vm721, %v815
  %824 = vst.msk [vmem:[%s6 + $0x30] sm:$0xff] %vm721, %v816
  %825 = vst.msk [vmem:[%s6 + $0x38] sm:$0xff] %vm721, %v817
  // Predicated region
  $region26: #{gat_forward.3} parent=0 // pred_check
    _
  $region27: #{gat_forward.3} parent=0 // pred_check_branch
    %827 = sbr.rel (0) target = $region29
  $region28: #{gat_forward.3} parent=0 // pred_region
    _
  $region29: #{gat_forward.3} parent=0 // pred_fallthru
    _
  // Predicated region
  $region30: #{gat_forward.3} parent=0 // pred_check
    _
  $region31: #{gat_forward.3} parent=0 // pred_check_branch
    %829 = sbr.rel (0) target = $region33
  $region32: #{gat_forward.3} parent=0 // pred_region
    _
  $region33: #{gat_forward.3} parent=0 // pred_fallthru
    _

// kernel: gat_forward.2
$region0: #{gat_forward.2}
  #allocation0 [shape = 'u32[]', space=smem, size = 0x4, offset = 0x4, fixed_abs, tag = 'smem constant byte address 0x4 - core index']
  #allocation1 [shape = 'u32[144,128]{1,0:T(1,128)}', space=vmem, size = 0x12000, scoped, tag = 'internal scratch']
  %s0 = inlined_call_operand.vmem [shape: bf16[64,16], index: 0, kind: input, shape index: {}]
  %s1 = inlined_call_operand.vmem [shape: bf16[16,128], index: 1, kind: input, shape index: {}]
  %s2 = inlined_call_operand.vmem [shape: bf16[8,16], index: 2, kind: input, shape index: {}]
  %s3 = inlined_call_operand.vmem [shape: bf16[16,8], index: 3, kind: input, shape index: {}]
  %s4 = inlined_call_operand.vmem [shape: f32[1,128], index: 4, kind: input, shape index: {}]
  %s5 = inlined_call_operand.vmem [shape: s8[64,64], index: 5, kind: input, shape index: {}]
  %s6 = inlined_call_operand.vmem [shape: bf16[64,128], index: 6, kind: output, shape index: {}]
  %s7 = sld [smem:[#allocation0]]
  $region34: #{gat_forward.2} parent=0
    _
  %s9 = ssub.s32 1, %s7
  %s10 = scalar_select 0, %s9, %s7
  // Predicated region
  $region2: #{gat_forward.2} parent=0 // pred_check
    _
  $region3: #{gat_forward.2} parent=0 // pred_check_branch
    %12 = sbr.rel (0) target = $region5
  $region4: #{gat_forward.2} parent=0 // pred_region
    _
  $region5: #{gat_forward.2} parent=0 // pred_fallthru
    _
  // Predicated region
  $region6: #{gat_forward.2} parent=0 // pred_check
    _
  $region7: #{gat_forward.2} parent=0 // pred_check_branch
    %14 = sbr.rel (0) target = $region9
  $region8: #{gat_forward.2} parent=0 // pred_region
    _
  $region9: #{gat_forward.2} parent=0 // pred_fallthru
    _
  // Predicated region
  $region10: #{gat_forward.2} parent=0 // pred_check
    _
  $region11: #{gat_forward.2} parent=0 // pred_check_branch
    %16 = sbr.rel (0) target = $region13
  $region12: #{gat_forward.2} parent=0 // pred_region
    _
  $region13: #{gat_forward.2} parent=0 // pred_fallthru
    _
  // Predicated region
  $region14: #{gat_forward.2} parent=0 // pred_check
    _
  $region15: #{gat_forward.2} parent=0 // pred_check_branch
    %18 = sbr.rel (0) target = $region17
  $region16: #{gat_forward.2} parent=0 // pred_region
    _
  $region17: #{gat_forward.2} parent=0 // pred_fallthru
    _
  // Predicated region
  $region18: #{gat_forward.2} parent=0 // pred_check
    _
  $region19: #{gat_forward.2} parent=0 // pred_check_branch
    %20 = sbr.rel (0) target = $region21
  $region20: #{gat_forward.2} parent=0 // pred_region
    _
  $region21: #{gat_forward.2} parent=0 // pred_fallthru
    _
  // Predicated region
  $region22: #{gat_forward.2} parent=0 // pred_check
    _
  $region23: #{gat_forward.2} parent=0 // pred_check_branch
    %22 = sbr.rel (0) target = $region25
  $region24: #{gat_forward.2} parent=0 // pred_region
    _
  $region25: #{gat_forward.2} parent=0 // pred_fallthru
    _
  %v26 = vld [vmem:[%s0] sm:$0xf]
  %v27 = vld [vmem:[%s0 + $0x4] sm:$0xf]
  %v28 = vld [vmem:[%s0 + $0x8] sm:$0xf]
  %v29 = vld [vmem:[%s0 + $0xc] sm:$0xf]
  %v30 = vld [vmem:[%s0 + $0x10] sm:$0xf]
  %v31 = vld [vmem:[%s0 + $0x14] sm:$0xf]
  %v32 = vld [vmem:[%s0 + $0x18] sm:$0xf]
  %v33 = vld [vmem:[%s0 + $0x1c] sm:$0xf]
  %v34 = vld [vmem:[%s1] sm:$0xf]
  %v35 = vld [vmem:[%s1 + $0x4] sm:$0xf]
  %v44 = vunpack.c.l.b16 %v26
  %v45 = vunpack.c.l.b16 %v27
  %v46 = vunpack.c.l.b16 %v28
  %v47 = vunpack.c.l.b16 %v29
  %v48 = vunpack.c.l.b16 %v30
  %v49 = vunpack.c.l.b16 %v31
  %v50 = vunpack.c.l.b16 %v32
  %v51 = vunpack.c.l.b16 %v33
  %v52 = vpack.c.b16 %v45, %v44
  %v53 = vpack.c.b16 %v47, %v46
  %v54 = vpack.c.b16 %v49, %v48
  %v55 = vpack.c.b16 %v51, %v50
  %v58 = vunpack.c.l.b16 %v34
  %v59 = vunpack.c.l.b16 %v35
  %v60 = vpack.c.b16 %v59, %v58
  %vm62 = vcmask 130048
  %v64 = vsel %vm62, %v52, 0
  %v67 = vsel %vm62, %v53, 0
  %v70 = vsel %vm62, %v54, 0
  %v73 = vsel %vm62, %v55, 0
  %75 = vmatprep.subr.bf16.mxu0 0
  %76 = vmatpush1.bf16.msra.mxu0 %v60
  %77 = vmatprep.subr.bf16.mxu0 0
  %78 = vmatpush1.bf16.msra.mxu0 0
  %79 = vmatprep.subr.bf16.mxu0 0
  %80 = vmatpush1.bf16.msra.mxu0 0
  %81 = vmatprep.subr.bf16.mxu0 0
  %82 = vmatpush1.bf16.msra.mxu0 0
  %83 = vmatprep.subr.bf16.mxu0 0
  %84 = vmatpush1.bf16.msra.mxu0 0
  %85 = vmatprep.subr.bf16.mxu0 0
  %86 = vmatpush1.bf16.msra.mxu0 0
  %87 = vmatprep.subr.bf16.mxu0 0
  %88 = vmatpush1.bf16.msra.mxu0 0
  %89 = vmatprep.subr.bf16.mxu0 0
  %90 = vmatpush1.bf16.msra.mxu0 0
  %91 = vmatprep.subr.bf16.mxu0 0
  %92 = vmatpush1.bf16.msra.mxu0 0
  %93 = vmatprep.subr.bf16.mxu0 0
  %94 = vmatpush1.bf16.msra.mxu0 0
  %95 = vmatprep.subr.bf16.mxu0 0
  %96 = vmatpush1.bf16.msra.mxu0 0
  %97 = vmatprep.subr.bf16.mxu0 0
  %98 = vmatpush1.bf16.msra.mxu0 0
  %99 = vmatprep.subr.bf16.mxu0 0
  %100 = vmatpush1.bf16.msra.mxu0 0
  %101 = vmatprep.subr.bf16.mxu0 0
  %102 = vmatpush1.bf16.msra.mxu0 0
  %103 = vmatprep.subr.bf16.mxu0 0
  %104 = vmatpush1.bf16.msra.mxu0 0
  %105 = vmatprep.subr.bf16.mxu0 0
  %106 = vmatpush1.bf16.msra.mxu0 0
  %107 = vmatprep.mubr.bf16.mxu0 0
  %108 = vmatmul.mubr.bf16.gmra.mrb[0].mxu0 %v64
  %v109 = vpop.f32.mrb[0].mxu0
  %v110 = vadd.f32 0.0, %v109
  %v111 = vpop.f32.mrb[0].mxu0
  %v112 = vpop.f32.mrb[0].mxu0
  %v113 = vadd.f32 0.0, %v112
  %v114 = vpop.f32.mrb[0].mxu0
  %115 = vmatprep.mubr.bf16.mxu0 0
  %116 = vmatmul.mubr.bf16.gmra.mrb[0].mxu0 %v67
  %v117 = vpop.f32.mrb[0].mxu0
  %v118 = vadd.f32 0.0, %v117
  %v119 = vpop.f32.mrb[0].mxu0
  %v120 = vpop.f32.mrb[0].mxu0
  %v121 = vadd.f32 0.0, %v120
  %v122 = vpop.f32.mrb[0].mxu0
  %123 = vmatprep.mubr.bf16.mxu0 0
  %124 = vmatmul.mubr.bf16.gmra.mrb[0].mxu0 %v70
  %v125 = vpop.f32.mrb[0].mxu0
  %v126 = vadd.f32 0.0, %v125
  %v127 = vpop.f32.mrb[0].mxu0
  %v128 = vpop.f32.mrb[0].mxu0
  %v129 = vadd.f32 0.0, %v128
  %v130 = vpop.f32.mrb[0].mxu0
  %131 = vmatprep.mubr.bf16.mxu0 0
  %132 = vmatmul.mubr.bf16.gmra.mrb[0].mxu0 %v73
  %v133 = vpop.f32.mrb[0].mxu0
  %v134 = vadd.f32 0.0, %v133
  %v135 = vpop.f32.mrb[0].mxu0
  %v136 = vpop.f32.mrb[0].mxu0
  %v137 = vadd.f32 0.0, %v136
  %v138 = vpop.f32.mrb[0].mxu0
  %139 = vdwg.mxu0
  %v140 = vpack.c.bf16 %v113, %v110
  %v141 = vpack.c.bf16 %v121, %v118
  %v142 = vpack.c.bf16 %v129, %v126
  %v143 = vpack.c.bf16 %v137, %v134
  %v144 = vld [vmem:[%s2] sm:$0xf]
  %v146 = vsel %vm62, %v144, 0
  %148 = vmatprep.subr.bf16.mxu0 0
  %149 = vmatpush1.bf16.xpose.msra.mxu0 %v64
  %150 = vmatprep.subr.bf16.mxu0 0
  %151 = vmatpush1.bf16.xpose.msra.mxu0 %v67
  %152 = vmatprep.subr.bf16.mxu0 0
  %153 = vmatpush1.bf16.xpose.msra.mxu0 %v70
  %154 = vmatprep.subr.bf16.mxu0 0
  %155 = vmatpush1.bf16.xpose.msra.mxu0 %v73
  %156 = vmatprep.subr.bf16.mxu0 0
  %157 = vmatpush1.bf16.xpose.msra.mxu0 0
  %158 = vmatprep.subr.bf16.mxu0 0
  %159 = vmatpush1.bf16.xpose.msra.mxu0 0
  %160 = vmatprep.subr.bf16.mxu0 0
  %161 = vmatpush1.bf16.xpose.msra.mxu0 0
  %162 = vmatprep.subr.bf16.mxu0 0
  %163 = vmatpush1.bf16.xpose.msra.mxu0 0
  %164 = vmatprep.subr.bf16.mxu0 0
  %165 = vmatpush1.bf16.xpose.msra.mxu0 0
  %166 = vmatprep.subr.bf16.mxu0 0
  %167 = vmatpush1.bf16.xpose.msra.mxu0 0
  %168 = vmatprep.subr.bf16.mxu0 0
  %169 = vmatpush1.bf16.xpose.msra.mxu0 0
  %170 = vmatprep.subr.bf16.mxu0 0
  %171 = vmatpush1.bf16.xpose.msra.mxu0 0
  %172 = vmatprep.subr.bf16.mxu0 0
  %173 = vmatpush1.bf16.xpose.msra.mxu0 0
  %174 = vmatprep.subr.bf16.mxu0 0
  %175 = vmatpush1.bf16.xpose.msra.mxu0 0
  %176 = vmatprep.subr.bf16.mxu0 0
  %177 = vmatpush1.bf16.xpose.msra.mxu0 0
  %178 = vmatprep.subr.bf16.mxu0 0
  %179 = vmatpush1.bf16.xpose.msra.mxu0 0
  %180 = vmatprep.mubr.bf16.mxu0 0
  %181 = vmatmul.mubr.bf16.gmra.mrb[0].mxu0 %v146
  %v182 = vpop.f32.mrb[0].mxu0
  %v183 = vadd.f32 0.0, %v182
  %v184 = vpop.f32.mrb[0].mxu0
  %v185 = vpop.f32.mrb[0].mxu0
  %v186 = vpop.f32.mrb[0].mxu0
  %187 = vdwg.mxu0
  %s188 = smul.u32 0, 64
  %s189 = sshra.s32 %s188, 3
  %s190 = sand.u32 %s188, 7
  %s191 = smul.addr %s189, 4
  %s192 = scalar_lea.vmem %s0, %s191
  %v193 = vld [vmem:[%s192] sm:$0xf]
  %v194 = vld [vmem:[%s192 + $0x4] sm:$0xf]
  %v195 = vld [vmem:[%s192 + $0x8] sm:$0xf]
  %v196 = vld [vmem:[%s192 + $0xc] sm:$0xf]
  %v197 = vld [vmem:[%s192 + $0x10] sm:$0xf]
  %v198 = vld [vmem:[%s192 + $0x14] sm:$0xf]
  %v199 = vld [vmem:[%s192 + $0x18] sm:$0xf]
  %v200 = vld [vmem:[%s192 + $0x1c] sm:$0xf]
  %v201 = vld [vmem:[%s3] sm:$0xf]
  %v202 = vld [vmem:[%s3 + $0x4] sm:$0xf]
  %v211 = vunpack.c.l.b16 %v193
  %v212 = vunpack.c.l.b16 %v194
  %v213 = vunpack.c.l.b16 %v195
  %v214 = vunpack.c.l.b16 %v196
  %v215 = vunpack.c.l.b16 %v197
  %v216 = vunpack.c.l.b16 %v198
  %v217 = vunpack.c.l.b16 %v199
  %v218 = vunpack.c.l.b16 %v200
  %v219 = vpack.c.b16 %v212, %v211
  %v220 = vpack.c.b16 %v214, %v213
  %v221 = vpack.c.b16 %v216, %v215
  %v222 = vpack.c.b16 %v218, %v217
  %v225 = vunpack.c.l.b16 %v201
  %v226 = vunpack.c.l.b16 %v202
  %v227 = vpack.c.b16 %v226, %v225
  %v230 = vsel %vm62, %v219, 0
  %v233 = vsel %vm62, %v220, 0
  %v236 = vsel %vm62, %v221, 0
  %v239 = vsel %vm62, %v222, 0
  %241 = vmatprep.subr.bf16.mxu0 0
  %242 = vmatpush1.bf16.msra.mxu0 %v227
  %243 = vmatprep.subr.bf16.mxu0 0
  %244 = vmatpush1.bf16.msra.mxu0 0
  %245 = vmatprep.subr.bf16.mxu0 0
  %246 = vmatpush1.bf16.msra.mxu0 0
  %247 = vmatprep.subr.bf16.mxu0 0
  %248 = vmatpush1.bf16.msra.mxu0 0
  %249 = vmatprep.subr.bf16.mxu0 0
  %250 = vmatpush1.bf16.msra.mxu0 0
  %251 = vmatprep.subr.bf16.mxu0 0
  %252 = vmatpush1.bf16.msra.mxu0 0
  %253 = vmatprep.subr.bf16.mxu0 0
  %254 = vmatpush1.bf16.msra.mxu0 0
  %255 = vmatprep.subr.bf16.mxu0 0
  %256 = vmatpush1.bf16.msra.mxu0 0
  %257 = vmatprep.subr.bf16.mxu0 0
  %258 = vmatpush1.bf16.msra.mxu0 0
  %259 = vmatprep.subr.bf16.mxu0 0
  %260 = vmatpush1.bf16.msra.mxu0 0
  %261 = vmatprep.subr.bf16.mxu0 0
  %262 = vmatpush1.bf16.msra.mxu0 0
  %263 = vmatprep.subr.bf16.mxu0 0
  %264 = vmatpush1.bf16.msra.mxu0 0
  %265 = vmatprep.subr.bf16.mxu0 0
  %266 = vmatpush1.bf16.msra.mxu0 0
  %267 = vmatprep.subr.bf16.mxu0 0
  %268 = vmatpush1.bf16.msra.mxu0 0
  %269 = vmatprep.subr.bf16.mxu0 0
  %270 = vmatpush1.bf16.msra.mxu0 0
  %271 = vmatprep.subr.bf16.mxu0 0
  %272 = vmatpush1.bf16.msra.mxu0 0
  %273 = vmatprep.mubr.bf16.mxu0 0
  %274 = vmatmul.mubr.bf16.gmra.mrb[0].mxu0 %v230
  %v275 = vpop.f32.mrb[0].mxu0
  %v276 = vadd.f32 0.0, %v275
  %v277 = vpop.f32.mrb[0].mxu0
  %v278 = vpop.f32.mrb[0].mxu0
  %v279 = vadd.f32 0.0, %v278
  %v280 = vpop.f32.mrb[0].mxu0
  %281 = vmatprep.mubr.bf16.mxu0 0
  %282 = vmatmul.mubr.bf16.gmra.mrb[0].mxu0 %v233
  %v283 = vpop.f32.mrb[0].mxu0
  %v284 = vadd.f32 0.0, %v283
  %v285 = vpop.f32.mrb[0].mxu0
  %v286 = vpop.f32.mrb[0].mxu0
  %v287 = vadd.f32 0.0, %v286
  %v288 = vpop.f32.mrb[0].mxu0
  %289 = vmatprep.mubr.bf16.mxu0 0
  %290 = vmatmul.mubr.bf16.gmra.mrb[0].mxu0 %v236
  %v291 = vpop.f32.mrb[0].mxu0
  %v292 = vadd.f32 0.0, %v291
  %v293 = vpop.f32.mrb[0].mxu0
  %v294 = vpop.f32.mrb[0].mxu0
  %v295 = vadd.f32 0.0, %v294
  %v296 = vpop.f32.mrb[0].mxu0
  %297 = vmatprep.mubr.bf16.mxu0 0
  %298 = vmatmul.mubr.bf16.gmra.mrb[0].mxu0 %v239
  %v299 = vpop.f32.mrb[0].mxu0
  %v300 = vadd.f32 0.0, %v299
  %v301 = vpop.f32.mrb[0].mxu0
  %v302 = vpop.f32.mrb[0].mxu0
  %v303 = vadd.f32 0.0, %v302
  %v304 = vpop.f32.mrb[0].mxu0
  %305 = vdwg.mxu0
  %v306 = vld [vmem:[%s5] sm:$0xff]
  %v307 = vld [vmem:[%s5 + $0x8] sm:$0xff]
  %vm308 = vnez %v306
  %vm309 = vnez %v307
  %v310 = vlaneseq
  %v311 = vand.u32 %v310, 127
  %313 = vset.pattern.permute.xlu0 0
  %314 = vperm.xlu0 %313, %v276
  %v315 = vpop.permute.xlu0 %314
  %318 = vset.pattern.permute.xlu0 0
  %319 = vperm.xlu0 %318, %v279
  %v320 = vpop.permute.xlu0 %319
  %323 = vset.pattern.permute.xlu0 0
  %324 = vperm.xlu0 %323, %v284
  %v325 = vpop.permute.xlu0 %324
  %328 = vset.pattern.permute.xlu0 0
  %329 = vperm.xlu0 %328, %v287
  %v330 = vpop.permute.xlu0 %329
  %333 = vset.pattern.permute.xlu0 0
  %334 = vperm.xlu0 %333, %v292
  %v335 = vpop.permute.xlu0 %334
  %338 = vset.pattern.permute.xlu0 0
  %339 = vperm.xlu0 %338, %v295
  %v340 = vpop.permute.xlu0 %339
  %343 = vset.pattern.permute.xlu0 0
  %344 = vperm.xlu0 %343, %v300
  %v345 = vpop.permute.xlu0 %344
  %348 = vset.pattern.permute.xlu0 0
  %349 = vperm.xlu0 %348, %v303
  %v350 = vpop.permute.xlu0 %349
  %v352 = vlaneseq
  %v353 = vshrl.u32 %v352, 7
  %v354 = vsub.s32 0, %v353
  %v355 = vrot.slane %v183, %v354
  %v356 = vadd.f32 %v315, %v355
  %v357 = vadd.f32 %v320, %v355
  %v358 = vadd.f32 %v325, %v355
  %v359 = vadd.f32 %v330, %v355
  %v360 = vadd.f32 %v335, %v355
  %v361 = vadd.f32 %v340, %v355
  %v362 = vadd.f32 %v345, %v355
  %v363 = vadd.f32 %v350, %v355
  %v364 = vmul.f32 %v356, 0.2
  %v365 = vmul.f32 %v357, 0.2
  %v366 = vmul.f32 %v358, 0.2
  %v367 = vmul.f32 %v359, 0.2
  %v368 = vmul.f32 %v360, 0.2
  %v369 = vmul.f32 %v361, 0.2
  %v370 = vmul.f32 %v362, 0.2
  %v371 = vmul.f32 %v363, 0.2
  %v372 = vmax.f32 %v356, %v364
  %v373 = vmax.f32 %v357, %v365
  %v374 = vmax.f32 %v358, %v366
  %v375 = vmax.f32 %v359, %v367
  %v376 = vmax.f32 %v360, %v368
  %v377 = vmax.f32 %v361, %v369
  %v378 = vmax.f32 %v362, %v370
  %v379 = vmax.f32 %v363, %v371
  %v380 = vsel %vm308, 16843009, 0
  %v381 = vsel %vm309, 16843009, 0
  %v382 = vunpack.c.0.s8 %v380
  %v383 = vunpack.c.1.s8 %v380
  %v384 = vunpack.c.2.s8 %v380
  %v385 = vunpack.c.3.s8 %v380
  %v386 = vunpack.c.0.s8 %v381
  %v387 = vunpack.c.1.s8 %v381
  %v388 = vunpack.c.2.s8 %v381
  %v389 = vunpack.c.3.s8 %v381
  %v390 = vpack.c.b16 %v382, %v382
  %v391 = vpack.c.b8 %v390, %v390
  %v392 = vpack.c.b16 %v383, %v383
  %v393 = vpack.c.b8 %v392, %v392
  %v394 = vpack.c.b16 %v384, %v384
  %v395 = vpack.c.b8 %v394, %v394
  %v396 = vpack.c.b16 %v385, %v385
  %v397 = vpack.c.b8 %v396, %v396
  %v398 = vpack.c.b16 %v386, %v386
  %v399 = vpack.c.b8 %v398, %v398
  %v400 = vpack.c.b16 %v387, %v387
  %v401 = vpack.c.b8 %v400, %v400
  %v402 = vpack.c.b16 %v388, %v388
  %v403 = vpack.c.b8 %v402, %v402
  %v404 = vpack.c.b16 %v389, %v389
  %v405 = vpack.c.b8 %v404, %v404
  %vm406 = vnez %v391
  %vm407 = vnez %v393
  %vm408 = vnez %v395
  %vm409 = vnez %v397
  %vm410 = vnez %v399
  %vm411 = vnez %v401
  %vm412 = vnez %v403
  %vm413 = vnez %v405
  %v414 = vsel %vm406, 16843009, 0
  %v415 = vsel %vm407, 16843009, 0
  %v416 = vsel %vm408, 16843009, 0
  %v417 = vsel %vm409, 16843009, 0
  %v418 = vsel %vm410, 16843009, 0
  %v419 = vsel %vm411, 16843009, 0
  %v420 = vsel %vm412, 16843009, 0
  %v421 = vsel %vm413, 16843009, 0
  %v422 = vunpack.c.0.s8 %v414
  %v423 = vunpack.c.0.s8 %v415
  %v424 = vunpack.c.0.s8 %v416
  %v425 = vunpack.c.0.s8 %v417
  %v426 = vunpack.c.0.s8 %v418
  %v427 = vunpack.c.0.s8 %v419
  %v428 = vunpack.c.0.s8 %v420
  %v429 = vunpack.c.0.s8 %v421
  %vm430 = vcmp.ne.s32.totalorder %v422, 0
  %vm431 = vcmp.ne.s32.totalorder %v423, 0
  %vm432 = vcmp.ne.s32.totalorder %v424, 0
  %vm433 = vcmp.ne.s32.totalorder %v425, 0
  %vm434 = vcmp.ne.s32.totalorder %v426, 0
  %vm435 = vcmp.ne.s32.totalorder %v427, 0
  %vm436 = vcmp.ne.s32.totalorder %v428, 0
  %vm437 = vcmp.ne.s32.totalorder %v429, 0
  %v438 = vsel %vm430, %v372, -1e+30
  %v439 = vsel %vm431, %v373, -1e+30
  %v440 = vsel %vm432, %v374, -1e+30
  %v441 = vsel %vm433, %v375, -1e+30
  %v442 = vsel %vm434, %v376, -1e+30
  %v443 = vsel %vm435, %v377, -1e+30
  %v444 = vsel %vm436, %v378, -1e+30
  %v445 = vsel %vm437, %v379, -1e+30
  %vm446 = vcmask 523264
  %v447 = vsel %vm446, %v438, -inf
  %448 = vmax.xlane.f32.xlu0 %v447
  %v449 = vpop.xlane.xlu0 %448
  %v450 = vsel %vm446, %v439, -inf
  %451 = vmax.xlane.f32.xlu0 %v450
  %v452 = vpop.xlane.xlu0 %451
  %v453 = vsel %vm446, %v440, -inf
  %454 = vmax.xlane.f32.xlu0 %v453
  %v455 = vpop.xlane.xlu0 %454
  %v456 = vsel %vm446, %v441, -inf
  %457 = vmax.xlane.f32.xlu0 %v456
  %v458 = vpop.xlane.xlu0 %457
  %v459 = vsel %vm446, %v442, -inf
  %460 = vmax.xlane.f32.xlu0 %v459
  %v461 = vpop.xlane.xlu0 %460
  %v462 = vsel %vm446, %v443, -inf
  %463 = vmax.xlane.f32.xlu0 %v462
  %v464 = vpop.xlane.xlu0 %463
  %v465 = vsel %vm446, %v444, -inf
  %466 = vmax.xlane.f32.xlu0 %v465
  %v467 = vpop.xlane.xlu0 %466
  %v468 = vsel %vm446, %v445, -inf
  %469 = vmax.xlane.f32.xlu0 %v468
  %v470 = vpop.xlane.xlu0 %469
  %v471 = vsub.f32 %v438, %v449
  %v472 = vsub.f32 %v439, %v452
  %v473 = vsub.f32 %v440, %v455
  %v474 = vsub.f32 %v441, %v458
  %v475 = vsub.f32 %v442, %v461
  %v476 = vsub.f32 %v443, %v464
  %v477 = vsub.f32 %v444, %v467
  %v478 = vsub.f32 %v445, %v470
  %v479 = vmul.f32 %v471, 1.442695
  %v480 = vpow.pop %v479
  %v481 = vmul.f32 %v472, 1.442695
  %v482 = vpow.pop %v481
  %v483 = vmul.f32 %v473, 1.442695
  %v484 = vpow.pop %v483
  %v485 = vmul.f32 %v474, 1.442695
  %v486 = vpow.pop %v485
  %v487 = vmul.f32 %v475, 1.442695
  %v488 = vpow.pop %v487
  %v489 = vmul.f32 %v476, 1.442695
  %v490 = vpow.pop %v489
  %v491 = vmul.f32 %v477, 1.442695
  %v492 = vpow.pop %v491
  %v493 = vmul.f32 %v478, 1.442695
  %v494 = vpow.pop %v493
  %v495 = vsel %vm446, %v480, 0.0
  %496 = vadd.xlane.f32.xlu0 %v495
  %v497 = vpop.xlane.xlu0 %496
  %v498 = vsel %vm446, %v482, 0.0
  %499 = vadd.xlane.f32.xlu0 %v498
  %v500 = vpop.xlane.xlu0 %499
  %v501 = vsel %vm446, %v484, 0.0
  %502 = vadd.xlane.f32.xlu0 %v501
  %v503 = vpop.xlane.xlu0 %502
  %v504 = vsel %vm446, %v486, 0.0
  %505 = vadd.xlane.f32.xlu0 %v504
  %v506 = vpop.xlane.xlu0 %505
  %v507 = vsel %vm446, %v488, 0.0
  %508 = vadd.xlane.f32.xlu0 %v507
  %v509 = vpop.xlane.xlu0 %508
  %v510 = vsel %vm446, %v490, 0.0
  %511 = vadd.xlane.f32.xlu0 %v510
  %v512 = vpop.xlane.xlu0 %511
  %v513 = vsel %vm446, %v492, 0.0
  %514 = vadd.xlane.f32.xlu0 %v513
  %v515 = vpop.xlane.xlu0 %514
  %v516 = vsel %vm446, %v494, 0.0
  %517 = vadd.xlane.f32.xlu0 %v516
  %v518 = vpop.xlane.xlu0 %517
  %v519 = vrcp.pop %v497
  %v520 = vrcp.pop %v500
  %v521 = vrcp.pop %v503
  %v522 = vrcp.pop %v506
  %v523 = vrcp.pop %v509
  %v524 = vrcp.pop %v512
  %v525 = vrcp.pop %v515
  %v526 = vrcp.pop %v518
  %v527 = vpack.c.bf16 %v482, %v480
  %v528 = vpack.c.bf16 %v486, %v484
  %v529 = vpack.c.bf16 %v490, %v488
  %v530 = vpack.c.bf16 %v494, %v492
  %v532 = vsel %vm446, %v527, 0
  %v535 = vsel %vm446, %v528, 0
  %v538 = vsel %vm446, %v529, 0
  %v541 = vsel %vm446, %v530, 0
  %543 = vmatprep.subr.bf16.mxu0 0
  %544 = vmatpush1.bf16.msra.mxu0 %v140
  %545 = vmatprep.subr.bf16.mxu0 0
  %546 = vmatpush1.bf16.msra.mxu0 %v141
  %547 = vmatprep.subr.bf16.mxu0 0
  %548 = vmatpush1.bf16.msra.mxu0 %v142
  %549 = vmatprep.subr.bf16.mxu0 0
  %550 = vmatpush1.bf16.msra.mxu0 %v143
  %551 = vmatprep.subr.bf16.mxu0 0
  %552 = vmatpush1.bf16.msra.mxu0 0
  %553 = vmatprep.subr.bf16.mxu0 0
  %554 = vmatpush1.bf16.msra.mxu0 0
  %555 = vmatprep.subr.bf16.mxu0 0
  %556 = vmatpush1.bf16.msra.mxu0 0
  %557 = vmatprep.subr.bf16.mxu0 0
  %558 = vmatpush1.bf16.msra.mxu0 0
  %559 = vmatprep.subr.bf16.mxu0 0
  %560 = vmatpush1.bf16.msra.mxu0 0
  %561 = vmatprep.subr.bf16.mxu0 0
  %562 = vmatpush1.bf16.msra.mxu0 0
  %563 = vmatprep.subr.bf16.mxu0 0
  %564 = vmatpush1.bf16.msra.mxu0 0
  %565 = vmatprep.subr.bf16.mxu0 0
  %566 = vmatpush1.bf16.msra.mxu0 0
  %567 = vmatprep.subr.bf16.mxu0 0
  %568 = vmatpush1.bf16.msra.mxu0 0
  %569 = vmatprep.subr.bf16.mxu0 0
  %570 = vmatpush1.bf16.msra.mxu0 0
  %571 = vmatprep.subr.bf16.mxu0 0
  %572 = vmatpush1.bf16.msra.mxu0 0
  %573 = vmatprep.subr.bf16.mxu0 0
  %574 = vmatpush1.bf16.msra.mxu0 0
  %575 = vmatprep.mubr.bf16.mxu0 0
  %576 = vmatmul.mubr.bf16.gmra.mrb[0].mxu0 %v532
  %v577 = vpop.f32.mrb[0].mxu0
  %v578 = vadd.f32 0.0, %v577
  %v579 = vpop.f32.mrb[0].mxu0
  %v580 = vpop.f32.mrb[0].mxu0
  %v581 = vadd.f32 0.0, %v580
  %v582 = vpop.f32.mrb[0].mxu0
  %583 = vmatprep.mubr.bf16.mxu0 0
  %584 = vmatmul.mubr.bf16.gmra.mrb[0].mxu0 %v535
  %v585 = vpop.f32.mrb[0].mxu0
  %v586 = vadd.f32 0.0, %v585
  %v587 = vpop.f32.mrb[0].mxu0
  %v588 = vpop.f32.mrb[0].mxu0
  %v589 = vadd.f32 0.0, %v588
  %v590 = vpop.f32.mrb[0].mxu0
  %591 = vmatprep.mubr.bf16.mxu0 0
  %592 = vmatmul.mubr.bf16.gmra.mrb[0].mxu0 %v538
  %v593 = vpop.f32.mrb[0].mxu0
  %v594 = vadd.f32 0.0, %v593
  %v595 = vpop.f32.mrb[0].mxu0
  %v596 = vpop.f32.mrb[0].mxu0
  %v597 = vadd.f32 0.0, %v596
  %v598 = vpop.f32.mrb[0].mxu0
  %599 = vmatprep.mubr.bf16.mxu0 0
  %600 = vmatmul.mubr.bf16.gmra.mrb[0].mxu0 %v541
  %v601 = vpop.f32.mrb[0].mxu0
  %v602 = vadd.f32 0.0, %v601
  %v603 = vpop.f32.mrb[0].mxu0
  %v604 = vpop.f32.mrb[0].mxu0
  %v605 = vadd.f32 0.0, %v604
  %v606 = vpop.f32.mrb[0].mxu0
  %607 = vdwg.mxu0
  %vm608 = vcmp.ge.s32.totalorder %v311, 0
  %vm609 = vcmp.lt.s32.totalorder %v311, 8
  %vm610 = vmand %vm608, %vm609
  %v611 = vmul.f32 %v578, %v519
  %v612 = vmul.f32 %v581, %v520
  %v613 = vmul.f32 %v586, %v521
  %v614 = vmul.f32 %v589, %v522
  %v615 = vmul.f32 %v594, %v523
  %v616 = vmul.f32 %v597, %v524
  %v617 = vmul.f32 %v602, %v525
  %v618 = vmul.f32 %v605, %v526
  %v619 = vsel %vm610, 1, 0
  %vm620 = vcmp.eq.s32.totalorder %v619, 1
  %v621 = vsel %vm620, %v611, 0.0
  %v622 = vsel %vm620, %v612, 0.0
  %v623 = vsel %vm620, %v613, 0.0
  %v624 = vsel %vm620, %v614, 0.0
  %v625 = vsel %vm620, %v615, 0.0
  %v626 = vsel %vm620, %v616, 0.0
  %v627 = vsel %vm620, %v617, 0.0
  %v628 = vsel %vm620, %v618, 0.0
  %v629 = vadd.f32 %v621, 0.0
  %v630 = vadd.f32 %v622, 0.0
  %v631 = vadd.f32 %v623, 0.0
  %v632 = vadd.f32 %v624, 0.0
  %v633 = vadd.f32 %v625, 0.0
  %v634 = vadd.f32 %v626, 0.0
  %v635 = vadd.f32 %v627, 0.0
  %v636 = vadd.f32 %v628, 0.0
  %637 = vset.pattern.permute.xlu0 1
  %638 = vperm.xlu0 %637, %v276
  %v639 = vpop.permute.xlu0 %638
  %641 = vset.pattern.permute.xlu0 1
  %642 = vperm.xlu0 %641, %v279
  %v643 = vpop.permute.xlu0 %642
  %645 = vset.pattern.permute.xlu0 1
  %646 = vperm.xlu0 %645, %v284
  %v647 = vpop.permute.xlu0 %646
  %649 = vset.pattern.permute.xlu0 1
  %650 = vperm.xlu0 %649, %v287
  %v651 = vpop.permute.xlu0 %650
  %653 = vset.pattern.permute.xlu0 1
  %654 = vperm.xlu0 %653, %v292
  %v655 = vpop.permute.xlu0 %654
  %657 = vset.pattern.permute.xlu0 1
  %658 = vperm.xlu0 %657, %v295
  %v659 = vpop.permute.xlu0 %658
  %661 = vset.pattern.permute.xlu0 1
  %662 = vperm.xlu0 %661, %v300
  %v663 = vpop.permute.xlu0 %662
  %665 = vset.pattern.permute.xlu0 1
  %666 = vperm.xlu0 %665, %v303
  %v667 = vpop.permute.xlu0 %666
  %v669 = vlaneseq
  %v670 = vshrl.u32 %v669, 7
  %v671 = vsub.s32 1, %v670
  %v672 = vrot.slane %v183, %v671
  %v673 = vadd.f32 %v639, %v672
  %v674 = vadd.f32 %v643, %v672
  %v675 = vadd.f32 %v647, %v672
  %v676 = vadd.f32 %v651, %v672
  %v677 = vadd.f32 %v655, %v672
  %v678 = vadd.f32 %v659, %v672
  %v679 = vadd.f32 %v663, %v672
  %v680 = vadd.f32 %v667, %v672
  %v681 = vmul.f32 %v673, 0.2
  %v682 = vmul.f32 %v674, 0.2
  %v683 = vmul.f32 %v675, 0.2
  %v684 = vmul.f32 %v676, 0.2
  %v685 = vmul.f32 %v677, 0.2
  %v686 = vmul.f32 %v678, 0.2
  %v687 = vmul.f32 %v679, 0.2
  %v688 = vmul.f32 %v680, 0.2
  %v689 = vmax.f32 %v673, %v681
  %v690 = vmax.f32 %v674, %v682
  %v691 = vmax.f32 %v675, %v683
  %v692 = vmax.f32 %v676, %v684
  %v693 = vmax.f32 %v677, %v685
  %v694 = vmax.f32 %v678, %v686
  %v695 = vmax.f32 %v679, %v687
  %v696 = vmax.f32 %v680, %v688
  %v697 = vsel %vm430, %v689, -1e+30
  %v698 = vsel %vm431, %v690, -1e+30
  %v699 = vsel %vm432, %v691, -1e+30
  %v700 = vsel %vm433, %v692, -1e+30
  %v701 = vsel %vm434, %v693, -1e+30
  %v702 = vsel %vm435, %v694, -1e+30
  %v703 = vsel %vm436, %v695, -1e+30
  %v704 = vsel %vm437, %v696, -1e+30
  %v705 = vsel %vm446, %v697, -inf
  %706 = vmax.xlane.f32.xlu0 %v705
  %v707 = vpop.xlane.xlu0 %706
  %v708 = vsel %vm446, %v698, -inf
  %709 = vmax.xlane.f32.xlu0 %v708
  %v710 = vpop.xlane.xlu0 %709
  %v711 = vsel %vm446, %v699, -inf
  %712 = vmax.xlane.f32.xlu0 %v711
  %v713 = vpop.xlane.xlu0 %712
  %v714 = vsel %vm446, %v700, -inf
  %715 = vmax.xlane.f32.xlu0 %v714
  %v716 = vpop.xlane.xlu0 %715
  %v717 = vsel %vm446, %v701, -inf
  %718 = vmax.xlane.f32.xlu0 %v717
  %v719 = vpop.xlane.xlu0 %718
  %v720 = vsel %vm446, %v702, -inf
  %721 = vmax.xlane.f32.xlu0 %v720
  %v722 = vpop.xlane.xlu0 %721
  %v723 = vsel %vm446, %v703, -inf
  %724 = vmax.xlane.f32.xlu0 %v723
  %v725 = vpop.xlane.xlu0 %724
  %v726 = vsel %vm446, %v704, -inf
  %727 = vmax.xlane.f32.xlu0 %v726
  %v728 = vpop.xlane.xlu0 %727
  %v729 = vsub.f32 %v697, %v707
  %v730 = vsub.f32 %v698, %v710
  %v731 = vsub.f32 %v699, %v713
  %v732 = vsub.f32 %v700, %v716
  %v733 = vsub.f32 %v701, %v719
  %v734 = vsub.f32 %v702, %v722
  %v735 = vsub.f32 %v703, %v725
  %v736 = vsub.f32 %v704, %v728
  %v737 = vmul.f32 %v729, 1.442695
  %v738 = vpow.pop %v737
  %v739 = vmul.f32 %v730, 1.442695
  %v740 = vpow.pop %v739
  %v741 = vmul.f32 %v731, 1.442695
  %v742 = vpow.pop %v741
  %v743 = vmul.f32 %v732, 1.442695
  %v744 = vpow.pop %v743
  %v745 = vmul.f32 %v733, 1.442695
  %v746 = vpow.pop %v745
  %v747 = vmul.f32 %v734, 1.442695
  %v748 = vpow.pop %v747
  %v749 = vmul.f32 %v735, 1.442695
  %v750 = vpow.pop %v749
  %v751 = vmul.f32 %v736, 1.442695
  %v752 = vpow.pop %v751
  %v753 = vsel %vm446, %v738, 0.0
  %754 = vadd.xlane.f32.xlu0 %v753
  %v755 = vpop.xlane.xlu0 %754
  %v756 = vsel %vm446, %v740, 0.0
  %757 = vadd.xlane.f32.xlu0 %v756
  %v758 = vpop.xlane.xlu0 %757
  %v759 = vsel %vm446, %v742, 0.0
  %760 = vadd.xlane.f32.xlu0 %v759
  %v761 = vpop.xlane.xlu0 %760
  %v762 = vsel %vm446, %v744, 0.0
  %763 = vadd.xlane.f32.xlu0 %v762
  %v764 = vpop.xlane.xlu0 %763
  %v765 = vsel %vm446, %v746, 0.0
  %766 = vadd.xlane.f32.xlu0 %v765
  %v767 = vpop.xlane.xlu0 %766
  %v768 = vsel %vm446, %v748, 0.0
  %769 = vadd.xlane.f32.xlu0 %v768
  %v770 = vpop.xlane.xlu0 %769
  %v771 = vsel %vm446, %v750, 0.0
  %772 = vadd.xlane.f32.xlu0 %v771
  %v773 = vpop.xlane.xlu0 %772
  %v774 = vsel %vm446, %v752, 0.0
  %775 = vadd.xlane.f32.xlu0 %v774
  %v776 = vpop.xlane.xlu0 %775
  %v777 = vrcp.pop %v755
  %v778 = vrcp.pop %v758
  %v779 = vrcp.pop %v761
  %v780 = vrcp.pop %v764
  %v781 = vrcp.pop %v767
  %v782 = vrcp.pop %v770
  %v783 = vrcp.pop %v773
  %v784 = vrcp.pop %v776
  %v785 = vpack.c.bf16 %v740, %v738
  %v786 = vpack.c.bf16 %v744, %v742
  %v787 = vpack.c.bf16 %v748, %v746
  %v788 = vpack.c.bf16 %v752, %v750
  %v790 = vsel %vm446, %v785, 0
  %v793 = vsel %vm446, %v786, 0
  %v796 = vsel %vm446, %v787, 0
  %v799 = vsel %vm446, %v788, 0
  %801 = vmatprep.subr.bf16.mxu0 0
  %802 = vmatpush1.bf16.msra.mxu0 %v140
  %803 = vmatprep.subr.bf16.mxu0 0
  %804 = vmatpush1.bf16.msra.mxu0 %v141
  %805 = vmatprep.subr.bf16.mxu0 0
  %806 = vmatpush1.bf16.msra.mxu0 %v142
  %807 = vmatprep.subr.bf16.mxu0 0
  %808 = vmatpush1.bf16.msra.mxu0 %v143
  %809 = vmatprep.subr.bf16.mxu0 0
  %810 = vmatpush1.bf16.msra.mxu0 0
  %811 = vmatprep.subr.bf16.mxu0 0
  %812 = vmatpush1.bf16.msra.mxu0 0
  %813 = vmatprep.subr.bf16.mxu0 0
  %814 = vmatpush1.bf16.msra.mxu0 0
  %815 = vmatprep.subr.bf16.mxu0 0
  %816 = vmatpush1.bf16.msra.mxu0 0
  %817 = vmatprep.subr.bf16.mxu0 0
  %818 = vmatpush1.bf16.msra.mxu0 0
  %819 = vmatprep.subr.bf16.mxu0 0
  %820 = vmatpush1.bf16.msra.mxu0 0
  %821 = vmatprep.subr.bf16.mxu0 0
  %822 = vmatpush1.bf16.msra.mxu0 0
  %823 = vmatprep.subr.bf16.mxu0 0
  %824 = vmatpush1.bf16.msra.mxu0 0
  %825 = vmatprep.subr.bf16.mxu0 0
  %826 = vmatpush1.bf16.msra.mxu0 0
  %827 = vmatprep.subr.bf16.mxu0 0
  %828 = vmatpush1.bf16.msra.mxu0 0
  %829 = vmatprep.subr.bf16.mxu0 0
  %830 = vmatpush1.bf16.msra.mxu0 0
  %831 = vmatprep.subr.bf16.mxu0 0
  %832 = vmatpush1.bf16.msra.mxu0 0
  %833 = vmatprep.mubr.bf16.mxu0 0
  %834 = vmatmul.mubr.bf16.gmra.mrb[0].mxu0 %v790
  %v835 = vpop.f32.mrb[0].mxu0
  %v836 = vadd.f32 0.0, %v835
  %v837 = vpop.f32.mrb[0].mxu0
  %v838 = vpop.f32.mrb[0].mxu0
  %v839 = vadd.f32 0.0, %v838
  %v840 = vpop.f32.mrb[0].mxu0
  %841 = vmatprep.mubr.bf16.mxu0 0
  %842 = vmatmul.mubr.bf16.gmra.mrb[0].mxu0 %v793
  %v843 = vpop.f32.mrb[0].mxu0
  %v844 = vadd.f32 0.0, %v843
  %v845 = vpop.f32.mrb[0].mxu0
  %v846 = vpop.f32.mrb[0].mxu0
  %v847 = vadd.f32 0.0, %v846
  %v848 = vpop.f32.mrb[0].mxu0
  %849 = vmatprep.mubr.bf16.mxu0 0
  %850 = vmatmul.mubr.bf16.gmra.mrb[0].mxu0 %v796
  %v851 = vpop.f32.mrb[0].mxu0
  %v852 = vadd.f32 0.0, %v851
  %v853 = vpop.f32.mrb[0].mxu0
  %v854 = vpop.f32.mrb[0].mxu0
  %v855 = vadd.f32 0.0, %v854
  %v856 = vpop.f32.mrb[0].mxu0
  %857 = vmatprep.mubr.bf16.mxu0 0
  %858 = vmatmul.mubr.bf16.gmra.mrb[0].mxu0 %v799
  %v859 = vpop.f32.mrb[0].mxu0
  %v860 = vadd.f32 0.0, %v859
  %v861 = vpop.f32.mrb[0].mxu0
  %v862 = vpop.f32.mrb[0].mxu0
  %v863 = vadd.f32 0.0, %v862
  %v864 = vpop.f32.mrb[0].mxu0
  %865 = vdwg.mxu0
  %vm866 = vcmp.ge.s32.totalorder %v311, 8
  %vm867 = vcmp.lt.s32.totalorder %v311, 16
  %vm868 = vmand %vm866, %vm867
  %v869 = vmul.f32 %v836, %v777
  %v870 = vmul.f32 %v839, %v778
  %v871 = vmul.f32 %v844, %v779
  %v872 = vmul.f32 %v847, %v780
  %v873 = vmul.f32 %v852, %v781
  %v874 = vmul.f32 %v855, %v782
  %v875 = vmul.f32 %v860, %v783
  %v876 = vmul.f32 %v863, %v784
  %v877 = vsel %vm868, 1, 0
  %vm878 = vcmp.eq.s32.totalorder %v877, 1
  %v879 = vsel %vm878, %v869, 0.0
  %v880 = vsel %vm878, %v870, 0.0
  %v881 = vsel %vm878, %v871, 0.0
  %v882 = vsel %vm878, %v872, 0.0
  %v883 = vsel %vm878, %v873, 0.0
  %v884 = vsel %vm878, %v874, 0.0
  %v885 = vsel %vm878, %v875, 0.0
  %v886 = vsel %vm878, %v876, 0.0
  %v887 = vadd.f32 %v629, %v879
  %v888 = vadd.f32 %v630, %v880
  %v889 = vadd.f32 %v631, %v881
  %v890 = vadd.f32 %v632, %v882
  %v891 = vadd.f32 %v633, %v883
  %v892 = vadd.f32 %v634, %v884
  %v893 = vadd.f32 %v635, %v885
  %v894 = vadd.f32 %v636, %v886
  %895 = vset.pattern.permute.xlu0 2
  %896 = vperm.xlu0 %895, %v276
  %v897 = vpop.permute.xlu0 %896
  %899 = vset.pattern.permute.xlu0 2
  %900 = vperm.xlu0 %899, %v279
  %v901 = vpop.permute.xlu0 %900
  %903 = vset.pattern.permute.xlu0 2
  %904 = vperm.xlu0 %903, %v284
  %v905 = vpop.permute.xlu0 %904
  %907 = vset.pattern.permute.xlu0 2
  %908 = vperm.xlu0 %907, %v287
  %v909 = vpop.permute.xlu0 %908
  %911 = vset.pattern.permute.xlu0 2
  %912 = vperm.xlu0 %911, %v292
  %v913 = vpop.permute.xlu0 %912
  %915 = vset.pattern.permute.xlu0 2
  %916 = vperm.xlu0 %915, %v295
  %v917 = vpop.permute.xlu0 %916
  %919 = vset.pattern.permute.xlu0 2
  %920 = vperm.xlu0 %919, %v300
  %v921 = vpop.permute.xlu0 %920
  %923 = vset.pattern.permute.xlu0 2
  %924 = vperm.xlu0 %923, %v303
  %v925 = vpop.permute.xlu0 %924
  %v927 = vlaneseq
  %v928 = vshrl.u32 %v927, 7
  %v929 = vsub.s32 2, %v928
  %v930 = vrot.slane %v183, %v929
  %v931 = vadd.f32 %v897, %v930
  %v932 = vadd.f32 %v901, %v930
  %v933 = vadd.f32 %v905, %v930
  %v934 = vadd.f32 %v909, %v930
  %v935 = vadd.f32 %v913, %v930
  %v936 = vadd.f32 %v917, %v930
  %v937 = vadd.f32 %v921, %v930
  %v938 = vadd.f32 %v925, %v930
  %v939 = vmul.f32 %v931, 0.2
  %v940 = vmul.f32 %v932, 0.2
  %v941 = vmul.f32 %v933, 0.2
  %v942 = vmul.f32 %v934, 0.2
  %v943 = vmul.f32 %v935, 0.2
  %v944 = vmul.f32 %v936, 0.2
  %v945 = vmul.f32 %v937, 0.2
  %v946 = vmul.f32 %v938, 0.2
  %v947 = vmax.f32 %v931, %v939
  %v948 = vmax.f32 %v932, %v940
  %v949 = vmax.f32 %v933, %v941
  %v950 = vmax.f32 %v934, %v942
  %v951 = vmax.f32 %v935, %v943
  %v952 = vmax.f32 %v936, %v944
  %v953 = vmax.f32 %v937, %v945
  %v954 = vmax.f32 %v938, %v946
  %v955 = vsel %vm430, %v947, -1e+30
  %v956 = vsel %vm431, %v948, -1e+30
  %v957 = vsel %vm432, %v949, -1e+30
  %v958 = vsel %vm433, %v950, -1e+30
  %v959 = vsel %vm434, %v951, -1e+30
  %v960 = vsel %vm435, %v952, -1e+30
  %v961 = vsel %vm436, %v953, -1e+30
  %v962 = vsel %vm437, %v954, -1e+30
  %v963 = vsel %vm446, %v955, -inf
  %964 = vmax.xlane.f32.xlu0 %v963
  %v965 = vpop.xlane.xlu0 %964
  %v966 = vsel %vm446, %v956, -inf
  %967 = vmax.xlane.f32.xlu0 %v966
  %v968 = vpop.xlane.xlu0 %967
  %v969 = vsel %vm446, %v957, -inf
  %970 = vmax.xlane.f32.xlu0 %v969
  %v971 = vpop.xlane.xlu0 %970
  %v972 = vsel %vm446, %v958, -inf
  %973 = vmax.xlane.f32.xlu0 %v972
  %v974 = vpop.xlane.xlu0 %973
  %v975 = vsel %vm446, %v959, -inf
  %976 = vmax.xlane.f32.xlu0 %v975
  %v977 = vpop.xlane.xlu0 %976
  %v978 = vsel %vm446, %v960, -inf
  %979 = vmax.xlane.f32.xlu0 %v978
  %v980 = vpop.xlane.xlu0 %979
  %v981 = vsel %vm446, %v961, -inf
  %982 = vmax.xlane.f32.xlu0 %v981
  %v983 = vpop.xlane.xlu0 %982
  %v984 = vsel %vm446, %v962, -inf
  %985 = vmax.xlane.f32.xlu0 %v984
  %v986 = vpop.xlane.xlu0 %985
  %v987 = vsub.f32 %v955, %v965
  %v988 = vsub.f32 %v956, %v968
  %v989 = vsub.f32 %v957, %v971
  %v990 = vsub.f32 %v958, %v974
  %v991 = vsub.f32 %v959, %v977
  %v992 = vsub.f32 %v960, %v980
  %v993 = vsub.f32 %v961, %v983
  %v994 = vsub.f32 %v962, %v986
  %v995 = vmul.f32 %v987, 1.442695
  %v996 = vpow.pop %v995
  %v997 = vmul.f32 %v988, 1.442695
  %v998 = vpow.pop %v997
  %v999 = vmul.f32 %v989, 1.442695
  %v1000 = vpow.pop %v999
  %v1001 = vmul.f32 %v990, 1.442695
  %v1002 = vpow.pop %v1001
  %v1003 = vmul.f32 %v991, 1.442695
  %v1004 = vpow.pop %v1003
  %v1005 = vmul.f32 %v992, 1.442695
  %v1006 = vpow.pop %v1005
  %v1007 = vmul.f32 %v993, 1.442695
  %v1008 = vpow.pop %v1007
  %v1009 = vmul.f32 %v994, 1.442695
  %v1010 = vpow.pop %v1009
  %v1011 = vsel %vm446, %v996, 0.0
  %1012 = vadd.xlane.f32.xlu0 %v1011
  %v1013 = vpop.xlane.xlu0 %1012
  %v1014 = vsel %vm446, %v998, 0.0
  %1015 = vadd.xlane.f32.xlu0 %v1014
  %v1016 = vpop.xlane.xlu0 %1015
  %v1017 = vsel %vm446, %v1000, 0.0
  %1018 = vadd.xlane.f32.xlu0 %v1017
  %v1019 = vpop.xlane.xlu0 %1018
  %v1020 = vsel %vm446, %v1002, 0.0
  %1021 = vadd.xlane.f32.xlu0 %v1020
  %v1022 = vpop.xlane.xlu0 %1021
  %v1023 = vsel %vm446, %v1004, 0.0
  %1024 = vadd.xlane.f32.xlu0 %v1023
  %v1025 = vpop.xlane.xlu0 %1024
  %v1026 = vsel %vm446, %v1006, 0.0
  %1027 = vadd.xlane.f32.xlu0 %v1026
  %v1028 = vpop.xlane.xlu0 %1027
  %v1029 = vsel %vm446, %v1008, 0.0
  %1030 = vadd.xlane.f32.xlu0 %v1029
  %v1031 = vpop.xlane.xlu0 %1030
  %v1032 = vsel %vm446, %v1010, 0.0
  %1033 = vadd.xlane.f32.xlu0 %v1032
  %v1034 = vpop.xlane.xlu0 %1033
  %v1035 = vrcp.pop %v1013
  %v1036 = vrcp.pop %v1016
  %v1037 = vrcp.pop %v1019
  %v1038 = vrcp.pop %v1022
  %v1039 = vrcp.pop %v1025
  %v1040 = vrcp.pop %v1028
  %v1041 = vrcp.pop %v1031
  %v1042 = vrcp.pop %v1034
  %v1043 = vpack.c.bf16 %v998, %v996
  %v1044 = vpack.c.bf16 %v1002, %v1000
  %v1045 = vpack.c.bf16 %v1006, %v1004
  %v1046 = vpack.c.bf16 %v1010, %v1008
  %v1048 = vsel %vm446, %v1043, 0
  %v1051 = vsel %vm446, %v1044, 0
  %v1054 = vsel %vm446, %v1045, 0
  %v1057 = vsel %vm446, %v1046, 0
  %1059 = vmatprep.subr.bf16.mxu0 0
  %1060 = vmatpush1.bf16.msra.mxu0 %v140
  %1061 = vmatprep.subr.bf16.mxu0 0
  %1062 = vmatpush1.bf16.msra.mxu0 %v141
  %1063 = vmatprep.subr.bf16.mxu0 0
  %1064 = vmatpush1.bf16.msra.mxu0 %v142
  %1065 = vmatprep.subr.bf16.mxu0 0
  %1066 = vmatpush1.bf16.msra.mxu0 %v143
  %1067 = vmatprep.subr.bf16.mxu0 0
  %1068 = vmatpush1.bf16.msra.mxu0 0
  %1069 = vmatprep.subr.bf16.mxu0 0
  %1070 = vmatpush1.bf16.msra.mxu0 0
  %1071 = vmatprep.subr.bf16.mxu0 0
  %1072 = vmatpush1.bf16.msra.mxu0 0
  %1073 = vmatprep.subr.bf16.mxu0 0
  %1074 = vmatpush1.bf16.msra.mxu0 0
  %1075 = vmatprep.subr.bf16.mxu0 0
  %1076 = vmatpush1.bf16.msra.mxu0 0
  %1077 = vmatprep.subr.bf16.mxu0 0
  %1078 = vmatpush1.bf16.msra.mxu0 0
  %1079 = vmatprep.subr.bf16.mxu0 0
  %1080 = vmatpush1.bf16.msra.mxu0 0
  %1081 = vmatprep.subr.bf16.mxu0 0
  %1082 = vmatpush1.bf16.msra.mxu0 0
  %1083 = vmatprep.subr.bf16.mxu0 0
  %1084 = vmatpush1.bf16.msra.mxu0 0
  %1085 = vmatprep.subr.bf16.mxu0 0
  %1086 = vmatpush1.bf16.msra.mxu0 0
  %1087 = vmatprep.subr.bf16.mxu0 0
  %1088 = vmatpush1.bf16.msra.mxu0 0
  %1089 = vmatprep.subr.bf16.mxu0 0
  %1090 = vmatpush1.bf16.msra.mxu0 0
  %1091 = vmatprep.mubr.bf16.mxu0 0
  %1092 = vmatmul.mubr.bf16.gmra.mrb[0].mxu0 %v1048
  %v1093 = vpop.f32.mrb[0].mxu0
  %v1094 = vadd.f32 0.0, %v1093
  %v1095 = vpop.f32.mrb[0].mxu0
  %v1096 = vpop.f32.mrb[0].mxu0
  %v1097 = vadd.f32 0.0, %v1096
  %v1098 = vpop.f32.mrb[0].mxu0
  %1099 = vmatprep.mubr.bf16.mxu0 0
  %1100 = vmatmul.mubr.bf16.gmra.mrb[0].mxu0 %v1051
  %v1101 = vpop.f32.mrb[0].mxu0
  %v1102 = vadd.f32 0.0, %v1101
  %v1103 = vpop.f32.mrb[0].mxu0
  %v1104 = vpop.f32.mrb[0].mxu0
  %v1105 = vadd.f32 0.0, %v1104
  %v1106 = vpop.f32.mrb[0].mxu0
  %1107 = vmatprep.mubr.bf16.mxu0 0
  %1108 = vmatmul.mubr.bf16.gmra.mrb[0].mxu0 %v1054
  %v1109 = vpop.f32.mrb[0].mxu0
  %v1110 = vadd.f32 0.0, %v1109
  %v1111 = vpop.f32.mrb[0].mxu0
  %v1112 = vpop.f32.mrb[0].mxu0
  %v1113 = vadd.f32 0.0, %v1112
  %v1114 = vpop.f32.mrb[0].mxu0
  %1115 = vmatprep.mubr.bf16.mxu0 0
  %1116 = vmatmul.mubr.bf16.gmra.mrb[0].mxu0 %v1057
  %v1117 = vpop.f32.mrb[0].mxu0
  %v1118 = vadd.f32 0.0, %v1117
  %v1119 = vpop.f32.mrb[0].mxu0
  %v1120 = vpop.f32.mrb[0].mxu0
  %v1121 = vadd.f32 0.0, %v1120
  %v1122 = vpop.f32.mrb[0].mxu0
  %1123 = vdwg.mxu0
  %vm1124 = vcmp.ge.s32.totalorder %v311, 16
  %vm1125 = vcmp.lt.s32.totalorder %v311, 24
  %vm1126 = vmand %vm1124, %vm1125
  %v1127 = vmul.f32 %v1094, %v1035
  %v1128 = vmul.f32 %v1097, %v1036
  %v1129 = vmul.f32 %v1102, %v1037
  %v1130 = vmul.f32 %v1105, %v1038
  %v1131 = vmul.f32 %v1110, %v1039
  %v1132 = vmul.f32 %v1113, %v1040
  %v1133 = vmul.f32 %v1118, %v1041
  %v1134 = vmul.f32 %v1121, %v1042
  %v1135 = vsel %vm1126, 1, 0
  %vm1136 = vcmp.eq.s32.totalorder %v1135, 1
  %v1137 = vsel %vm1136, %v1127, 0.0
  %v1138 = vsel %vm1136, %v1128, 0.0
  %v1139 = vsel %vm1136, %v1129, 0.0
  %v1140 = vsel %vm1136, %v1130, 0.0
  %v1141 = vsel %vm1136, %v1131, 0.0
  %v1142 = vsel %vm1136, %v1132, 0.0
  %v1143 = vsel %vm1136, %v1133, 0.0
  %v1144 = vsel %vm1136, %v1134, 0.0
  %v1145 = vadd.f32 %v887, %v1137
  %v1146 = vadd.f32 %v888, %v1138
  %v1147 = vadd.f32 %v889, %v1139
  %v1148 = vadd.f32 %v890, %v1140
  %v1149 = vadd.f32 %v891, %v1141
  %v1150 = vadd.f32 %v892, %v1142
  %v1151 = vadd.f32 %v893, %v1143
  %v1152 = vadd.f32 %v894, %v1144
  %1153 = vset.pattern.permute.xlu0 3
  %1154 = vperm.xlu0 %1153, %v276
  %v1155 = vpop.permute.xlu0 %1154
  %1157 = vset.pattern.permute.xlu0 3
  %1158 = vperm.xlu0 %1157, %v279
  %v1159 = vpop.permute.xlu0 %1158
  %1161 = vset.pattern.permute.xlu0 3
  %1162 = vperm.xlu0 %1161, %v284
  %v1163 = vpop.permute.xlu0 %1162
  %1165 = vset.pattern.permute.xlu0 3
  %1166 = vperm.xlu0 %1165, %v287
  %v1167 = vpop.permute.xlu0 %1166
  %1169 = vset.pattern.permute.xlu0 3
  %1170 = vperm.xlu0 %1169, %v292
  %v1171 = vpop.permute.xlu0 %1170
  %1173 = vset.pattern.permute.xlu0 3
  %1174 = vperm.xlu0 %1173, %v295
  %v1175 = vpop.permute.xlu0 %1174
  %1177 = vset.pattern.permute.xlu0 3
  %1178 = vperm.xlu0 %1177, %v300
  %v1179 = vpop.permute.xlu0 %1178
  %1181 = vset.pattern.permute.xlu0 3
  %1182 = vperm.xlu0 %1181, %v303
  %v1183 = vpop.permute.xlu0 %1182
  %v1185 = vlaneseq
  %v1186 = vshrl.u32 %v1185, 7
  %v1187 = vsub.s32 3, %v1186
  %v1188 = vrot.slane %v183, %v1187
  %v1189 = vadd.f32 %v1155, %v1188
  %v1190 = vadd.f32 %v1159, %v1188
  %v1191 = vadd.f32 %v1163, %v1188
  %v1192 = vadd.f32 %v1167, %v1188
  %v1193 = vadd.f32 %v1171, %v1188
  %v1194 = vadd.f32 %v1175, %v1188
  %v1195 = vadd.f32 %v1179, %v1188
  %v1196 = vadd.f32 %v1183, %v1188
  %v1197 = vmul.f32 %v1189, 0.2
  %v1198 = vmul.f32 %v1190, 0.2
  %v1199 = vmul.f32 %v1191, 0.2
  %v1200 = vmul.f32 %v1192, 0.2
  %v1201 = vmul.f32 %v1193, 0.2
  %v1202 = vmul.f32 %v1194, 0.2
  %v1203 = vmul.f32 %v1195, 0.2
  %v1204 = vmul.f32 %v1196, 0.2
  %v1205 = vmax.f32 %v1189, %v1197
  %v1206 = vmax.f32 %v1190, %v1198
  %v1207 = vmax.f32 %v1191, %v1199
  %v1208 = vmax.f32 %v1192, %v1200
  %v1209 = vmax.f32 %v1193, %v1201
  %v1210 = vmax.f32 %v1194, %v1202
  %v1211 = vmax.f32 %v1195, %v1203
  %v1212 = vmax.f32 %v1196, %v1204
  %v1213 = vsel %vm430, %v1205, -1e+30
  %v1214 = vsel %vm431, %v1206, -1e+30
  %v1215 = vsel %vm432, %v1207, -1e+30
  %v1216 = vsel %vm433, %v1208, -1e+30
  %v1217 = vsel %vm434, %v1209, -1e+30
  %v1218 = vsel %vm435, %v1210, -1e+30
  %v1219 = vsel %vm436, %v1211, -1e+30
  %v1220 = vsel %vm437, %v1212, -1e+30
  %v1221 = vsel %vm446, %v1213, -inf
  %1222 = vmax.xlane.f32.xlu0 %v1221
  %v1223 = vpop.xlane.xlu0 %1222
  %v1224 = vsel %vm446, %v1214, -inf
  %1225 = vmax.xlane.f32.xlu0 %v1224
  %v1226 = vpop.xlane.xlu0 %1225
  %v1227 = vsel %vm446, %v1215, -inf
  %1228 = vmax.xlane.f32.xlu0 %v1227
  %v1229 = vpop.xlane.xlu0 %1228
  %v1230 = vsel %vm446, %v1216, -inf
  %1231 = vmax.xlane.f32.xlu0 %v1230
  %v1232 = vpop.xlane.xlu0 %1231
  %v1233 = vsel %vm446, %v1217, -inf
  %1234 = vmax.xlane.f32.xlu0 %v1233
  %v1235 = vpop.xlane.xlu0 %1234
  %v1236 = vsel %vm446, %v1218, -inf
  %1237 = vmax.xlane.f32.xlu0 %v1236
  %v1238 = vpop.xlane.xlu0 %1237
  %v1239 = vsel %vm446, %v1219, -inf
  %1240 = vmax.xlane.f32.xlu0 %v1239
  %v1241 = vpop.xlane.xlu0 %1240
  %v1242 = vsel %vm446, %v1220, -inf
  %1243 = vmax.xlane.f32.xlu0 %v1242
  %v1244 = vpop.xlane.xlu0 %1243
  %v1245 = vsub.f32 %v1213, %v1223
  %v1246 = vsub.f32 %v1214, %v1226
  %v1247 = vsub.f32 %v1215, %v1229
  %v1248 = vsub.f32 %v1216, %v1232
  %v1249 = vsub.f32 %v1217, %v1235
  %v1250 = vsub.f32 %v1218, %v1238
  %v1251 = vsub.f32 %v1219, %v1241
  %v1252 = vsub.f32 %v1220, %v1244
  %v1253 = vmul.f32 %v1245, 1.442695
  %v1254 = vpow.pop %v1253
  %v1255 = vmul.f32 %v1246, 1.442695
  %v1256 = vpow.pop %v1255
  %v1257 = vmul.f32 %v1247, 1.442695
  %v1258 = vpow.pop %v1257
  %v1259 = vmul.f32 %v1248, 1.442695
  %v1260 = vpow.pop %v1259
  %v1261 = vmul.f32 %v1249, 1.442695
  %v1262 = vpow.pop %v1261
  %v1263 = vmul.f32 %v1250, 1.442695
  %v1264 = vpow.pop %v1263
  %v1265 = vmul.f32 %v1251, 1.442695
  %v1266 = vpow.pop %v1265
  %v1267 = vmul.f32 %v1252, 1.442695
  %v1268 = vpow.pop %v1267
  %v1269 = vsel %vm446, %v1254, 0.0
  %1270 = vadd.xlane.f32.xlu0 %v1269
  %v1271 = vpop.xlane.xlu0 %1270
  %v1272 = vsel %vm446, %v1256, 0.0
  %1273 = vadd.xlane.f32.xlu0 %v1272
  %v1274 = vpop.xlane.xlu0 %1273
  %v1275 = vsel %vm446, %v1258, 0.0
  %1276 = vadd.xlane.f32.xlu0 %v1275
  %v1277 = vpop.xlane.xlu0 %1276
  %v1278 = vsel %vm446, %v1260, 0.0
  %1279 = vadd.xlane.f32.xlu0 %v1278
  %v1280 = vpop.xlane.xlu0 %1279
  %v1281 = vsel %vm446, %v1262, 0.0
  %1282 = vadd.xlane.f32.xlu0 %v1281
  %v1283 = vpop.xlane.xlu0 %1282
  %v1284 = vsel %vm446, %v1264, 0.0
  %1285 = vadd.xlane.f32.xlu0 %v1284
  %v1286 = vpop.xlane.xlu0 %1285
  %v1287 = vsel %vm446, %v1266, 0.0
  %1288 = vadd.xlane.f32.xlu0 %v1287
  %v1289 = vpop.xlane.xlu0 %1288
  %v1290 = vsel %vm446, %v1268, 0.0
  %1291 = vadd.xlane.f32.xlu0 %v1290
  %v1292 = vpop.xlane.xlu0 %1291
  %v1293 = vrcp.pop %v1271
  %v1294 = vrcp.pop %v1274
  %v1295 = vrcp.pop %v1277
  %v1296 = vrcp.pop %v1280
  %v1297 = vrcp.pop %v1283
  %v1298 = vrcp.pop %v1286
  %v1299 = vrcp.pop %v1289
  %v1300 = vrcp.pop %v1292
  %v1301 = vpack.c.bf16 %v1256, %v1254
  %v1302 = vpack.c.bf16 %v1260, %v1258
  %v1303 = vpack.c.bf16 %v1264, %v1262
  %v1304 = vpack.c.bf16 %v1268, %v1266
  %v1306 = vsel %vm446, %v1301, 0
  %v1309 = vsel %vm446, %v1302, 0
  %v1312 = vsel %vm446, %v1303, 0
  %v1315 = vsel %vm446, %v1304, 0
  %1317 = vmatprep.subr.bf16.mxu0 0
  %1318 = vmatpush1.bf16.msra.mxu0 %v140
  %1319 = vmatprep.subr.bf16.mxu0 0
  %1320 = vmatpush1.bf16.msra.mxu0 %v141
  %1321 = vmatprep.subr.bf16.mxu0 0
  %1322 = vmatpush1.bf16.msra.mxu0 %v142
  %1323 = vmatprep.subr.bf16.mxu0 0
  %1324 = vmatpush1.bf16.msra.mxu0 %v143
  %1325 = vmatprep.subr.bf16.mxu0 0
  %1326 = vmatpush1.bf16.msra.mxu0 0
  %1327 = vmatprep.subr.bf16.mxu0 0
  %1328 = vmatpush1.bf16.msra.mxu0 0
  %1329 = vmatprep.subr.bf16.mxu0 0
  %1330 = vmatpush1.bf16.msra.mxu0 0
  %1331 = vmatprep.subr.bf16.mxu0 0
  %1332 = vmatpush1.bf16.msra.mxu0 0
  %1333 = vmatprep.subr.bf16.mxu0 0
  %1334 = vmatpush1.bf16.msra.mxu0 0
  %1335 = vmatprep.subr.bf16.mxu0 0
  %1336 = vmatpush1.bf16.msra.mxu0 0
  %1337 = vmatprep.subr.bf16.mxu0 0
  %1338 = vmatpush1.bf16.msra.mxu0 0
  %1339 = vmatprep.subr.bf16.mxu0 0
  %1340 = vmatpush1.bf16.msra.mxu0 0
  %1341 = vmatprep.subr.bf16.mxu0 0
  %1342 = vmatpush1.bf16.msra.mxu0 0
  %1343 = vmatprep.subr.bf16.mxu0 0
  %1344 = vmatpush1.bf16.msra.mxu0 0
  %1345 = vmatprep.subr.bf16.mxu0 0
  %1346 = vmatpush1.bf16.msra.mxu0 0
  %1347 = vmatprep.subr.bf16.mxu0 0
  %1348 = vmatpush1.bf16.msra.mxu0 0
  %1349 = vmatprep.mubr.bf16.mxu0 0
  %1350 = vmatmul.mubr.bf16.gmra.mrb[0].mxu0 %v1306
  %v1351 = vpop.f32.mrb[0].mxu0
  %v1352 = vadd.f32 0.0, %v1351
  %v1353 = vpop.f32.mrb[0].mxu0
  %v1354 = vpop.f32.mrb[0].mxu0
  %v1355 = vadd.f32 0.0, %v1354
  %v1356 = vpop.f32.mrb[0].mxu0
  %1357 = vmatprep.mubr.bf16.mxu0 0
  %1358 = vmatmul.mubr.bf16.gmra.mrb[0].mxu0 %v1309
  %v1359 = vpop.f32.mrb[0].mxu0
  %v1360 = vadd.f32 0.0, %v1359
  %v1361 = vpop.f32.mrb[0].mxu0
  %v1362 = vpop.f32.mrb[0].mxu0
  %v1363 = vadd.f32 0.0, %v1362
  %v1364 = vpop.f32.mrb[0].mxu0
  %1365 = vmatprep.mubr.bf16.mxu0 0
  %1366 = vmatmul.mubr.bf16.gmra.mrb[0].mxu0 %v1312
  %v1367 = vpop.f32.mrb[0].mxu0
  %v1368 = vadd.f32 0.0, %v1367
  %v1369 = vpop.f32.mrb[0].mxu0
  %v1370 = vpop.f32.mrb[0].mxu0
  %v1371 = vadd.f32 0.0, %v1370
  %v1372 = vpop.f32.mrb[0].mxu0
  %1373 = vmatprep.mubr.bf16.mxu0 0
  %1374 = vmatmul.mubr.bf16.gmra.mrb[0].mxu0 %v1315
  %v1375 = vpop.f32.mrb[0].mxu0
  %v1376 = vadd.f32 0.0, %v1375
  %v1377 = vpop.f32.mrb[0].mxu0
  %v1378 = vpop.f32.mrb[0].mxu0
  %v1379 = vadd.f32 0.0, %v1378
  %v1380 = vpop.f32.mrb[0].mxu0
  %1381 = vdwg.mxu0
  %vm1382 = vcmp.ge.s32.totalorder %v311, 24
  %vm1383 = vcmp.lt.s32.totalorder %v311, 32
  %vm1384 = vmand %vm1382, %vm1383
  %v1385 = vmul.f32 %v1352, %v1293
  %v1386 = vmul.f32 %v1355, %v1294
  %v1387 = vmul.f32 %v1360, %v1295
  %v1388 = vmul.f32 %v1363, %v1296
  %v1389 = vmul.f32 %v1368, %v1297
  %v1390 = vmul.f32 %v1371, %v1298
  %v1391 = vmul.f32 %v1376, %v1299
  %v1392 = vmul.f32 %v1379, %v1300
  %v1393 = vsel %vm1384, 1, 0
  %vm1394 = vcmp.eq.s32.totalorder %v1393, 1
  %v1395 = vsel %vm1394, %v1385, 0.0
  %v1396 = vsel %vm1394, %v1386, 0.0
  %v1397 = vsel %vm1394, %v1387, 0.0
  %v1398 = vsel %vm1394, %v1388, 0.0
  %v1399 = vsel %vm1394, %v1389, 0.0
  %v1400 = vsel %vm1394, %v1390, 0.0
  %v1401 = vsel %vm1394, %v1391, 0.0
  %v1402 = vsel %vm1394, %v1392, 0.0
  %v1403 = vadd.f32 %v1145, %v1395
  %v1404 = vadd.f32 %v1146, %v1396
  %v1405 = vadd.f32 %v1147, %v1397
  %v1406 = vadd.f32 %v1148, %v1398
  %v1407 = vadd.f32 %v1149, %v1399
  %v1408 = vadd.f32 %v1150, %v1400
  %v1409 = vadd.f32 %v1151, %v1401
  %v1410 = vadd.f32 %v1152, %v1402
  %1411 = vset.pattern.permute.xlu0 4
  %1412 = vperm.xlu0 %1411, %v276
  %v1413 = vpop.permute.xlu0 %1412
  %1415 = vset.pattern.permute.xlu0 4
  %1416 = vperm.xlu0 %1415, %v279
  %v1417 = vpop.permute.xlu0 %1416
  %1419 = vset.pattern.permute.xlu0 4
  %1420 = vperm.xlu0 %1419, %v284
  %v1421 = vpop.permute.xlu0 %1420
  %1423 = vset.pattern.permute.xlu0 4
  %1424 = vperm.xlu0 %1423, %v287
  %v1425 = vpop.permute.xlu0 %1424
  %1427 = vset.pattern.permute.xlu0 4
  %1428 = vperm.xlu0 %1427, %v292
  %v1429 = vpop.permute.xlu0 %1428
  %1431 = vset.pattern.permute.xlu0 4
  %1432 = vperm.xlu0 %1431, %v295
  %v1433 = vpop.permute.xlu0 %1432
  %1435 = vset.pattern.permute.xlu0 4
  %1436 = vperm.xlu0 %1435, %v300
  %v1437 = vpop.permute.xlu0 %1436
  %1439 = vset.pattern.permute.xlu0 4
  %1440 = vperm.xlu0 %1439, %v303
  %v1441 = vpop.permute.xlu0 %1440
  %v1443 = vlaneseq
  %v1444 = vshrl.u32 %v1443, 7
  %v1445 = vsub.s32 4, %v1444
  %v1446 = vrot.slane %v183, %v1445
  %v1447 = vadd.f32 %v1413, %v1446
  %v1448 = vadd.f32 %v1417, %v1446
  %v1449 = vadd.f32 %v1421, %v1446
  %v1450 = vadd.f32 %v1425, %v1446
  %v1451 = vadd.f32 %v1429, %v1446
  %v1452 = vadd.f32 %v1433, %v1446
  %v1453 = vadd.f32 %v1437, %v1446
  %v1454 = vadd.f32 %v1441, %v1446
  %v1455 = vmul.f32 %v1447, 0.2
  %v1456 = vmul.f32 %v1448, 0.2
  %v1457 = vmul.f32 %v1449, 0.2
  %v1458 = vmul.f32 %v1450, 0.2
  %v1459 = vmul.f32 %v1451, 0.2
  %v1460 = vmul.f32 %v1452, 0.2
  %v1461 = vmul.f32 %v1453, 0.2
  %v1462 = vmul.f32 %v1454, 0.2
  %v1463 = vmax.f32 %v1447, %v1455
  %v1464 = vmax.f32 %v1448, %v1456
  %v1465 = vmax.f32 %v1449, %v1457
  %v1466 = vmax.f32 %v1450, %v1458
  %v1467 = vmax.f32 %v1451, %v1459
  %v1468 = vmax.f32 %v1452, %v1460
  %v1469 = vmax.f32 %v1453, %v1461
  %v1470 = vmax.f32 %v1454, %v1462
  %v1471 = vsel %vm430, %v1463, -1e+30
  %v1472 = vsel %vm431, %v1464, -1e+30
  %v1473 = vsel %vm432, %v1465, -1e+30
  %v1474 = vsel %vm433, %v1466, -1e+30
  %v1475 = vsel %vm434, %v1467, -1e+30
  %v1476 = vsel %vm435, %v1468, -1e+30
  %v1477 = vsel %vm436, %v1469, -1e+30
  %v1478 = vsel %vm437, %v1470, -1e+30
  %v1479 = vsel %vm446, %v1471, -inf
  %1480 = vmax.xlane.f32.xlu0 %v1479
  %v1481 = vpop.xlane.xlu0 %1480
  %v1482 = vsel %vm446, %v1472, -inf
  %1483 = vmax.xlane.f32.xlu0 %v1482
  %v1484 = vpop.xlane.xlu0 %1483
  %v1485 = vsel %vm446, %v1473, -inf
  %1486 = vmax.xlane.f32.xlu0 %v1485
  %v1487 = vpop.xlane.xlu0 %1486
  %v1488 = vsel %vm446, %v1474, -inf
  %1489 = vmax.xlane.f32.xlu0 %v1488
  %v1490 = vpop.xlane.xlu0 %1489
  %v1491 = vsel %vm446, %v1475, -inf
  %1492 = vmax.xlane.f32.xlu0 %v1491
  %v1493 = vpop.xlane.xlu0 %1492
  %v1494 = vsel %vm446, %v1476, -inf
  %1495 = vmax.xlane.f32.xlu0 %v1494
  %v1496 = vpop.xlane.xlu0 %1495
  %v1497 = vsel %vm446, %v1477, -inf
  %1498 = vmax.xlane.f32.xlu0 %v1497
  %v1499 = vpop.xlane.xlu0 %1498
  %v1500 = vsel %vm446, %v1478, -inf
  %1501 = vmax.xlane.f32.xlu0 %v1500
  %v1502 = vpop.xlane.xlu0 %1501
  %v1503 = vsub.f32 %v1471, %v1481
  %v1504 = vsub.f32 %v1472, %v1484
  %v1505 = vsub.f32 %v1473, %v1487
  %v1506 = vsub.f32 %v1474, %v1490
  %v1507 = vsub.f32 %v1475, %v1493
  %v1508 = vsub.f32 %v1476, %v1496
  %v1509 = vsub.f32 %v1477, %v1499
  %v1510 = vsub.f32 %v1478, %v1502
  %v1511 = vmul.f32 %v1503, 1.442695
  %v1512 = vpow.pop %v1511
  %v1513 = vmul.f32 %v1504, 1.442695
  %v1514 = vpow.pop %v1513
  %v1515 = vmul.f32 %v1505, 1.442695
  %v1516 = vpow.pop %v1515
  %v1517 = vmul.f32 %v1506, 1.442695
  %v1518 = vpow.pop %v1517
  %v1519 = vmul.f32 %v1507, 1.442695
  %v1520 = vpow.pop %v1519
  %v1521 = vmul.f32 %v1508, 1.442695
  %v1522 = vpow.pop %v1521
  %v1523 = vmul.f32 %v1509, 1.442695
  %v1524 = vpow.pop %v1523
  %v1525 = vmul.f32 %v1510, 1.442695
  %v1526 = vpow.pop %v1525
  %v1527 = vsel %vm446, %v1512, 0.0
  %1528 = vadd.xlane.f32.xlu0 %v1527
  %v1529 = vpop.xlane.xlu0 %1528
  %v1530 = vsel %vm446, %v1514, 0.0
  %1531 = vadd.xlane.f32.xlu0 %v1530
  %v1532 = vpop.xlane.xlu0 %1531
  %v1533 = vsel %vm446, %v1516, 0.0
  %1534 = vadd.xlane.f32.xlu0 %v1533
  %v1535 = vpop.xlane.xlu0 %1534
  %v1536 = vsel %vm446, %v1518, 0.0
  %1537 = vadd.xlane.f32.xlu0 %v1536
  %v1538 = vpop.xlane.xlu0 %1537
  %v1539 = vsel %vm446, %v1520, 0.0
  %1540 = vadd.xlane.f32.xlu0 %v1539
  %v1541 = vpop.xlane.xlu0 %1540
  %v1542 = vsel %vm446, %v1522, 0.0
  %1543 = vadd.xlane.f32.xlu0 %v1542
  %v1544 = vpop.xlane.xlu0 %1543
  %v1545 = vsel %vm446, %v1524, 0.0
  %1546 = vadd.xlane.f32.xlu0 %v1545
  %v1547 = vpop.xlane.xlu0 %1546
  %v1548 = vsel %vm446, %v1526, 0.0
  %1549 = vadd.xlane.f32.xlu0 %v1548
  %v1550 = vpop.xlane.xlu0 %1549
  %v1551 = vrcp.pop %v1529
  %v1552 = vrcp.pop %v1532
  %v1553 = vrcp.pop %v1535
  %v1554 = vrcp.pop %v1538
  %v1555 = vrcp.pop %v1541
  %v1556 = vrcp.pop %v1544
  %v1557 = vrcp.pop %v1547
  %v1558 = vrcp.pop %v1550
  %v1559 = vpack.c.bf16 %v1514, %v1512
  %v1560 = vpack.c.bf16 %v1518, %v1516
  %v1561 = vpack.c.bf16 %v1522, %v1520
  %v1562 = vpack.c.bf16 %v1526, %v1524
  %v1564 = vsel %vm446, %v1559, 0
  %v1567 = vsel %vm446, %v1560, 0
  %v1570 = vsel %vm446, %v1561, 0
  %v1573 = vsel %vm446, %v1562, 0
  %1575 = vmatprep.subr.bf16.mxu0 0
  %1576 = vmatpush1.bf16.msra.mxu0 %v140
  %1577 = vmatprep.subr.bf16.mxu0 0
  %1578 = vmatpush1.bf16.msra.mxu0 %v141
  %1579 = vmatprep.subr.bf16.mxu0 0
  %1580 = vmatpush1.bf16.msra.mxu0 %v142
  %1581 = vmatprep.subr.bf16.mxu0 0
  %1582 = vmatpush1.bf16.msra.mxu0 %v143
  %1583 = vmatprep.subr.bf16.mxu0 0
  %1584 = vmatpush1.bf16.msra.mxu0 0
  %1585 = vmatprep.subr.bf16.mxu0 0
  %1586 = vmatpush1.bf16.msra.mxu0 0
  %1587 = vmatprep.subr.bf16.mxu0 0
  %1588 = vmatpush1.bf16.msra.mxu0 0
  %1589 = vmatprep.subr.bf16.mxu0 0
  %1590 = vmatpush1.bf16.msra.mxu0 0
  %1591 = vmatprep.subr.bf16.mxu0 0
  %1592 = vmatpush1.bf16.msra.mxu0 0
  %1593 = vmatprep.subr.bf16.mxu0 0
  %1594 = vmatpush1.bf16.msra.mxu0 0
  %1595 = vmatprep.subr.bf16.mxu0 0
  %1596 = vmatpush1.bf16.msra.mxu0 0
  %1597 = vmatprep.subr.bf16.mxu0 0
  %1598 = vmatpush1.bf16.msra.mxu0 0
  %1599 = vmatprep.subr.bf16.mxu0 0
  %1600 = vmatpush1.bf16.msra.mxu0 0
  %1601 = vmatprep.subr.bf16.mxu0 0
  %1602 = vmatpush1.bf16.msra.mxu0 0
  %1603 = vmatprep.subr.bf16.mxu0 0
  %1604 = vmatpush1.bf16.msra.mxu0 0
  %1605 = vmatprep.subr.bf16.mxu0 0
  %1606 = vmatpush1.bf16.msra.mxu0 0
  %1607 = vmatprep.mubr.bf16.mxu0 0
  %1608 = vmatmul.mubr.bf16.gmra.mrb[0].mxu0 %v1564
  %v1609 = vpop.f32.mrb[0].mxu0
  %v1610 = vadd.f32 0.0, %v1609
  %v1611 = vpop.f32.mrb[0].mxu0
  %v1612 = vpop.f32.mrb[0].mxu0
  %v1613 = vadd.f32 0.0, %v1612
  %v1614 = vpop.f32.mrb[0].mxu0
  %1615 = vmatprep.mubr.bf16.mxu0 0
  %1616 = vmatmul.mubr.bf16.gmra.mrb[0].mxu0 %v1567
  %v1617 = vpop.f32.mrb[0].mxu0
  %v1618 = vadd.f32 0.0, %v1617
  %v1619 = vpop.f32.mrb[0].mxu0
  %v1620 = vpop.f32.mrb[0].mxu0
  %v1621 = vadd.f32 0.0, %v1620
  %v1622 = vpop.f32.mrb[0].mxu0
  %1623 = vmatprep.mubr.bf16.mxu0 0
  %1624 = vmatmul.mubr.bf16.gmra.mrb[0].mxu0 %v1570
  %v1625 = vpop.f32.mrb[0].mxu0
  %v1626 = vadd.f32 0.0, %v1625
  %v1627 = vpop.f32.mrb[0].mxu0
  %v1628 = vpop.f32.mrb[0].mxu0
  %v1629 = vadd.f32 0.0, %v1628
  %v1630 = vpop.f32.mrb[0].mxu0
  %1631 = vmatprep.mubr.bf16.mxu0 0
  %1632 = vmatmul.mubr.bf16.gmra.mrb[0].mxu0 %v1573
  %v1633 = vpop.f32.mrb[0].mxu0
  %v1634 = vadd.f32 0.0, %v1633
  %v1635 = vpop.f32.mrb[0].mxu0
  %v1636 = vpop.f32.mrb[0].mxu0
  %v1637 = vadd.f32 0.0, %v1636
  %v1638 = vpop.f32.mrb[0].mxu0
  %1639 = vdwg.mxu0
  %vm1640 = vcmp.ge.s32.totalorder %v311, 32
  %vm1641 = vcmp.lt.s32.totalorder %v311, 40
  %vm1642 = vmand %vm1640, %vm1641
  %v1643 = vmul.f32 %v1610, %v1551
  %v1644 = vmul.f32 %v1613, %v1552
  %v1645 = vmul.f32 %v1618, %v1553
  %v1646 = vmul.f32 %v1621, %v1554
  %v1647 = vmul.f32 %v1626, %v1555
  %v1648 = vmul.f32 %v1629, %v1556
  %v1649 = vmul.f32 %v1634, %v1557
  %v1650 = vmul.f32 %v1637, %v1558
  %v1651 = vsel %vm1642, 1, 0
  %vm1652 = vcmp.eq.s32.totalorder %v1651, 1
  %v1653 = vsel %vm1652, %v1643, 0.0
  %v1654 = vsel %vm1652, %v1644, 0.0
  %v1655 = vsel %vm1652, %v1645, 0.0
  %v1656 = vsel %vm1652, %v1646, 0.0
  %v1657 = vsel %vm1652, %v1647, 0.0
  %v1658 = vsel %vm1652, %v1648, 0.0
  %v1659 = vsel %vm1652, %v1649, 0.0
  %v1660 = vsel %vm1652, %v1650, 0.0
  %v1661 = vadd.f32 %v1403, %v1653
  %v1662 = vadd.f32 %v1404, %v1654
  %v1663 = vadd.f32 %v1405, %v1655
  %v1664 = vadd.f32 %v1406, %v1656
  %v1665 = vadd.f32 %v1407, %v1657
  %v1666 = vadd.f32 %v1408, %v1658
  %v1667 = vadd.f32 %v1409, %v1659
  %v1668 = vadd.f32 %v1410, %v1660
  %1669 = vset.pattern.permute.xlu0 5
  %1670 = vperm.xlu0 %1669, %v276
  %v1671 = vpop.permute.xlu0 %1670
  %1673 = vset.pattern.permute.xlu0 5
  %1674 = vperm.xlu0 %1673, %v279
  %v1675 = vpop.permute.xlu0 %1674
  %1677 = vset.pattern.permute.xlu0 5
  %1678 = vperm.xlu0 %1677, %v284
  %v1679 = vpop.permute.xlu0 %1678
  %1681 = vset.pattern.permute.xlu0 5
  %1682 = vperm.xlu0 %1681, %v287
  %v1683 = vpop.permute.xlu0 %1682
  %1685 = vset.pattern.permute.xlu0 5
  %1686 = vperm.xlu0 %1685, %v292
  %v1687 = vpop.permute.xlu0 %1686
  %1689 = vset.pattern.permute.xlu0 5
  %1690 = vperm.xlu0 %1689, %v295
  %v1691 = vpop.permute.xlu0 %1690
  %1693 = vset.pattern.permute.xlu0 5
  %1694 = vperm.xlu0 %1693, %v300
  %v1695 = vpop.permute.xlu0 %1694
  %1697 = vset.pattern.permute.xlu0 5
  %1698 = vperm.xlu0 %1697, %v303
  %v1699 = vpop.permute.xlu0 %1698
  %v1701 = vlaneseq
  %v1702 = vshrl.u32 %v1701, 7
  %v1703 = vsub.s32 5, %v1702
  %v1704 = vrot.slane %v183, %v1703
  %v1705 = vadd.f32 %v1671, %v1704
  %v1706 = vadd.f32 %v1675, %v1704
  %v1707 = vadd.f32 %v1679, %v1704
  %v1708 = vadd.f32 %v1683, %v1704
  %v1709 = vadd.f32 %v1687, %v1704
  %v1710 = vadd.f32 %v1691, %v1704
  %v1711 = vadd.f32 %v1695, %v1704
  %v1712 = vadd.f32 %v1699, %v1704
  %v1713 = vmul.f32 %v1705, 0.2
  %v1714 = vmul.f32 %v1706, 0.2
  %v1715 = vmul.f32 %v1707, 0.2
  %v1716 = vmul.f32 %v1708, 0.2
  %v1717 = vmul.f32 %v1709, 0.2
  %v1718 = vmul.f32 %v1710, 0.2
  %v1719 = vmul.f32 %v1711, 0.2
  %v1720 = vmul.f32 %v1712, 0.2
  %v1721 = vmax.f32 %v1705, %v1713
  %v1722 = vmax.f32 %v1706, %v1714
  %v1723 = vmax.f32 %v1707, %v1715
  %v1724 = vmax.f32 %v1708, %v1716
  %v1725 = vmax.f32 %v1709, %v1717
  %v1726 = vmax.f32 %v1710, %v1718
  %v1727 = vmax.f32 %v1711, %v1719
  %v1728 = vmax.f32 %v1712, %v1720
  %v1729 = vsel %vm430, %v1721, -1e+30
  %v1730 = vsel %vm431, %v1722, -1e+30
  %v1731 = vsel %vm432, %v1723, -1e+30
  %v1732 = vsel %vm433, %v1724, -1e+30
  %v1733 = vsel %vm434, %v1725, -1e+30
  %v1734 = vsel %vm435, %v1726, -1e+30
  %v1735 = vsel %vm436, %v1727, -1e+30
  %v1736 = vsel %vm437, %v1728, -1e+30
  %v1737 = vsel %vm446, %v1729, -inf
  %1738 = vmax.xlane.f32.xlu0 %v1737
  %v1739 = vpop.xlane.xlu0 %1738
  %v1740 = vsel %vm446, %v1730, -inf
  %1741 = vmax.xlane.f32.xlu0 %v1740
  %v1742 = vpop.xlane.xlu0 %1741
  %v1743 = vsel %vm446, %v1731, -inf
  %1744 = vmax.xlane.f32.xlu0 %v1743
  %v1745 = vpop.xlane.xlu0 %1744
  %v1746 = vsel %vm446, %v1732, -inf
  %1747 = vmax.xlane.f32.xlu0 %v1746
  %v1748 = vpop.xlane.xlu0 %1747
  %v1749 = vsel %vm446, %v1733, -inf
  %1750 = vmax.xlane.f32.xlu0 %v1749
  %v1751 = vpop.xlane.xlu0 %1750
  %v1752 = vsel %vm446, %v1734, -inf
  %1753 = vmax.xlane.f32.xlu0 %v1752
  %v1754 = vpop.xlane.xlu0 %1753
  %v1755 = vsel %vm446, %v1735, -inf
  %1756 = vmax.xlane.f32.xlu0 %v1755
  %v1757 = vpop.xlane.xlu0 %1756
  %v1758 = vsel %vm446, %v1736, -inf
  %1759 = vmax.xlane.f32.xlu0 %v1758
  %v1760 = vpop.xlane.xlu0 %1759
  %v1761 = vsub.f32 %v1729, %v1739
  %v1762 = vsub.f32 %v1730, %v1742
  %v1763 = vsub.f32 %v1731, %v1745
  %v1764 = vsub.f32 %v1732, %v1748
  %v1765 = vsub.f32 %v1733, %v1751
  %v1766 = vsub.f32 %v1734, %v1754
  %v1767 = vsub.f32 %v1735, %v1757
  %v1768 = vsub.f32 %v1736, %v1760
  %v1769 = vmul.f32 %v1761, 1.442695
  %v1770 = vpow.pop %v1769
  %v1771 = vmul.f32 %v1762, 1.442695
  %v1772 = vpow.pop %v1771
  %v1773 = vmul.f32 %v1763, 1.442695
  %v1774 = vpow.pop %v1773
  %v1775 = vmul.f32 %v1764, 1.442695
  %v1776 = vpow.pop %v1775
  %v1777 = vmul.f32 %v1765, 1.442695
  %v1778 = vpow.pop %v1777
  %v1779 = vmul.f32 %v1766, 1.442695
  %v1780 = vpow.pop %v1779
  %v1781 = vmul.f32 %v1767, 1.442695
  %v1782 = vpow.pop %v1781
  %v1783 = vmul.f32 %v1768, 1.442695
  %v1784 = vpow.pop %v1783
  %v1785 = vsel %vm446, %v1770, 0.0
  %1786 = vadd.xlane.f32.xlu0 %v1785
  %v1787 = vpop.xlane.xlu0 %1786
  %v1788 = vsel %vm446, %v1772, 0.0
  %1789 = vadd.xlane.f32.xlu0 %v1788
  %v1790 = vpop.xlane.xlu0 %1789
  %v1791 = vsel %vm446, %v1774, 0.0
  %1792 = vadd.xlane.f32.xlu0 %v1791
  %v1793 = vpop.xlane.xlu0 %1792
  %v1794 = vsel %vm446, %v1776, 0.0
  %1795 = vadd.xlane.f32.xlu0 %v1794
  %v1796 = vpop.xlane.xlu0 %1795
  %v1797 = vsel %vm446, %v1778, 0.0
  %1798 = vadd.xlane.f32.xlu0 %v1797
  %v1799 = vpop.xlane.xlu0 %1798
  %v1800 = vsel %vm446, %v1780, 0.0
  %1801 = vadd.xlane.f32.xlu0 %v1800
  %v1802 = vpop.xlane.xlu0 %1801
  %v1803 = vsel %vm446, %v1782, 0.0
  %1804 = vadd.xlane.f32.xlu0 %v1803
  %v1805 = vpop.xlane.xlu0 %1804
  %v1806 = vsel %vm446, %v1784, 0.0
  %1807 = vadd.xlane.f32.xlu0 %v1806
  %v1808 = vpop.xlane.xlu0 %1807
  %v1809 = vrcp.pop %v1787
  %v1810 = vrcp.pop %v1790
  %v1811 = vrcp.pop %v1793
  %v1812 = vrcp.pop %v1796
  %v1813 = vrcp.pop %v1799
  %v1814 = vrcp.pop %v1802
  %v1815 = vrcp.pop %v1805
  %v1816 = vrcp.pop %v1808
  %v1817 = vpack.c.bf16 %v1772, %v1770
  %v1818 = vpack.c.bf16 %v1776, %v1774
  %v1819 = vpack.c.bf16 %v1780, %v1778
  %v1820 = vpack.c.bf16 %v1784, %v1782
  %v1822 = vsel %vm446, %v1817, 0
  %v1825 = vsel %vm446, %v1818, 0
  %v1828 = vsel %vm446, %v1819, 0
  %v1831 = vsel %vm446, %v1820, 0
  %1833 = vmatprep.subr.bf16.mxu0 0
  %1834 = vmatpush1.bf16.msra.mxu0 %v140
  %1835 = vmatprep.subr.bf16.mxu0 0
  %1836 = vmatpush1.bf16.msra.mxu0 %v141
  %1837 = vmatprep.subr.bf16.mxu0 0
  %1838 = vmatpush1.bf16.msra.mxu0 %v142
  %1839 = vmatprep.subr.bf16.mxu0 0
  %1840 = vmatpush1.bf16.msra.mxu0 %v143
  %1841 = vmatprep.subr.bf16.mxu0 0
  %1842 = vmatpush1.bf16.msra.mxu0 0
  %1843 = vmatprep.subr.bf16.mxu0 0
  %1844 = vmatpush1.bf16.msra.mxu0 0
  %1845 = vmatprep.subr.bf16.mxu0 0
  %1846 = vmatpush1.bf16.msra.mxu0 0
  %1847 = vmatprep.subr.bf16.mxu0 0
  %1848 = vmatpush1.bf16.msra.mxu0 0
  %1849 = vmatprep.subr.bf16.mxu0 0
  %1850 = vmatpush1.bf16.msra.mxu0 0
  %1851 = vmatprep.subr.bf16.mxu0 0
  %1852 = vmatpush1.bf16.msra.mxu0 0
  %1853 = vmatprep.subr.bf16.mxu0 0
  %1854 = vmatpush1.bf16.msra.mxu0 0
  %1855 = vmatprep.subr.bf16.mxu0 0
  %1856 = vmatpush1.bf16.msra.mxu0 0
  %1857 = vmatprep.subr.bf16.mxu0 0
  %1858 = vmatpush1.bf16.msra.mxu0 0
  %1859 = vmatprep.subr.bf16.mxu0 0
  %1860 = vmatpush1.bf16.msra.mxu0 0
  %1861 = vmatprep.subr.bf16.mxu0 0
  %1862 = vmatpush1.bf16.msra.mxu0 0
  %1863 = vmatprep.subr.bf16.mxu0 0
  %1864 = vmatpush1.bf16.msra.mxu0 0
  %1865 = vmatprep.mubr.bf16.mxu0 0
  %1866 = vmatmul.mubr.bf16.gmra.mrb[0].mxu0 %v1822
  %v1867 = vpop.f32.mrb[0].mxu0
  %v1868 = vadd.f32 0.0, %v1867
  %v1869 = vpop.f32.mrb[0].mxu0
  %v1870 = vpop.f32.mrb[0].mxu0
  %v1871 = vadd.f32 0.0, %v1870
  %v1872 = vpop.f32.mrb[0].mxu0
  %1873 = vmatprep.mubr.bf16.mxu0 0
  %1874 = vmatmul.mubr.bf16.gmra.mrb[0].mxu0 %v1825
  %v1875 = vpop.f32.mrb[0].mxu0
  %v1876 = vadd.f32 0.0, %v1875
  %v1877 = vpop.f32.mrb[0].mxu0
  %v1878 = vpop.f32.mrb[0].mxu0
  %v1879 = vadd.f32 0.0, %v1878
  %v1880 = vpop.f32.mrb[0].mxu0
  %1881 = vmatprep.mubr.bf16.mxu0 0
  %1882 = vmatmul.mubr.bf16.gmra.mrb[0].mxu0 %v1828
  %v1883 = vpop.f32.mrb[0].mxu0
  %v1884 = vadd.f32 0.0, %v1883
  %v1885 = vpop.f32.mrb[0].mxu0
  %v1886 = vpop.f32.mrb[0].mxu0
  %v1887 = vadd.f32 0.0, %v1886
  %v1888 = vpop.f32.mrb[0].mxu0
  %1889 = vmatprep.mubr.bf16.mxu0 0
  %1890 = vmatmul.mubr.bf16.gmra.mrb[0].mxu0 %v1831
  %v1891 = vpop.f32.mrb[0].mxu0
  %v1892 = vadd.f32 0.0, %v1891
  %v1893 = vpop.f32.mrb[0].mxu0
  %v1894 = vpop.f32.mrb[0].mxu0
  %v1895 = vadd.f32 0.0, %v1894
  %v1896 = vpop.f32.mrb[0].mxu0
  %1897 = vdwg.mxu0
  %vm1898 = vcmp.ge.s32.totalorder %v311, 40
  %vm1899 = vcmp.lt.s32.totalorder %v311, 48
  %vm1900 = vmand %vm1898, %vm1899
  %v1901 = vmul.f32 %v1868, %v1809
  %v1902 = vmul.f32 %v1871, %v1810
  %v1903 = vmul.f32 %v1876, %v1811
  %v1904 = vmul.f32 %v1879, %v1812
  %v1905 = vmul.f32 %v1884, %v1813
  %v1906 = vmul.f32 %v1887, %v1814
  %v1907 = vmul.f32 %v1892, %v1815
  %v1908 = vmul.f32 %v1895, %v1816
  %v1909 = vsel %vm1900, 1, 0
  %vm1910 = vcmp.eq.s32.totalorder %v1909, 1
  %v1911 = vsel %vm1910, %v1901, 0.0
  %v1912 = vsel %vm1910, %v1902, 0.0
  %v1913 = vsel %vm1910, %v1903, 0.0
  %v1914 = vsel %vm1910, %v1904, 0.0
  %v1915 = vsel %vm1910, %v1905, 0.0
  %v1916 = vsel %vm1910, %v1906, 0.0
  %v1917 = vsel %vm1910, %v1907, 0.0
  %v1918 = vsel %vm1910, %v1908, 0.0
  %v1919 = vadd.f32 %v1661, %v1911
  %v1920 = vadd.f32 %v1662, %v1912
  %v1921 = vadd.f32 %v1663, %v1913
  %v1922 = vadd.f32 %v1664, %v1914
  %v1923 = vadd.f32 %v1665, %v1915
  %v1924 = vadd.f32 %v1666, %v1916
  %v1925 = vadd.f32 %v1667, %v1917
  %v1926 = vadd.f32 %v1668, %v1918
  %1927 = vset.pattern.permute.xlu0 6
  %1928 = vperm.xlu0 %1927, %v276
  %v1929 = vpop.permute.xlu0 %1928
  %1931 = vset.pattern.permute.xlu0 6
  %1932 = vperm.xlu0 %1931, %v279
  %v1933 = vpop.permute.xlu0 %1932
  %1935 = vset.pattern.permute.xlu0 6
  %1936 = vperm.xlu0 %1935, %v284
  %v1937 = vpop.permute.xlu0 %1936
  %1939 = vset.pattern.permute.xlu0 6
  %1940 = vperm.xlu0 %1939, %v287
  %v1941 = vpop.permute.xlu0 %1940
  %1943 = vset.pattern.permute.xlu0 6
  %1944 = vperm.xlu0 %1943, %v292
  %v1945 = vpop.permute.xlu0 %1944
  %1947 = vset.pattern.permute.xlu0 6
  %1948 = vperm.xlu0 %1947, %v295
  %v1949 = vpop.permute.xlu0 %1948
  %1951 = vset.pattern.permute.xlu0 6
  %1952 = vperm.xlu0 %1951, %v300
  %v1953 = vpop.permute.xlu0 %1952
  %1955 = vset.pattern.permute.xlu0 6
  %1956 = vperm.xlu0 %1955, %v303
  %v1957 = vpop.permute.xlu0 %1956
  %v1959 = vlaneseq
  %v1960 = vshrl.u32 %v1959, 7
  %v1961 = vsub.s32 6, %v1960
  %v1962 = vrot.slane %v183, %v1961
  %v1963 = vadd.f32 %v1929, %v1962
  %v1964 = vadd.f32 %v1933, %v1962
  %v1965 = vadd.f32 %v1937, %v1962
  %v1966 = vadd.f32 %v1941, %v1962
  %v1967 = vadd.f32 %v1945, %v1962
  %v1968 = vadd.f32 %v1949, %v1962
  %v1969 = vadd.f32 %v1953, %v1962
  %v1970 = vadd.f32 %v1957, %v1962
  %v1971 = vmul.f32 %v1963, 0.2
  %v1972 = vmul.f32 %v1964, 0.2
  %v1973 = vmul.f32 %v1965, 0.2
  %v1974 = vmul.f32 %v1966, 0.2
  %v1975 = vmul.f32 %v1967, 0.2
  %v1976 = vmul.f32 %v1968, 0.2
  %v1977 = vmul.f32 %v1969, 0.2
  %v1978 = vmul.f32 %v1970, 0.2
  %v1979 = vmax.f32 %v1963, %v1971
  %v1980 = vmax.f32 %v1964, %v1972
  %v1981 = vmax.f32 %v1965, %v1973
  %v1982 = vmax.f32 %v1966, %v1974
  %v1983 = vmax.f32 %v1967, %v1975
  %v1984 = vmax.f32 %v1968, %v1976
  %v1985 = vmax.f32 %v1969, %v1977
  %v1986 = vmax.f32 %v1970, %v1978
  %v1987 = vsel %vm430, %v1979, -1e+30
  %v1988 = vsel %vm431, %v1980, -1e+30
  %v1989 = vsel %vm432, %v1981, -1e+30
  %v1990 = vsel %vm433, %v1982, -1e+30
  %v1991 = vsel %vm434, %v1983, -1e+30
  %v1992 = vsel %vm435, %v1984, -1e+30
  %v1993 = vsel %vm436, %v1985, -1e+30
  %v1994 = vsel %vm437, %v1986, -1e+30
  %v1995 = vsel %vm446, %v1987, -inf
  %1996 = vmax.xlane.f32.xlu0 %v1995
  %v1997 = vpop.xlane.xlu0 %1996
  %v1998 = vsel %vm446, %v1988, -inf
  %1999 = vmax.xlane.f32.xlu0 %v1998
  %v2000 = vpop.xlane.xlu0 %1999
  %v2001 = vsel %vm446, %v1989, -inf
  %2002 = vmax.xlane.f32.xlu0 %v2001
  %v2003 = vpop.xlane.xlu0 %2002
  %v2004 = vsel %vm446, %v1990, -inf
  %2005 = vmax.xlane.f32.xlu0 %v2004
  %v2006 = vpop.xlane.xlu0 %2005
  %v2007 = vsel %vm446, %v1991, -inf
  %2008 = vmax.xlane.f32.xlu0 %v2007
  %v2009 = vpop.xlane.xlu0 %2008
  %v2010 = vsel %vm446, %v1992, -inf
  %2011 = vmax.xlane.f32.xlu0 %v2010
  %v2012 = vpop.xlane.xlu0 %2011
  %v2013 = vsel %vm446, %v1993, -inf
  %2014 = vmax.xlane.f32.xlu0 %v2013
  %v2015 = vpop.xlane.xlu0 %2014
  %v2016 = vsel %vm446, %v1994, -inf
  %2017 = vmax.xlane.f32.xlu0 %v2016
  %v2018 = vpop.xlane.xlu0 %2017
  %v2019 = vsub.f32 %v1987, %v1997
  %v2020 = vsub.f32 %v1988, %v2000
  %v2021 = vsub.f32 %v1989, %v2003
  %v2022 = vsub.f32 %v1990, %v2006
  %v2023 = vsub.f32 %v1991, %v2009
  %v2024 = vsub.f32 %v1992, %v2012
  %v2025 = vsub.f32 %v1993, %v2015
  %v2026 = vsub.f32 %v1994, %v2018
  %v2027 = vmul.f32 %v2019, 1.442695
  %v2028 = vpow.pop %v2027
  %v2029 = vmul.f32 %v2020, 1.442695
  %v2030 = vpow.pop %v2029
  %v2031 = vmul.f32 %v2021, 1.442695
  %v2032 = vpow.pop %v2031
  %v2033 = vmul.f32 %v2022, 1.442695
  %v2034 = vpow.pop %v2033
  %v2035 = vmul.f32 %v2023, 1.442695
  %v2036 = vpow.pop %v2035
  %v2037 = vmul.f32 %v2024, 1.442695
  %v2038 = vpow.pop %v2037
  %v2039 = vmul.f32 %v2025, 1.442695
  %v2040 = vpow.pop %v2039
  %v2041 = vmul.f32 %v2026, 1.442695
  %v2042 = vpow.pop %v2041
  %v2043 = vsel %vm446, %v2028, 0.0
  %2044 = vadd.xlane.f32.xlu0 %v2043
  %v2045 = vpop.xlane.xlu0 %2044
  %v2046 = vsel %vm446, %v2030, 0.0
  %2047 = vadd.xlane.f32.xlu0 %v2046
  %v2048 = vpop.xlane.xlu0 %2047
  %v2049 = vsel %vm446, %v2032, 0.0
  %2050 = vadd.xlane.f32.xlu0 %v2049
  %v2051 = vpop.xlane.xlu0 %2050
  %v2052 = vsel %vm446, %v2034, 0.0
  %2053 = vadd.xlane.f32.xlu0 %v2052
  %v2054 = vpop.xlane.xlu0 %2053
  %v2055 = vsel %vm446, %v2036, 0.0
  %2056 = vadd.xlane.f32.xlu0 %v2055
  %v2057 = vpop.xlane.xlu0 %2056
  %v2058 = vsel %vm446, %v2038, 0.0
  %2059 = vadd.xlane.f32.xlu0 %v2058
  %v2060 = vpop.xlane.xlu0 %2059
  %v2061 = vsel %vm446, %v2040, 0.0
  %2062 = vadd.xlane.f32.xlu0 %v2061
  %v2063 = vpop.xlane.xlu0 %2062
  %v2064 = vsel %vm446, %v2042, 0.0
  %2065 = vadd.xlane.f32.xlu0 %v2064
  %v2066 = vpop.xlane.xlu0 %2065
  %v2067 = vrcp.pop %v2045
  %v2068 = vrcp.pop %v2048
  %v2069 = vrcp.pop %v2051
  %v2070 = vrcp.pop %v2054
  %v2071 = vrcp.pop %v2057
  %v2072 = vrcp.pop %v2060
  %v2073 = vrcp.pop %v2063
  %v2074 = vrcp.pop %v2066
  %v2075 = vpack.c.bf16 %v2030, %v2028
  %v2076 = vpack.c.bf16 %v2034, %v2032
  %v2077 = vpack.c.bf16 %v2038, %v2036
  %v2078 = vpack.c.bf16 %v2042, %v2040
  %v2080 = vsel %vm446, %v2075, 0
  %v2083 = vsel %vm446, %v2076, 0
  %v2086 = vsel %vm446, %v2077, 0
  %v2089 = vsel %vm446, %v2078, 0
  %2091 = vmatprep.subr.bf16.mxu0 0
  %2092 = vmatpush1.bf16.msra.mxu0 %v140
  %2093 = vmatprep.subr.bf16.mxu0 0
  %2094 = vmatpush1.bf16.msra.mxu0 %v141
  %2095 = vmatprep.subr.bf16.mxu0 0
  %2096 = vmatpush1.bf16.msra.mxu0 %v142
  %2097 = vmatprep.subr.bf16.mxu0 0
  %2098 = vmatpush1.bf16.msra.mxu0 %v143
  %2099 = vmatprep.subr.bf16.mxu0 0
  %2100 = vmatpush1.bf16.msra.mxu0 0
  %2101 = vmatprep.subr.bf16.mxu0 0
  %2102 = vmatpush1.bf16.msra.mxu0 0
  %2103 = vmatprep.subr.bf16.mxu0 0
  %2104 = vmatpush1.bf16.msra.mxu0 0
  %2105 = vmatprep.subr.bf16.mxu0 0
  %2106 = vmatpush1.bf16.msra.mxu0 0
  %2107 = vmatprep.subr.bf16.mxu0 0
  %2108 = vmatpush1.bf16.msra.mxu0 0
  %2109 = vmatprep.subr.bf16.mxu0 0
  %2110 = vmatpush1.bf16.msra.mxu0 0
  %2111 = vmatprep.subr.bf16.mxu0 0
  %2112 = vmatpush1.bf16.msra.mxu0 0
  %2113 = vmatprep.subr.bf16.mxu0 0
  %2114 = vmatpush1.bf16.msra.mxu0 0
  %2115 = vmatprep.subr.bf16.mxu0 0
  %2116 = vmatpush1.bf16.msra.mxu0 0
  %2117 = vmatprep.subr.bf16.mxu0 0
  %2118 = vmatpush1.bf16.msra.mxu0 0
  %2119 = vmatprep.subr.bf16.mxu0 0
  %2120 = vmatpush1.bf16.msra.mxu0 0
  %2121 = vmatprep.subr.bf16.mxu0 0
  %2122 = vmatpush1.bf16.msra.mxu0 0
  %2123 = vmatprep.mubr.bf16.mxu0 0
  %2124 = vmatmul.mubr.bf16.gmra.mrb[0].mxu0 %v2080
  %v2125 = vpop.f32.mrb[0].mxu0
  %v2126 = vadd.f32 0.0, %v2125
  %v2127 = vpop.f32.mrb[0].mxu0
  %v2128 = vpop.f32.mrb[0].mxu0
  %v2129 = vadd.f32 0.0, %v2128
  %v2130 = vpop.f32.mrb[0].mxu0
  %2131 = vmatprep.mubr.bf16.mxu0 0
  %2132 = vmatmul.mubr.bf16.gmra.mrb[0].mxu0 %v2083
  %v2133 = vpop.f32.mrb[0].mxu0
  %v2134 = vadd.f32 0.0, %v2133
  %v2135 = vpop.f32.mrb[0].mxu0
  %v2136 = vpop.f32.mrb[0].mxu0
  %v2137 = vadd.f32 0.0, %v2136
  %v2138 = vpop.f32.mrb[0].mxu0
  %2139 = vmatprep.mubr.bf16.mxu0 0
  %2140 = vmatmul.mubr.bf16.gmra.mrb[0].mxu0 %v2086
  %v2141 = vpop.f32.mrb[0].mxu0
  %v2142 = vadd.f32 0.0, %v2141
  %v2143 = vpop.f32.mrb[0].mxu0
  %v2144 = vpop.f32.mrb[0].mxu0
  %v2145 = vadd.f32 0.0, %v2144
  %v2146 = vpop.f32.mrb[0].mxu0
  %2147 = vmatprep.mubr.bf16.mxu0 0
  %2148 = vmatmul.mubr.bf16.gmra.mrb[0].mxu0 %v2089
  %v2149 = vpop.f32.mrb[0].mxu0
  %v2150 = vadd.f32 0.0, %v2149
  %v2151 = vpop.f32.mrb[0].mxu0
  %v2152 = vpop.f32.mrb[0].mxu0
  %v2153 = vadd.f32 0.0, %v2152
  %v2154 = vpop.f32.mrb[0].mxu0
  %2155 = vdwg.mxu0
  %vm2156 = vcmp.ge.s32.totalorder %v311, 48
  %vm2157 = vcmp.lt.s32.totalorder %v311, 56
  %vm2158 = vmand %vm2156, %vm2157
  %v2159 = vmul.f32 %v2126, %v2067
  %v2160 = vmul.f32 %v2129, %v2068
  %v2161 = vmul.f32 %v2134, %v2069
  %v2162 = vmul.f32 %v2137, %v2070
  %v2163 = vmul.f32 %v2142, %v2071
  %v2164 = vmul.f32 %v2145, %v2072
  %v2165 = vmul.f32 %v2150, %v2073
  %v2166 = vmul.f32 %v2153, %v2074
  %v2167 = vsel %vm2158, 1, 0
  %vm2168 = vcmp.eq.s32.totalorder %v2167, 1
  %v2169 = vsel %vm2168, %v2159, 0.0
  %v2170 = vsel %vm2168, %v2160, 0.0
  %v2171 = vsel %vm2168, %v2161, 0.0
  %v2172 = vsel %vm2168, %v2162, 0.0
  %v2173 = vsel %vm2168, %v2163, 0.0
  %v2174 = vsel %vm2168, %v2164, 0.0
  %v2175 = vsel %vm2168, %v2165, 0.0
  %v2176 = vsel %vm2168, %v2166, 0.0
  %v2177 = vadd.f32 %v1919, %v2169
  %v2178 = vadd.f32 %v1920, %v2170
  %v2179 = vadd.f32 %v1921, %v2171
  %v2180 = vadd.f32 %v1922, %v2172
  %v2181 = vadd.f32 %v1923, %v2173
  %v2182 = vadd.f32 %v1924, %v2174
  %v2183 = vadd.f32 %v1925, %v2175
  %v2184 = vadd.f32 %v1926, %v2176
  %2185 = vset.pattern.permute.xlu0 7
  %2186 = vperm.xlu0 %2185, %v276
  %v2187 = vpop.permute.xlu0 %2186
  %2189 = vset.pattern.permute.xlu0 7
  %2190 = vperm.xlu0 %2189, %v279
  %v2191 = vpop.permute.xlu0 %2190
  %2193 = vset.pattern.permute.xlu0 7
  %2194 = vperm.xlu0 %2193, %v284
  %v2195 = vpop.permute.xlu0 %2194
  %2197 = vset.pattern.permute.xlu0 7
  %2198 = vperm.xlu0 %2197, %v287
  %v2199 = vpop.permute.xlu0 %2198
  %2201 = vset.pattern.permute.xlu0 7
  %2202 = vperm.xlu0 %2201, %v292
  %v2203 = vpop.permute.xlu0 %2202
  %2205 = vset.pattern.permute.xlu0 7
  %2206 = vperm.xlu0 %2205, %v295
  %v2207 = vpop.permute.xlu0 %2206
  %2209 = vset.pattern.permute.xlu0 7
  %2210 = vperm.xlu0 %2209, %v300
  %v2211 = vpop.permute.xlu0 %2210
  %2213 = vset.pattern.permute.xlu0 7
  %2214 = vperm.xlu0 %2213, %v303
  %v2215 = vpop.permute.xlu0 %2214
  %v2217 = vlaneseq
  %v2218 = vshrl.u32 %v2217, 7
  %v2219 = vsub.s32 7, %v2218
  %v2220 = vrot.slane %v183, %v2219
  %v2221 = vadd.f32 %v2187, %v2220
  %v2222 = vadd.f32 %v2191, %v2220
  %v2223 = vadd.f32 %v2195, %v2220
  %v2224 = vadd.f32 %v2199, %v2220
  %v2225 = vadd.f32 %v2203, %v2220
  %v2226 = vadd.f32 %v2207, %v2220
  %v2227 = vadd.f32 %v2211, %v2220
  %v2228 = vadd.f32 %v2215, %v2220
  %v2229 = vmul.f32 %v2221, 0.2
  %v2230 = vmul.f32 %v2222, 0.2
  %v2231 = vmul.f32 %v2223, 0.2
  %v2232 = vmul.f32 %v2224, 0.2
  %v2233 = vmul.f32 %v2225, 0.2
  %v2234 = vmul.f32 %v2226, 0.2
  %v2235 = vmul.f32 %v2227, 0.2
  %v2236 = vmul.f32 %v2228, 0.2
  %v2237 = vmax.f32 %v2221, %v2229
  %v2238 = vmax.f32 %v2222, %v2230
  %v2239 = vmax.f32 %v2223, %v2231
  %v2240 = vmax.f32 %v2224, %v2232
  %v2241 = vmax.f32 %v2225, %v2233
  %v2242 = vmax.f32 %v2226, %v2234
  %v2243 = vmax.f32 %v2227, %v2235
  %v2244 = vmax.f32 %v2228, %v2236
  %v2245 = vsel %vm430, %v2237, -1e+30
  %v2246 = vsel %vm431, %v2238, -1e+30
  %v2247 = vsel %vm432, %v2239, -1e+30
  %v2248 = vsel %vm433, %v2240, -1e+30
  %v2249 = vsel %vm434, %v2241, -1e+30
  %v2250 = vsel %vm435, %v2242, -1e+30
  %v2251 = vsel %vm436, %v2243, -1e+30
  %v2252 = vsel %vm437, %v2244, -1e+30
  %v2253 = vsel %vm446, %v2245, -inf
  %2254 = vmax.xlane.f32.xlu0 %v2253
  %v2255 = vpop.xlane.xlu0 %2254
  %v2256 = vsel %vm446, %v2246, -inf
  %2257 = vmax.xlane.f32.xlu0 %v2256
  %v2258 = vpop.xlane.xlu0 %2257
  %v2259 = vsel %vm446, %v2247, -inf
  %2260 = vmax.xlane.f32.xlu0 %v2259
  %v2261 = vpop.xlane.xlu0 %2260
  %v2262 = vsel %vm446, %v2248, -inf
  %2263 = vmax.xlane.f32.xlu0 %v2262
  %v2264 = vpop.xlane.xlu0 %2263
  %v2265 = vsel %vm446, %v2249, -inf
  %2266 = vmax.xlane.f32.xlu0 %v2265
  %v2267 = vpop.xlane.xlu0 %2266
  %v2268 = vsel %vm446, %v2250, -inf
  %2269 = vmax.xlane.f32.xlu0 %v2268
  %v2270 = vpop.xlane.xlu0 %2269
  %v2271 = vsel %vm446, %v2251, -inf
  %2272 = vmax.xlane.f32.xlu0 %v2271
  %v2273 = vpop.xlane.xlu0 %2272
  %v2274 = vsel %vm446, %v2252, -inf
  %2275 = vmax.xlane.f32.xlu0 %v2274
  %v2276 = vpop.xlane.xlu0 %2275
  %v2277 = vsub.f32 %v2245, %v2255
  %v2278 = vsub.f32 %v2246, %v2258
  %v2279 = vsub.f32 %v2247, %v2261
  %v2280 = vsub.f32 %v2248, %v2264
  %v2281 = vsub.f32 %v2249, %v2267
  %v2282 = vsub.f32 %v2250, %v2270
  %v2283 = vsub.f32 %v2251, %v2273
  %v2284 = vsub.f32 %v2252, %v2276
  %v2285 = vmul.f32 %v2277, 1.442695
  %v2286 = vpow.pop %v2285
  %v2287 = vmul.f32 %v2278, 1.442695
  %v2288 = vpow.pop %v2287
  %v2289 = vmul.f32 %v2279, 1.442695
  %v2290 = vpow.pop %v2289
  %v2291 = vmul.f32 %v2280, 1.442695
  %v2292 = vpow.pop %v2291
  %v2293 = vmul.f32 %v2281, 1.442695
  %v2294 = vpow.pop %v2293
  %v2295 = vmul.f32 %v2282, 1.442695
  %v2296 = vpow.pop %v2295
  %v2297 = vmul.f32 %v2283, 1.442695
  %v2298 = vpow.pop %v2297
  %v2299 = vmul.f32 %v2284, 1.442695
  %v2300 = vpow.pop %v2299
  %v2301 = vsel %vm446, %v2286, 0.0
  %2302 = vadd.xlane.f32.xlu0 %v2301
  %v2303 = vpop.xlane.xlu0 %2302
  %v2304 = vsel %vm446, %v2288, 0.0
  %2305 = vadd.xlane.f32.xlu0 %v2304
  %v2306 = vpop.xlane.xlu0 %2305
  %v2307 = vsel %vm446, %v2290, 0.0
  %2308 = vadd.xlane.f32.xlu0 %v2307
  %v2309 = vpop.xlane.xlu0 %2308
  %v2310 = vsel %vm446, %v2292, 0.0
  %2311 = vadd.xlane.f32.xlu0 %v2310
  %v2312 = vpop.xlane.xlu0 %2311
  %v2313 = vsel %vm446, %v2294, 0.0
  %2314 = vadd.xlane.f32.xlu0 %v2313
  %v2315 = vpop.xlane.xlu0 %2314
  %v2316 = vsel %vm446, %v2296, 0.0
  %2317 = vadd.xlane.f32.xlu0 %v2316
  %v2318 = vpop.xlane.xlu0 %2317
  %v2319 = vsel %vm446, %v2298, 0.0
  %2320 = vadd.xlane.f32.xlu0 %v2319
  %v2321 = vpop.xlane.xlu0 %2320
  %v2322 = vsel %vm446, %v2300, 0.0
  %2323 = vadd.xlane.f32.xlu0 %v2322
  %v2324 = vpop.xlane.xlu0 %2323
  %v2325 = vrcp.pop %v2303
  %v2326 = vrcp.pop %v2306
  %v2327 = vrcp.pop %v2309
  %v2328 = vrcp.pop %v2312
  %v2329 = vrcp.pop %v2315
  %v2330 = vrcp.pop %v2318
  %v2331 = vrcp.pop %v2321
  %v2332 = vrcp.pop %v2324
  %v2333 = vpack.c.bf16 %v2288, %v2286
  %v2334 = vpack.c.bf16 %v2292, %v2290
  %v2335 = vpack.c.bf16 %v2296, %v2294
  %v2336 = vpack.c.bf16 %v2300, %v2298
  %v2338 = vsel %vm446, %v2333, 0
  %v2341 = vsel %vm446, %v2334, 0
  %v2344 = vsel %vm446, %v2335, 0
  %v2347 = vsel %vm446, %v2336, 0
  %2349 = vmatprep.subr.bf16.mxu0 0
  %2350 = vmatpush1.bf16.msra.mxu0 %v140
  %2351 = vmatprep.subr.bf16.mxu0 0
  %2352 = vmatpush1.bf16.msra.mxu0 %v141
  %2353 = vmatprep.subr.bf16.mxu0 0
  %2354 = vmatpush1.bf16.msra.mxu0 %v142
  %2355 = vmatprep.subr.bf16.mxu0 0
  %2356 = vmatpush1.bf16.msra.mxu0 %v143
  %2357 = vmatprep.subr.bf16.mxu0 0
  %2358 = vmatpush1.bf16.msra.mxu0 0
  %2359 = vmatprep.subr.bf16.mxu0 0
  %2360 = vmatpush1.bf16.msra.mxu0 0
  %2361 = vmatprep.subr.bf16.mxu0 0
  %2362 = vmatpush1.bf16.msra.mxu0 0
  %2363 = vmatprep.subr.bf16.mxu0 0
  %2364 = vmatpush1.bf16.msra.mxu0 0
  %2365 = vmatprep.subr.bf16.mxu0 0
  %2366 = vmatpush1.bf16.msra.mxu0 0
  %2367 = vmatprep.subr.bf16.mxu0 0
  %2368 = vmatpush1.bf16.msra.mxu0 0
  %2369 = vmatprep.subr.bf16.mxu0 0
  %2370 = vmatpush1.bf16.msra.mxu0 0
  %2371 = vmatprep.subr.bf16.mxu0 0
  %2372 = vmatpush1.bf16.msra.mxu0 0
  %2373 = vmatprep.subr.bf16.mxu0 0
  %2374 = vmatpush1.bf16.msra.mxu0 0
  %2375 = vmatprep.subr.bf16.mxu0 0
  %2376 = vmatpush1.bf16.msra.mxu0 0
  %2377 = vmatprep.subr.bf16.mxu0 0
  %2378 = vmatpush1.bf16.msra.mxu0 0
  %2379 = vmatprep.subr.bf16.mxu0 0
  %2380 = vmatpush1.bf16.msra.mxu0 0
  %2381 = vmatprep.mubr.bf16.mxu0 0
  %2382 = vmatmul.mubr.bf16.gmra.mrb[0].mxu0 %v2338
  %v2383 = vpop.f32.mrb[0].mxu0
  %v2384 = vadd.f32 0.0, %v2383
  %v2385 = vpop.f32.mrb[0].mxu0
  %v2386 = vpop.f32.mrb[0].mxu0
  %v2387 = vadd.f32 0.0, %v2386
  %v2388 = vpop.f32.mrb[0].mxu0
  %2389 = vmatprep.mubr.bf16.mxu0 0
  %2390 = vmatmul.mubr.bf16.gmra.mrb[0].mxu0 %v2341
  %v2391 = vpop.f32.mrb[0].mxu0
  %v2392 = vadd.f32 0.0, %v2391
  %v2393 = vpop.f32.mrb[0].mxu0
  %v2394 = vpop.f32.mrb[0].mxu0
  %v2395 = vadd.f32 0.0, %v2394
  %v2396 = vpop.f32.mrb[0].mxu0
  %2397 = vmatprep.mubr.bf16.mxu0 0
  %2398 = vmatmul.mubr.bf16.gmra.mrb[0].mxu0 %v2344
  %v2399 = vpop.f32.mrb[0].mxu0
  %v2400 = vadd.f32 0.0, %v2399
  %v2401 = vpop.f32.mrb[0].mxu0
  %v2402 = vpop.f32.mrb[0].mxu0
  %v2403 = vadd.f32 0.0, %v2402
  %v2404 = vpop.f32.mrb[0].mxu0
  %2405 = vmatprep.mubr.bf16.mxu0 0
  %2406 = vmatmul.mubr.bf16.gmra.mrb[0].mxu0 %v2347
  %v2407 = vpop.f32.mrb[0].mxu0
  %v2408 = vadd.f32 0.0, %v2407
  %v2409 = vpop.f32.mrb[0].mxu0
  %v2410 = vpop.f32.mrb[0].mxu0
  %v2411 = vadd.f32 0.0, %v2410
  %v2412 = vpop.f32.mrb[0].mxu0
  %2413 = vdwg.mxu0
  %vm2414 = vcmp.ge.s32.totalorder %v311, 56
  %vm2415 = vcmp.lt.s32.totalorder %v311, 64
  %vm2416 = vmand %vm2414, %vm2415
  %v2417 = vmul.f32 %v2384, %v2325
  %v2418 = vmul.f32 %v2387, %v2326
  %v2419 = vmul.f32 %v2392, %v2327
  %v2420 = vmul.f32 %v2395, %v2328
  %v2421 = vmul.f32 %v2400, %v2329
  %v2422 = vmul.f32 %v2403, %v2330
  %v2423 = vmul.f32 %v2408, %v2331
  %v2424 = vmul.f32 %v2411, %v2332
  %v2425 = vsel %vm2416, 1, 0
  %vm2426 = vcmp.eq.s32.totalorder %v2425, 1
  %v2427 = vsel %vm2426, %v2417, 0.0
  %v2428 = vsel %vm2426, %v2418, 0.0
  %v2429 = vsel %vm2426, %v2419, 0.0
  %v2430 = vsel %vm2426, %v2420, 0.0
  %v2431 = vsel %vm2426, %v2421, 0.0
  %v2432 = vsel %vm2426, %v2422, 0.0
  %v2433 = vsel %vm2426, %v2423, 0.0
  %v2434 = vsel %vm2426, %v2424, 0.0
  %v2435 = vadd.f32 %v2177, %v2427
  %v2436 = vadd.f32 %v2178, %v2428
  %v2437 = vadd.f32 %v2179, %v2429
  %v2438 = vadd.f32 %v2180, %v2430
  %v2439 = vadd.f32 %v2181, %v2431
  %v2440 = vadd.f32 %v2182, %v2432
  %v2441 = vadd.f32 %v2183, %v2433
  %v2442 = vadd.f32 %v2184, %v2434
  %v2443 = vld [vmem:[%s4] sm:$0x1]
  %v2445 = vlaneseq
  %v2446 = vshrl.u32 %v2445, 7
  %v2447 = vsub.s32 0, %v2446
  %v2448 = vrot.slane %v2443, %v2447
  %v2450 = vadd.f32 %v2435, %v2448
  %v2451 = vadd.f32 %v2436, %v2448
  %v2452 = vadd.f32 %v2437, %v2448
  %v2453 = vadd.f32 %v2438, %v2448
  %v2454 = vadd.f32 %v2439, %v2448
  %v2455 = vadd.f32 %v2440, %v2448
  %v2456 = vadd.f32 %v2441, %v2448
  %v2457 = vadd.f32 %v2442, %v2448
  %v2458 = vpack.c.bf16 %v2451, %v2450
  %v2459 = vpack.c.bf16 %v2453, %v2452
  %v2460 = vpack.c.bf16 %v2455, %v2454
  %v2461 = vpack.c.bf16 %v2457, %v2456
  %v2466 = vunpack.c.l.b16 %v2458
  %v2467 = vunpack.c.h.b16 %v2458
  %v2468 = vunpack.c.l.b16 %v2459
  %v2469 = vunpack.c.h.b16 %v2459
  %v2470 = vunpack.c.l.b16 %v2460
  %v2471 = vunpack.c.h.b16 %v2460
  %v2472 = vunpack.c.l.b16 %v2461
  %v2473 = vunpack.c.h.b16 %v2461
  %v2474 = vpack.c.b16 %v2466, %v2466
  %v2475 = vpack.c.b16 %v2467, %v2467
  %v2476 = vpack.c.b16 %v2468, %v2468
  %v2477 = vpack.c.b16 %v2469, %v2469
  %v2478 = vpack.c.b16 %v2470, %v2470
  %v2479 = vpack.c.b16 %v2471, %v2471
  %v2480 = vpack.c.b16 %v2472, %v2472
  %v2481 = vpack.c.b16 %v2473, %v2473
  %2490 = vst [vmem:[%s6] sm:$0xf] %v2474
  %2491 = vst [vmem:[%s6 + $0x4] sm:$0xf] %v2475
  %2492 = vst [vmem:[%s6 + $0x8] sm:$0xf] %v2476
  %2493 = vst [vmem:[%s6 + $0xc] sm:$0xf] %v2477
  %2494 = vst [vmem:[%s6 + $0x10] sm:$0xf] %v2478
  %2495 = vst [vmem:[%s6 + $0x14] sm:$0xf] %v2479
  %2496 = vst [vmem:[%s6 + $0x18] sm:$0xf] %v2480
  %2497 = vst [vmem:[%s6 + $0x1c] sm:$0xf] %v2481
  // Predicated region
  $region26: #{gat_forward.2} parent=0 // pred_check
    _
  $region27: #{gat_forward.2} parent=0 // pred_check_branch
    %2499 = sbr.rel (0) target = $region29
  $region28: #{gat_forward.2} parent=0 // pred_region
    _
  $region29: #{gat_forward.2} parent=0 // pred_fallthru
    _
  // Predicated region
  $region30: #{gat_forward.2} parent=0 // pred_check
    _
  $region31: #{gat_forward.2} parent=0 // pred_check_branch
    %2501 = sbr.rel (0) target = $region33
  $region32: #{gat_forward.2} parent=0 // pred_region
    _
  $region33: #{gat_forward.2} parent=0 // pred_fallthru
    _

</llo_original>
